<compile_context>
chip_gen: v6e
topology: v6e:2x2x1
jax: 0.10.0
libtpu: 0.0.40
codegen_flags: <defaults>
</compile_context>

<pallas_src>
import jax
import jax.numpy as jnp
from jax import lax
from jax.experimental import pallas as pl
from jax.experimental.pallas import tpu as pltpu

LANE = 128
_VMEM = pl.BlockSpec(memory_space=pltpu.MemorySpace.VMEM)
_CPARAMS = pltpu.CompilerParams(vmem_limit_bytes=64 << 20)


# ------------------------------ Pallas kernels ------------------------------

def _matmul_bias_kernel(x_ref, w_ref, b_ref, o_ref):
    # x: [M, K], w: [K, N], b: [1, N] -> o: [M, N]   (conv1 with avg-pool folded in)
    o_ref[...] = (
        jnp.dot(x_ref[...], w_ref[...], preferred_element_type=jnp.float32)
        + b_ref[...]
    )


def _conv2_fc_kernel(p2_ref, w2_ref, b2_ref, w1s_ref, b1_ref,
                     w2fc_ref, b2fc_ref, w3fc_ref, b3fc_ref, o_ref):
    """conv2 (avg-pool folded) + flatten + fc1/ReLU + fc2/ReLU + fc3, fully fused.

    p2_ref : [25, Bp, 256]  pooled conv2 patches, one [Bp, K] block per output pixel p.
    w2_ref : [256, 128]     conv2 weight, (150, 16) valid, zero padded.
    b2_ref : [1, 128]       conv2 bias, 16 valid (pad zero).
    w1s_ref: [25, 128, 128] fc1 weight split per conv2 output pixel:
                            w1s[p, oc, n] = fc1_w[oc*25 + p, n]; rows >= 16 and
                            cols >= 120 are zero.  This folds torch's channel-major
                            view(B, 400) flatten into the weights so the conv output
                            never needs an in-kernel reshape / transpose.
    """
    n_pix = p2_ref.shape[0]            # 25 pooled conv2 output pixels
    bp = p2_ref.shape[1]               # padded batch (multiple of 8)

    acc = jnp.zeros((bp, LANE), jnp.float32)          # fc1 pre-activation accumulator
    for p in range(n_pix):                            # static unroll: 2 tiny MXU ops/iter
        c2_p = (
            jnp.dot(p2_ref[p], w2_ref[...], preferred_element_type=jnp.float32)
            + b2_ref[...]
        )                                             # [Bp, 128], cols 0..15 valid
        acc = acc + jnp.dot(c2_p, w1s_ref[p], preferred_element_type=jnp.float32)

    h1 = jnp.maximum(acc + b1_ref[...], 0.0)          # fc1 + ReLU (cols >=120 stay 0)
    h2 = jnp.maximum(
        jnp.dot(h1, w2fc_ref[...], preferred_element_type=jnp.float32) + b2fc_ref[...],
        0.0,
    )                                                 # fc2 + ReLU (cols >=84 stay 0)
    logits = (
        jnp.dot(h2, w3fc_ref[...], preferred_element_type=jnp.float32) + b3fc_ref[...]
    )
    o_ref[...] = logits[: o_ref.shape[0], : o_ref.shape[1]]   # [B, 10]


# ---------------------------- pallas_call wrappers ---------------------------

def _conv1_pool1_call(patches, w, b):
    m = patches.shape[0]
    n = w.shape[1]
    return pl.pallas_call(
        _matmul_bias_kernel,
        out_shape=jax.ShapeDtypeStruct((m, n), jnp.float32),
        in_specs=[_VMEM, _VMEM, _VMEM],
        out_specs=_VMEM,
        compiler_params=_CPARAMS,
    )(patches, w, b)


def _conv2_fc_call(p2, kp, batch):
    return pl.pallas_call(
        _conv2_fc_kernel,
        out_shape=jax.ShapeDtypeStruct((batch, 10), jnp.float32),
        in_specs=[_VMEM] * 9,
        out_specs=_VMEM,
        compiler_params=_CPARAMS,
    )(p2, kp["w2p"], kp["b2p"], kp["w1s"], kp["fc1b"],
      kp["fc2p"], kp["fc2b"], kp["fc3p"], kp["fc3b"])


# ------------------------------- wrapper glue --------------------------------

def _pooled_conv_patches(x_nhwc, k, out_hw):
    """Patches for conv(k, stride 1, VALID) followed by AvgPool2d(2, 2).

    Returns patches[b, oh, ow, c, i, j] =
        mean_{di,dj in {0,1}} x[b, 2*oh + di + i, 2*ow + dj + j, c]
    so that pooled_conv_out = patches.reshape(-1, C*k*k) @ W + b exactly
    (the 2x2 mean commutes with the conv because there is no nonlinearity between).
    """
    xa = 0.25 * (x_nhwc[:, :-1, :-1] + x_nhwc[:, 1:, :-1]
                 + x_nhwc[:, :-1, 1:] + x_nhwc[:, 1:, 1:])        # 2x2 running mean
    idx = 2 * jnp.arange(out_hw)[:, None] + jnp.arange(k)[None, :]  # [out_hw, k]
    p = xa[:, idx]                       # [B, oh, k, W-1, C]
    p = p[:, :, :, idx]                  # [B, oh, k, ow, k, C]
    return jnp.transpose(p, (0, 1, 3, 5, 2, 4))   # [B, oh, ow, C, k, k]


# --------------------------------- parameters --------------------------------

def init_params(key):
    """Torch-layout parameters (Conv2d OIHW, Linear stored as [in, out])."""
    ks = jax.random.split(key, 10)

    def uni(k, shape, fan_in):
        bound = 1.0 / jnp.sqrt(fan_in)
        return jax.random.uniform(k, shape, jnp.float32, -bound, bound)

    return {
        "w1": uni(ks[0], (6, 3, 5, 5), 3 * 5 * 5),
        "b1": uni(ks[1], (6,), 3 * 5 * 5),
        "w2": uni(ks[2], (16, 6, 5, 5), 6 * 5 * 5),
        "b2": uni(ks[3], (16,), 6 * 5 * 5),
        "fc1_w": uni(ks[4], (16 * 5 * 5, 120), 16 * 5 * 5),
        "fc1_b": uni(ks[5], (120,), 16 * 5 * 5),
        "fc2_w": uni(ks[6], (120, 84), 120),
        "fc2_b": uni(ks[7], (84,), 120),
        "fc3_w": uni(ks[8], (84, 10), 84),
        "fc3_b": uni(ks[9], (10,), 84),
    }


def prepare_params(p):
    """Pad / permute the torch-layout params into MXU-friendly layouts, ONCE."""
    def pad2(a, rows, cols):
        return jnp.pad(a, ((0, rows - a.shape[0]), (0, cols - a.shape[1])))

    w1 = p["w1"].reshape(6, 75).T                                # [(c,i,j), oc]
    w2 = p["w2"].reshape(16, 150).T                              # [(c,i,j), oc]
    w1s = p["fc1_w"].reshape(16, 25, 120).transpose(1, 0, 2)     # [pixel, oc, n]
    return {
        "w1p": pad2(w1, LANE, LANE),                             # [128, 128]
        "b1p": jnp.pad(p["b1"], (0, LANE - 6)).reshape(1, LANE),
        "w2p": pad2(w2, 2 * LANE, LANE),                         # [256, 128]
        "b2p": jnp.pad(p["b2"], (0, LANE - 16)).reshape(1, LANE),
        "w1s": jnp.pad(w1s, ((0, 0), (0, LANE - 16), (0, LANE - 120))),  # [25,128,128]
        "fc1b": jnp.pad(p["fc1_b"], (0, LANE - 120)).reshape(1, LANE),
        "fc2p": pad2(p["fc2_w"], LANE, LANE),
        "fc2b": jnp.pad(p["fc2_b"], (0, LANE - 84)).reshape(1, LANE),
        "fc3p": pad2(p["fc3_w"], LANE, LANE),
        "fc3b": jnp.pad(p["fc3_b"], (0, LANE - 10)).reshape(1, LANE),
    }


# ---------------------------------- forward ----------------------------------

def lenet5_forward(x, kp):
    """x: [B, 3, 32, 32] float32 -> logits [B, 10]."""
    b = x.shape[0]
    x = jnp.transpose(x, (0, 2, 3, 1))                    # NCHW -> NHWC, once

    # conv1 (5x5, valid) + AvgPool2d(2): pool folded into the patch rows.
    p1 = _pooled_conv_patches(x, k=5, out_hw=14)          # [B, 14, 14, 3, 5, 5]
    p1 = p1.reshape(b * 14 * 14, 3 * 25)
    p1 = jnp.pad(p1, ((0, 0), (0, LANE - 75)))            # K: 75 -> 128 (lane dense)
    a1 = _conv1_pool1_call(p1, kp["w1p"], kp["b1p"])      # [B*196, 128], cols 0..5 valid
    a1 = a1.reshape(b, 14, 14, LANE)[..., :6]             # pooled conv1 output, NHWC

    # conv2 + AvgPool2d(2) + flatten + fc1/ReLU/fc2/ReLU/fc3: one fused kernel.
    p2 = _pooled_conv_patches(a1, k=5, out_hw=5)          # [B, 5, 5, 6, 5, 5]
    p2 = p2.reshape(b, 25, 150).transpose(1, 0, 2)        # [25, B, 150]
    bp = max(8, ((b + 7) // 8) * 8)
    p2 = jnp.pad(p2, ((0, 0), (0, bp - b), (0, 2 * LANE - 150)))  # [25, Bp, 256]
    return _conv2_fc_call(p2, kp, b)                      # [B, 10]


# --------------------------- pure-JAX reference check -------------------------

def lenet5_reference(x, p):
    dn = ("NCHW", "OIHW", "NCHW")
    hi = lax.Precision.HIGHEST
    y = lax.conv_general_dilated(x, p["w1"], (1, 1), "VALID",
                                 dimension_numbers=dn, precision=hi)
    y = y + p["b1"][None, :, None, None]
    y = 0.25 * (y[:, :, 0::2, 0::2] + y[:, :, 1::2, 0::2]
                + y[:, :, 0::2, 1::2] + y[:, :, 1::2, 1::2])
    y = lax.conv_general_dilated(y, p["w2"], (1, 1), "VALID",
                                 dimension_numbers=dn, precision=hi)
    y = y + p["b2"][None, :, None, None]
    y = 0.25 * (y[:, :, 0::2, 0::2] + y[:, :, 1::2, 0::2]
                + y[:, :, 0::2, 1::2] + y[:, :, 1::2, 1::2])
    y = y.reshape(x.shape[0], 16 * 5 * 5)
    y = jnp.maximum(jnp.dot(y, p["fc1_w"], precision=hi) + p["fc1_b"], 0.0)
    y = jnp.maximum(jnp.dot(y, p["fc2_w"], precision=hi) + p["fc2_b"], 0.0)
    return jnp.dot(y, p["fc3_w"], precision=hi) + p["fc3_b"]


if __name__ == "__main__":
    key = jax.random.PRNGKey(0)
    pkey, xkey = jax.random.split(key)
    params = init_params(pkey)
    kparams = prepare_params(params)          # pad / permute weights once, outside jit
    x = jax.random.normal(xkey, (2, 3, 32, 32), jnp.float32)

    logits = jax.jit(lenet5_forward)(x, kparams)
    jax.block_until_ready(logits)
    assert logits.shape == (2, 10) and logits.dtype == jnp.float32

    ref = lenet5_reference(x, params)
    rel_err = jnp.linalg.norm(logits - ref) / (jnp.linalg.norm(ref) + 1e-12)
    assert float(rel_err) < 3e-2, f"kernel/reference mismatch: rel_err={float(rel_err)}"
    print("KERNEL_OK")
</pallas_src>

<mosaic_0001>
module attributes {stable_mosaic.version = 11 : i64} {
  func.func @_matmul_bias_kernel(%arg0: memref<392x128xf32, #tpu.memory_space<vmem>>, %arg1: memref<128x128xf32, #tpu.memory_space<vmem>>, %arg2: memref<1x128xf32, #tpu.memory_space<vmem>>, %arg3: memref<392x128xf32, #tpu.memory_space<vmem>>) attributes {dimension_semantics = [], scalar_prefetch = 0 : i64, scratch_operands = 0 : i64, tpu.core_type = #tpu.core_type<tc>} {
    %c0 = arith.constant 0 : index
    %c0_0 = arith.constant 0 : index
    %0 = vector.load %arg0[%c0, %c0_0] : memref<392x128xf32, #tpu.memory_space<vmem>>, vector<392x128xf32>
    %c0_1 = arith.constant 0 : index
    %c0_2 = arith.constant 0 : index
    %1 = vector.load %arg1[%c0_1, %c0_2] : memref<128x128xf32, #tpu.memory_space<vmem>>, vector<128x128xf32>
    %cst = arith.constant dense<0.000000e+00> : vector<392x128xf32>
    %2 = tpu.matmul %0, %1, %cst {dimension_numbers = #tpu.dot_dimension_numbers<[1], [0], [0], [1], [0, 0, 1, 1], [], []>} : vector<392x128xf32>, vector<128x128xf32>, vector<392x128xf32> -> vector<392x128xf32>
    %c0_3 = arith.constant 0 : index
    %c0_4 = arith.constant 0 : index
    %3 = vector.load %arg2[%c0_3, %c0_4] : memref<1x128xf32, #tpu.memory_space<vmem>>, vector<1x128xf32>
    %4 = vector.broadcast %3 : vector<1x128xf32> to vector<392x128xf32>
    %5 = arith.addf %2, %4 : vector<392x128xf32>
    %c0_5 = arith.constant 0 : index
    %c0_6 = arith.constant 0 : index
    %6 = vector.load %arg3[%c0_5, %c0_6] : memref<392x128xf32, #tpu.memory_space<vmem>>, vector<392x128xf32>
    tpu.vector_store %arg3[%c0_5, %c0_6], %5 {strides = array<i32>} : memref<392x128xf32, #tpu.memory_space<vmem>>, vector<392x128xf32>,
    return
  }
}

module attributes {stable_mosaic.version = 11 : i64} {
  func.func @_conv2_fc_kernel(%arg0: memref<25x8x256xf32, #tpu.memory_space<vmem>>, %arg1: memref<256x128xf32, #tpu.memory_space<vmem>>, %arg2: memref<1x128xf32, #tpu.memory_space<vmem>>, %arg3: memref<25x128x128xf32, #tpu.memory_space<vmem>>, %arg4: memref<1x128xf32, #tpu.memory_space<vmem>>, %arg5: memref<128x128xf32, #tpu.memory_space<vmem>>, %arg6: memref<1x128xf32, #tpu.memory_space<vmem>>, %arg7: memref<128x128xf32, #tpu.memory_space<vmem>>, %arg8: memref<1x128xf32, #tpu.memory_space<vmem>>, %arg9: memref<2x10xf32, #tpu.memory_space<vmem>>) attributes {dimension_semantics = [], scalar_prefetch = 0 : i64, scratch_operands = 0 : i64, tpu.core_type = #tpu.core_type<tc>} {
    %cst = arith.constant 0.000000e+00 : f32
    %0 = vector.broadcast %cst : f32 to vector<8x128xf32>
    %c0 = arith.constant 0 : index
    %c0_0 = arith.constant 0 : index
    %c0_1 = arith.constant 0 : index
    %1 = vector.load %arg0[%c0, %c0_0, %c0_1] : memref<25x8x256xf32, #tpu.memory_space<vmem>>, vector<1x8x256xf32>
    %2 = vector.shape_cast %1 : vector<1x8x256xf32> to vector<8x256xf32>
    %c0_2 = arith.constant 0 : index
    %c0_3 = arith.constant 0 : index
    %3 = vector.load %arg1[%c0_2, %c0_3] : memref<256x128xf32, #tpu.memory_space<vmem>>, vector<256x128xf32>
    %cst_4 = arith.constant dense<0.000000e+00> : vector<8x128xf32>
    %4 = tpu.matmul %2, %3, %cst_4 {dimension_numbers = #tpu.dot_dimension_numbers<[1], [0], [0], [1], [0, 0, 1, 1], [], []>} : vector<8x256xf32>, vector<256x128xf32>, vector<8x128xf32> -> vector<8x128xf32>
    %c0_5 = arith.constant 0 : index
    %c0_6 = arith.constant 0 : index
    %5 = vector.load %arg2[%c0_5, %c0_6] : memref<1x128xf32, #tpu.memory_space<vmem>>, vector<1x128xf32>
    %6 = vector.broadcast %5 : vector<1x128xf32> to vector<8x128xf32>
    %7 = arith.addf %4, %6 : vector<8x128xf32>
    %c0_7 = arith.constant 0 : index
    %c0_8 = arith.constant 0 : index
    %c0_9 = arith.constant 0 : index
    %8 = vector.load %arg3[%c0_7, %c0_8, %c0_9] : memref<25x128x128xf32, #tpu.memory_space<vmem>>, vector<1x128x128xf32>
    %9 = vector.shape_cast %8 : vector<1x128x128xf32> to vector<128x128xf32>
    %cst_10 = arith.constant dense<0.000000e+00> : vector<8x128xf32>
    %10 = tpu.matmul %7, %9, %cst_10 {dimension_numbers = #tpu.dot_dimension_numbers<[1], [0], [0], [1], [0, 0, 1, 1], [], []>} : vector<8x128xf32>, vector<128x128xf32>, vector<8x128xf32> -> vector<8x128xf32>
    %11 = arith.addf %0, %10 : vector<8x128xf32>
    %c1 = arith.constant 1 : index
    %c0_11 = arith.constant 0 : index
    %c0_12 = arith.constant 0 : index
    %12 = vector.load %arg0[%c1, %c0_11, %c0_12] : memref<25x8x256xf32, #tpu.memory_space<vmem>>, vector<1x8x256xf32>
    %13 = vector.shape_cast %12 : vector<1x8x256xf32> to vector<8x256xf32>
    %c0_13 = arith.constant 0 : index
    %c0_14 = arith.constant 0 : index
    %14 = vector.load %arg1[%c0_13, %c0_14] : memref<256x128xf32, #tpu.memory_space<vmem>>, vector<256x128xf32>
    %cst_15 = arith.constant dense<0.000000e+00> : vector<8x128xf32>
    %15 = tpu.matmul %13, %14, %cst_15 {dimension_numbers = #tpu.dot_dimension_numbers<[1], [0], [0], [1], [0, 0, 1, 1], [], []>} : vector<8x256xf32>, vector<256x128xf32>, vector<8x128xf32> -> vector<8x128xf32>
    %c0_16 = arith.constant 0 : index
    %c0_17 = arith.constant 0 : index
    %16 = vector.load %arg2[%c0_16, %c0_17] : memref<1x128xf32, #tpu.memory_space<vmem>>, vector<1x128xf32>
    %17 = vector.broadcast %16 : vector<1x128xf32> to vector<8x128xf32>
    %18 = arith.addf %15, %17 : vector<8x128xf32>
    %c1_18 = arith.constant 1 : index
    %c0_19 = arith.constant 0 : index
    %c0_20 = arith.constant 0 : index
    %19 = vector.load %arg3[%c1_18, %c0_19, %c0_20] : memref<25x128x128xf32, #tpu.memory_space<vmem>>, vector<1x128x128xf32>
    %20 = vector.shape_cast %19 : vector<1x128x128xf32> to vector<128x128xf32>
    %cst_21 = arith.constant dense<0.000000e+00> : vector<8x128xf32>
    %21 = tpu.matmul %18, %20, %cst_21 {dimension_numbers = #tpu.dot_dimension_numbers<[1], [0], [0], [1], [0, 0, 1, 1], [], []>} : vector<8x128xf32>, vector<128x128xf32>, vector<8x128xf32> -> vector<8x128xf32>
    %22 = arith.addf %11, %21 : vector<8x128xf32>
    %c2 = arith.constant 2 : index
    %c0_22 = arith.constant 0 : index
    %c0_23 = arith.constant 0 : index
    %23 = vector.load %arg0[%c2, %c0_22, %c0_23] : memref<25x8x256xf32, #tpu.memory_space<vmem>>, vector<1x8x256xf32>
    %24 = vector.shape_cast %23 : vector<1x8x256xf32> to vector<8x256xf32>
    %c0_24 = arith.constant 0 : index
    %c0_25 = arith.constant 0 : index
    %25 = vector.load %arg1[%c0_24, %c0_25] : memref<256x128xf32, #tpu.memory_space<vmem>>, vector<256x128xf32>
    %cst_26 = arith.constant dense<0.000000e+00> : vector<8x128xf32>
    %26 = tpu.matmul %24, %25, %cst_26 {dimension_numbers = #tpu.dot_dimension_numbers<[1], [0], [0], [1], [0, 0, 1, 1], [], []>} : vector<8x256xf32>, vector<256x128xf32>, vector<8x128xf32> -> vector<8x128xf32>
    %c0_27 = arith.constant 0 : index
    %c0_28 = arith.constant 0 : index
    %27 = vector.load %arg2[%c0_27, %c0_28] : memref<1x128xf32, #tpu.memory_space<vmem>>, vector<1x128xf32>
    %28 = vector.broadcast %27 : vector<1x128xf32> to vector<8x128xf32>
    %29 = arith.addf %26, %28 : vector<8x128xf32>
    %c2_29 = arith.constant 2 : index
    %c0_30 = arith.constant 0 : index
    %c0_31 = arith.constant 0 : index
    %30 = vector.load %arg3[%c2_29, %c0_30, %c0_31] : memref<25x128x128xf32, #tpu.memory_space<vmem>>, vector<1x128x128xf32>
    %31 = vector.shape_cast %30 : vector<1x128x128xf32> to vector<128x128xf32>
    %cst_32 = arith.constant dense<0.000000e+00> : vector<8x128xf32>
    %32 = tpu.matmul %29, %31, %cst_32 {dimension_numbers = #tpu.dot_dimension_numbers<[1], [0], [0], [1], [0, 0, 1, 1], [], []>} : vector<8x128xf32>, vector<128x128xf32>, vector<8x128xf32> -> vector<8x128xf32>
    %33 = arith.addf %22, %32 : vector<8x128xf32>
    %c3 = arith.constant 3 : index
    %c0_33 = arith.constant 0 : index
    %c0_34 = arith.constant 0 : index
    %34 = vector.load %arg0[%c3, %c0_33, %c0_34] : memref<25x8x256xf32, #tpu.memory_space<vmem>>, vector<1x8x256xf32>
    %35 = vector.shape_cast %34 : vector<1x8x256xf32> to vector<8x256xf32>
    %c0_35 = arith.constant 0 : index
    %c0_36 = arith.constant 0 : index
    %36 = vector.load %arg1[%c0_35, %c0_36] : memref<256x128xf32, #tpu.memory_space<vmem>>, vector<256x128xf32>
    %cst_37 = arith.constant dense<0.000000e+00> : vector<8x128xf32>
    %37 = tpu.matmul %35, %36, %cst_37 {dimension_numbers = #tpu.dot_dimension_numbers<[1], [0], [0], [1], [0, 0, 1, 1], [], []>} : vector<8x256xf32>, vector<256x128xf32>, vector<8x128xf32> -> vector<8x128xf32>
    %c0_38 = arith.constant 0 : index
    %c0_39 = arith.constant 0 : index
    %38 = vector.load %arg2[%c0_38, %c0_39] : memref<1x128xf32, #tpu.memory_space<vmem>>, vector<1x128xf32>
    %39 = vector.broadcast %38 : vector<1x128xf32> to vector<8x128xf32>
    %40 = arith.addf %37, %39 : vector<8x128xf32>
    %c3_40 = arith.constant 3 : index
    %c0_41 = arith.constant 0 : index
    %c0_42 = arith.constant 0 : index
    %41 = vector.load %arg3[%c3_40, %c0_41, %c0_42] : memref<25x128x128xf32, #tpu.memory_space<vmem>>, vector<1x128x128xf32>
    %42 = vector.shape_cast %41 : vector<1x128x128xf32> to vector<128x128xf32>
    %cst_43 = arith.constant dense<0.000000e+00> : vector<8x128xf32>
    %43 = tpu.matmul %40, %42, %cst_43 {dimension_numbers = #tpu.dot_dimension_numbers<[1], [0], [0], [1], [0, 0, 1, 1], [], []>} : vector<8x128xf32>, vector<128x128xf32>, vector<8x128xf32> -> vector<8x128xf32>
    %44 = arith.addf %33, %43 : vector<8x128xf32>
    %c4 = arith.constant 4 : index
    %c0_44 = arith.constant 0 : index
    %c0_45 = arith.constant 0 : index
    %45 = vector.load %arg0[%c4, %c0_44, %c0_45] : memref<25x8x256xf32, #tpu.memory_space<vmem>>, vector<1x8x256xf32>
    %46 = vector.shape_cast %45 : vector<1x8x256xf32> to vector<8x256xf32>
    %c0_46 = arith.constant 0 : index
    %c0_47 = arith.constant 0 : index
    %47 = vector.load %arg1[%c0_46, %c0_47] : memref<256x128xf32, #tpu.memory_space<vmem>>, vector<256x128xf32>
    %cst_48 = arith.constant dense<0.000000e+00> : vector<8x128xf32>
    %48 = tpu.matmul %46, %47, %cst_48 {dimension_numbers = #tpu.dot_dimension_numbers<[1], [0], [0], [1], [0, 0, 1, 1], [], []>} : vector<8x256xf32>, vector<256x128xf32>, vector<8x128xf32> -> vector<8x128xf32>
    %c0_49 = arith.constant 0 : index
    %c0_50 = arith.constant 0 : index
    %49 = vector.load %arg2[%c0_49, %c0_50] : memref<1x128xf32, #tpu.memory_space<vmem>>, vector<1x128xf32>
    %50 = vector.broadcast %49 : vector<1x128xf32> to vector<8x128xf32>
    %51 = arith.addf %48, %50 : vector<8x128xf32>
    %c4_51 = arith.constant 4 : index
    %c0_52 = arith.constant 0 : index
    %c0_53 = arith.constant 0 : index
    %52 = vector.load %arg3[%c4_51, %c0_52, %c0_53] : memref<25x128x128xf32, #tpu.memory_space<vmem>>, vector<1x128x128xf32>
    %53 = vector.shape_cast %52 : vector<1x128x128xf32> to vector<128x128xf32>
    %cst_54 = arith.constant dense<0.000000e+00> : vector<8x128xf32>
    %54 = tpu.matmul %51, %53, %cst_54 {dimension_numbers = #tpu.dot_dimension_numbers<[1], [0], [0], [1], [0, 0, 1, 1], [], []>} : vector<8x128xf32>, vector<128x128xf32>, vector<8x128xf32> -> vector<8x128xf32>
    %55 = arith.addf %44, %54 : vector<8x128xf32>
    %c5 = arith.constant 5 : index
    %c0_55 = arith.constant 0 : index
    %c0_56 = arith.constant 0 : index
    %56 = vector.load %arg0[%c5, %c0_55, %c0_56] : memref<25x8x256xf32, #tpu.memory_space<vmem>>, vector<1x8x256xf32>
    %57 = vector.shape_cast %56 : vector<1x8x256xf32> to vector<8x256xf32>
    %c0_57 = arith.constant 0 : index
    %c0_58 = arith.constant 0 : index
    %58 = vector.load %arg1[%c0_57, %c0_58] : memref<256x128xf32, #tpu.memory_space<vmem>>, vector<256x128xf32>
    %cst_59 = arith.constant dense<0.000000e+00> : vector<8x128xf32>
    %59 = tpu.matmul %57, %58, %cst_59 {dimension_numbers = #tpu.dot_dimension_numbers<[1], [0], [0], [1], [0, 0, 1, 1], [], []>} : vector<8x256xf32>, vector<256x128xf32>, vector<8x128xf32> -> vector<8x128xf32>
    %c0_60 = arith.constant 0 : index
    %c0_61 = arith.constant 0 : index
    %60 = vector.load %arg2[%c0_60, %c0_61] : memref<1x128xf32, #tpu.memory_space<vmem>>, vector<1x128xf32>
    %61 = vector.broadcast %60 : vector<1x128xf32> to vector<8x128xf32>
    %62 = arith.addf %59, %61 : vector<8x128xf32>
    %c5_62 = arith.constant 5 : index
    %c0_63 = arith.constant 0 : index
    %c0_64 = arith.constant 0 : index
    %63 = vector.load %arg3[%c5_62, %c0_63, %c0_64] : memref<25x128x128xf32, #tpu.memory_space<vmem>>, vector<1x128x128xf32>
    %64 = vector.shape_cast %63 : vector<1x128x128xf32> to vector<128x128xf32>
    %cst_65 = arith.constant dense<0.000000e+00> : vector<8x128xf32>
    %65 = tpu.matmul %62, %64, %cst_65 {dimension_numbers = #tpu.dot_dimension_numbers<[1], [0], [0], [1], [0, 0, 1, 1], [], []>} : vector<8x128xf32>, vector<128x128xf32>, vector<8x128xf32> -> vector<8x128xf32>
    %66 = arith.addf %55, %65 : vector<8x128xf32>
    %c6 = arith.constant 6 : index
    %c0_66 = arith.constant 0 : index
    %c0_67 = arith.constant 0 : index
    %67 = vector.load %arg0[%c6, %c0_66, %c0_67] : memref<25x8x256xf32, #tpu.memory_space<vmem>>, vector<1x8x256xf32>
    %68 = vector.shape_cast %67 : vector<1x8x256xf32> to vector<8x256xf32>
    %c0_68 = arith.constant 0 : index
    %c0_69 = arith.constant 0 : index
    %69 = vector.load %arg1[%c0_68, %c0_69] : memref<256x128xf32, #tpu.memory_space<vmem>>, vector<256x128xf32>
    %cst_70 = arith.constant dense<0.000000e+00> : vector<8x128xf32>
    %70 = tpu.matmul %68, %69, %cst_70 {dimension_numbers = #tpu.dot_dimension_numbers<[1], [0], [0], [1], [0, 0, 1, 1], [], []>} : vector<8x256xf32>, vector<256x128xf32>, vector<8x128xf32> -> vector<8x128xf32>
    %c0_71 = arith.constant 0 : index
    %c0_72 = arith.constant 0 : index
    %71 = vector.load %arg2[%c0_71, %c0_72] : memref<1x128xf32, #tpu.memory_space<vmem>>, vector<1x128xf32>
    %72 = vector.broadcast %71 : vector<1x128xf32> to vector<8x128xf32>
    %73 = arith.addf %70, %72 : vector<8x128xf32>
    %c6_73 = arith.constant 6 : index
    %c0_74 = arith.constant 0 : index
    %c0_75 = arith.constant 0 : index
    %74 = vector.load %arg3[%c6_73, %c0_74, %c0_75] : memref<25x128x128xf32, #tpu.memory_space<vmem>>, vector<1x128x128xf32>
    %75 = vector.shape_cast %74 : vector<1x128x128xf32> to vector<128x128xf32>
    %cst_76 = arith.constant dense<0.000000e+00> : vector<8x128xf32>
    %76 = tpu.matmul %73, %75, %cst_76 {dimension_numbers = #tpu.dot_dimension_numbers<[1], [0], [0], [1], [0, 0, 1, 1], [], []>} : vector<8x128xf32>, vector<128x128xf32>, vector<8x128xf32> -> vector<8x128xf32>
    %77 = arith.addf %66, %76 : vector<8x128xf32>
    %c7 = arith.constant 7 : index
    %c0_77 = arith.constant 0 : index
    %c0_78 = arith.constant 0 : index
    %78 = vector.load %arg0[%c7, %c0_77, %c0_78] : memref<25x8x256xf32, #tpu.memory_space<vmem>>, vector<1x8x256xf32>
    %79 = vector.shape_cast %78 : vector<1x8x256xf32> to vector<8x256xf32>
    %c0_79 = arith.constant 0 : index
    %c0_80 = arith.constant 0 : index
    %80 = vector.load %arg1[%c0_79, %c0_80] : memref<256x128xf32, #tpu.memory_space<vmem>>, vector<256x128xf32>
    %cst_81 = arith.constant dense<0.000000e+00> : vector<8x128xf32>
    %81 = tpu.matmul %79, %80, %cst_81 {dimension_numbers = #tpu.dot_dimension_numbers<[1], [0], [0], [1], [0, 0, 1, 1], [], []>} : vector<8x256xf32>, vector<256x128xf32>, vector<8x128xf32> -> vector<8x128xf32>
    %c0_82 = arith.constant 0 : index
    %c0_83 = arith.constant 0 : index
    %82 = vector.load %arg2[%c0_82, %c0_83] : memref<1x128xf32, #tpu.memory_space<vmem>>, vector<1x128xf32>
    %83 = vector.broadcast %82 : vector<1x128xf32> to vector<8x128xf32>
    %84 = arith.addf %81, %83 : vector<8x128xf32>
    %c7_84 = arith.constant 7 : index
    %c0_85 = arith.constant 0 : index
    %c0_86 = arith.constant 0 : index
    %85 = vector.load %arg3[%c7_84, %c0_85, %c0_86] : memref<25x128x128xf32, #tpu.memory_space<vmem>>, vector<1x128x128xf32>
    %86 = vector.shape_cast %85 : vector<1x128x128xf32> to vector<128x128xf32>
    %cst_87 = arith.constant dense<0.000000e+00> : vector<8x128xf32>
    %87 = tpu.matmul %84, %86, %cst_87 {dimension_numbers = #tpu.dot_dimension_numbers<[1], [0], [0], [1], [0, 0, 1, 1], [], []>} : vector<8x128xf32>, vector<128x128xf32>, vector<8x128xf32> -> vector<8x128xf32>
    %88 = arith.addf %77, %87 : vector<8x128xf32>
    %c8 = arith.constant 8 : index
    %c0_88 = arith.constant 0 : index
    %c0_89 = arith.constant 0 : index
    %89 = vector.load %arg0[%c8, %c0_88, %c0_89] : memref<25x8x256xf32, #tpu.memory_space<vmem>>, vector<1x8x256xf32>
    %90 = vector.shape_cast %89 : vector<1x8x256xf32> to vector<8x256xf32>
    %c0_90 = arith.constant 0 : index
    %c0_91 = arith.constant 0 : index
    %91 = vector.load %arg1[%c0_90, %c0_91] : memref<256x128xf32, #tpu.memory_space<vmem>>, vector<256x128xf32>
    %cst_92 = arith.constant dense<0.000000e+00> : vector<8x128xf32>
    %92 = tpu.matmul %90, %91, %cst_92 {dimension_numbers = #tpu.dot_dimension_numbers<[1], [0], [0], [1], [0, 0, 1, 1], [], []>} : vector<8x256xf32>, vector<256x128xf32>, vector<8x128xf32> -> vector<8x128xf32>
    %c0_93 = arith.constant 0 : index
    %c0_94 = arith.constant 0 : index
    %93 = vector.load %arg2[%c0_93, %c0_94] : memref<1x128xf32, #tpu.memory_space<vmem>>, vector<1x128xf32>
    %94 = vector.broadcast %93 : vector<1x128xf32> to vector<8x128xf32>
    %95 = arith.addf %92, %94 : vector<8x128xf32>
    %c8_95 = arith.constant 8 : index
    %c0_96 = arith.constant 0 : index
    %c0_97 = arith.constant 0 : index
    %96 = vector.load %arg3[%c8_95, %c0_96, %c0_97] : memref<25x128x128xf32, #tpu.memory_space<vmem>>, vector<1x128x128xf32>
    %97 = vector.shape_cast %96 : vector<1x128x128xf32> to vector<128x128xf32>
    %cst_98 = arith.constant dense<0.000000e+00> : vector<8x128xf32>
    %98 = tpu.matmul %95, %97, %cst_98 {dimension_numbers = #tpu.dot_dimension_numbers<[1], [0], [0], [1], [0, 0, 1, 1], [], []>} : vector<8x128xf32>, vector<128x128xf32>, vector<8x128xf32> -> vector<8x128xf32>
    %99 = arith.addf %88, %98 : vector<8x128xf32>
    %c9 = arith.constant 9 : index
    %c0_99 = arith.constant 0 : index
    %c0_100 = arith.constant 0 : index
    %100 = vector.load %arg0[%c9, %c0_99, %c0_100] : memref<25x8x256xf32, #tpu.memory_space<vmem>>, vector<1x8x256xf32>
    %101 = vector.shape_cast %100 : vector<1x8x256xf32> to vector<8x256xf32>
    %c0_101 = arith.constant 0 : index
    %c0_102 = arith.constant 0 : index
    %102 = vector.load %arg1[%c0_101, %c0_102] : memref<256x128xf32, #tpu.memory_space<vmem>>, vector<256x128xf32>
    %cst_103 = arith.constant dense<0.000000e+00> : vector<8x128xf32>
    %103 = tpu.matmul %101, %102, %cst_103 {dimension_numbers = #tpu.dot_dimension_numbers<[1], [0], [0], [1], [0, 0, 1, 1], [], []>} : vector<8x256xf32>, vector<256x128xf32>, vector<8x128xf32> -> vector<8x128xf32>
    %c0_104 = arith.constant 0 : index
    %c0_105 = arith.constant 0 : index
    %104 = vector.load %arg2[%c0_104, %c0_105] : memref<1x128xf32, #tpu.memory_space<vmem>>, vector<1x128xf32>
    %105 = vector.broadcast %104 : vector<1x128xf32> to vector<8x128xf32>
    %106 = arith.addf %103, %105 : vector<8x128xf32>
    %c9_106 = arith.constant 9 : index
    %c0_107 = arith.constant 0 : index
    %c0_108 = arith.constant 0 : index
    %107 = vector.load %arg3[%c9_106, %c0_107, %c0_108] : memref<25x128x128xf32, #tpu.memory_space<vmem>>, vector<1x128x128xf32>
    %108 = vector.shape_cast %107 : vector<1x128x128xf32> to vector<128x128xf32>
    %cst_109 = arith.constant dense<0.000000e+00> : vector<8x128xf32>
    %109 = tpu.matmul %106, %108, %cst_109 {dimension_numbers = #tpu.dot_dimension_numbers<[1], [0], [0], [1], [0, 0, 1, 1], [], []>} : vector<8x128xf32>, vector<128x128xf32>, vector<8x128xf32> -> vector<8x128xf32>
    %110 = arith.addf %99, %109 : vector<8x128xf32>
    %c10 = arith.constant 10 : index
    %c0_110 = arith.constant 0 : index
    %c0_111 = arith.constant 0 : index
    %111 = vector.load %arg0[%c10, %c0_110, %c0_111] : memref<25x8x256xf32, #tpu.memory_space<vmem>>, vector<1x8x256xf32>
    %112 = vector.shape_cast %111 : vector<1x8x256xf32> to vector<8x256xf32>
    %c0_112 = arith.constant 0 : index
    %c0_113 = arith.constant 0 : index
    %113 = vector.load %arg1[%c0_112, %c0_113] : memref<256x128xf32, #tpu.memory_space<vmem>>, vector<256x128xf32>
    %cst_114 = arith.constant dense<0.000000e+00> : vector<8x128xf32>
    %114 = tpu.matmul %112, %113, %cst_114 {dimension_numbers = #tpu.dot_dimension_numbers<[1], [0], [0], [1], [0, 0, 1, 1], [], []>} : vector<8x256xf32>, vector<256x128xf32>, vector<8x128xf32> -> vector<8x128xf32>
    %c0_115 = arith.constant 0 : index
    %c0_116 = arith.constant 0 : index
    %115 = vector.load %arg2[%c0_115, %c0_116] : memref<1x128xf32, #tpu.memory_space<vmem>>, vector<1x128xf32>
    %116 = vector.broadcast %115 : vector<1x128xf32> to vector<8x128xf32>
    %117 = arith.addf %114, %116 : vector<8x128xf32>
    %c10_117 = arith.constant 10 : index
    %c0_118 = arith.constant 0 : index
    %c0_119 = arith.constant 0 : index
    %118 = vector.load %arg3[%c10_117, %c0_118, %c0_119] : memref<25x128x128xf32, #tpu.memory_space<vmem>>, vector<1x128x128xf32>
    %119 = vector.shape_cast %118 : vector<1x128x128xf32> to vector<128x128xf32>
    %cst_120 = arith.constant dense<0.000000e+00> : vector<8x128xf32>
    %120 = tpu.matmul %117, %119, %cst_120 {dimension_numbers = #tpu.dot_dimension_numbers<[1], [0], [0], [1], [0, 0, 1, 1], [], []>} : vector<8x128xf32>, vector<128x128xf32>, vector<8x128xf32> -> vector<8x128xf32>
    %121 = arith.addf %110, %120 : vector<8x128xf32>
    %c11 = arith.constant 11 : index
    %c0_121 = arith.constant 0 : index
    %c0_122 = arith.constant 0 : index
    %122 = vector.load %arg0[%c11, %c0_121, %c0_122] : memref<25x8x256xf32, #tpu.memory_space<vmem>>, vector<1x8x256xf32>
    %123 = vector.shape_cast %122 : vector<1x8x256xf32> to vector<8x256xf32>
    %c0_123 = arith.constant 0 : index
    %c0_124 = arith.constant 0 : index
    %124 = vector.load %arg1[%c0_123, %c0_124] : memref<256x128xf32, #tpu.memory_space<vmem>>, vector<256x128xf32>
    %cst_125 = arith.constant dense<0.000000e+00> : vector<8x128xf32>
    %125 = tpu.matmul %123, %124, %cst_125 {dimension_numbers = #tpu.dot_dimension_numbers<[1], [0], [0], [1], [0, 0, 1, 1], [], []>} : vector<8x256xf32>, vector<256x128xf32>, vector<8x128xf32> -> vector<8x128xf32>
    %c0_126 = arith.constant 0 : index
    %c0_127 = arith.constant 0 : index
    %126 = vector.load %arg2[%c0_126, %c0_127] : memref<1x128xf32, #tpu.memory_space<vmem>>, vector<1x128xf32>
    %127 = vector.broadcast %126 : vector<1x128xf32> to vector<8x128xf32>
    %128 = arith.addf %125, %127 : vector<8x128xf32>
    %c11_128 = arith.constant 11 : index
    %c0_129 = arith.constant 0 : index
    %c0_130 = arith.constant 0 : index
    %129 = vector.load %arg3[%c11_128, %c0_129, %c0_130] : memref<25x128x128xf32, #tpu.memory_space<vmem>>, vector<1x128x128xf32>
    %130 = vector.shape_cast %129 : vector<1x128x128xf32> to vector<128x128xf32>
    %cst_131 = arith.constant dense<0.000000e+00> : vector<8x128xf32>
    %131 = tpu.matmul %128, %130, %cst_131 {dimension_numbers = #tpu.dot_dimension_numbers<[1], [0], [0], [1], [0, 0, 1, 1], [], []>} : vector<8x128xf32>, vector<128x128xf32>, vector<8x128xf32> -> vector<8x128xf32>
    %132 = arith.addf %121, %131 : vector<8x128xf32>
    %c12 = arith.constant 12 : index
    %c0_132 = arith.constant 0 : index
    %c0_133 = arith.constant 0 : index
    %133 = vector.load %arg0[%c12, %c0_132, %c0_133] : memref<25x8x256xf32, #tpu.memory_space<vmem>>, vector<1x8x256xf32>
    %134 = vector.shape_cast %133 : vector<1x8x256xf32> to vector<8x256xf32>
    %c0_134 = arith.constant 0 : index
    %c0_135 = arith.constant 0 : index
    %135 = vector.load %arg1[%c0_134, %c0_135] : memref<256x128xf32, #tpu.memory_space<vmem>>, vector<256x128xf32>
    %cst_136 = arith.constant dense<0.000000e+00> : vector<8x128xf32>
    %136 = tpu.matmul %134, %135, %cst_136 {dimension_numbers = #tpu.dot_dimension_numbers<[1], [0], [0], [1], [0, 0, 1, 1], [], []>} : vector<8x256xf32>, vector<256x128xf32>, vector<8x128xf32> -> vector<8x128xf32>
    %c0_137 = arith.constant 0 : index
    %c0_138 = arith.constant 0 : index
    %137 = vector.load %arg2[%c0_137, %c0_138] : memref<1x128xf32, #tpu.memory_space<vmem>>, vector<1x128xf32>
    %138 = vector.broadcast %137 : vector<1x128xf32> to vector<8x128xf32>
    %139 = arith.addf %136, %138 : vector<8x128xf32>
    %c12_139 = arith.constant 12 : index
    %c0_140 = arith.constant 0 : index
    %c0_141 = arith.constant 0 : index
    %140 = vector.load %arg3[%c12_139, %c0_140, %c0_141] : memref<25x128x128xf32, #tpu.memory_space<vmem>>, vector<1x128x128xf32>
    %141 = vector.shape_cast %140 : vector<1x128x128xf32> to vector<128x128xf32>
    %cst_142 = arith.constant dense<0.000000e+00> : vector<8x128xf32>
    %142 = tpu.matmul %139, %141, %cst_142 {dimension_numbers = #tpu.dot_dimension_numbers<[1], [0], [0], [1], [0, 0, 1, 1], [], []>} : vector<8x128xf32>, vector<128x128xf32>, vector<8x128xf32> -> vector<8x128xf32>
    %143 = arith.addf %132, %142 : vector<8x128xf32>
    %c13 = arith.constant 13 : index
    %c0_143 = arith.constant 0 : index
    %c0_144 = arith.constant 0 : index
    %144 = vector.load %arg0[%c13, %c0_143, %c0_144] : memref<25x8x256xf32, #tpu.memory_space<vmem>>, vector<1x8x256xf32>
    %145 = vector.shape_cast %144 : vector<1x8x256xf32> to vector<8x256xf32>
    %c0_145 = arith.constant 0 : index
    %c0_146 = arith.constant 0 : index
    %146 = vector.load %arg1[%c0_145, %c0_146] : memref<256x128xf32, #tpu.memory_space<vmem>>, vector<256x128xf32>
    %cst_147 = arith.constant dense<0.000000e+00> : vector<8x128xf32>
    %147 = tpu.matmul %145, %146, %cst_147 {dimension_numbers = #tpu.dot_dimension_numbers<[1], [0], [0], [1], [0, 0, 1, 1], [], []>} : vector<8x256xf32>, vector<256x128xf32>, vector<8x128xf32> -> vector<8x128xf32>
    %c0_148 = arith.constant 0 : index
    %c0_149 = arith.constant 0 : index
    %148 = vector.load %arg2[%c0_148, %c0_149] : memref<1x128xf32, #tpu.memory_space<vmem>>, vector<1x128xf32>
    %149 = vector.broadcast %148 : vector<1x128xf32> to vector<8x128xf32>
    %150 = arith.addf %147, %149 : vector<8x128xf32>
    %c13_150 = arith.constant 13 : index
    %c0_151 = arith.constant 0 : index
    %c0_152 = arith.constant 0 : index
    %151 = vector.load %arg3[%c13_150, %c0_151, %c0_152] : memref<25x128x128xf32, #tpu.memory_space<vmem>>, vector<1x128x128xf32>
    %152 = vector.shape_cast %151 : vector<1x128x128xf32> to vector<128x128xf32>
    %cst_153 = arith.constant dense<0.000000e+00> : vector<8x128xf32>
    %153 = tpu.matmul %150, %152, %cst_153 {dimension_numbers = #tpu.dot_dimension_numbers<[1], [0], [0], [1], [0, 0, 1, 1], [], []>} : vector<8x128xf32>, vector<128x128xf32>, vector<8x128xf32> -> vector<8x128xf32>
    %154 = arith.addf %143, %153 : vector<8x128xf32>
    %c14 = arith.constant 14 : index
    %c0_154 = arith.constant 0 : index
    %c0_155 = arith.constant 0 : index
    %155 = vector.load %arg0[%c14, %c0_154, %c0_155] : memref<25x8x256xf32, #tpu.memory_space<vmem>>, vector<1x8x256xf32>
    %156 = vector.shape_cast %155 : vector<1x8x256xf32> to vector<8x256xf32>
    %c0_156 = arith.constant 0 : index
    %c0_157 = arith.constant 0 : index
    %157 = vector.load %arg1[%c0_156, %c0_157] : memref<256x128xf32, #tpu.memory_space<vmem>>, vector<256x128xf32>
    %cst_158 = arith.constant dense<0.000000e+00> : vector<8x128xf32>
    %158 = tpu.matmul %156, %157, %cst_158 {dimension_numbers = #tpu.dot_dimension_numbers<[1], [0], [0], [1], [0, 0, 1, 1], [], []>} : vector<8x256xf32>, vector<256x128xf32>, vector<8x128xf32> -> vector<8x128xf32>
    %c0_159 = arith.constant 0 : index
    %c0_160 = arith.constant 0 : index
    %159 = vector.load %arg2[%c0_159, %c0_160] : memref<1x128xf32, #tpu.memory_space<vmem>>, vector<1x128xf32>
    %160 = vector.broadcast %159 : vector<1x128xf32> to vector<8x128xf32>
    %161 = arith.addf %158, %160 : vector<8x128xf32>
    %c14_161 = arith.constant 14 : index
    %c0_162 = arith.constant 0 : index
    %c0_163 = arith.constant 0 : index
    %162 = vector.load %arg3[%c14_161, %c0_162, %c0_163] : memref<25x128x128xf32, #tpu.memory_space<vmem>>, vector<1x128x128xf32>
    %163 = vector.shape_cast %162 : vector<1x128x128xf32> to vector<128x128xf32>
    %cst_164 = arith.constant dense<0.000000e+00> : vector<8x128xf32>
    %164 = tpu.matmul %161, %163, %cst_164 {dimension_numbers = #tpu.dot_dimension_numbers<[1], [0], [0], [1], [0, 0, 1, 1], [], []>} : vector<8x128xf32>, vector<128x128xf32>, vector<8x128xf32> -> vector<8x128xf32>
    %165 = arith.addf %154, %164 : vector<8x128xf32>
    %c15 = arith.constant 15 : index
    %c0_165 = arith.constant 0 : index
    %c0_166 = arith.constant 0 : index
    %166 = vector.load %arg0[%c15, %c0_165, %c0_166] : memref<25x8x256xf32, #tpu.memory_space<vmem>>, vector<1x8x256xf32>
    %167 = vector.shape_cast %166 : vector<1x8x256xf32> to vector<8x256xf32>
    %c0_167 = arith.constant 0 : index
    %c0_168 = arith.constant 0 : index
    %168 = vector.load %arg1[%c0_167, %c0_168] : memref<256x128xf32, #tpu.memory_space<vmem>>, vector<256x128xf32>
    %cst_169 = arith.constant dense<0.000000e+00> : vector<8x128xf32>
    %169 = tpu.matmul %167, %168, %cst_169 {dimension_numbers = #tpu.dot_dimension_numbers<[1], [0], [0], [1], [0, 0, 1, 1], [], []>} : vector<8x256xf32>, vector<256x128xf32>, vector<8x128xf32> -> vector<8x128xf32>
    %c0_170 = arith.constant 0 : index
    %c0_171 = arith.constant 0 : index
    %170 = vector.load %arg2[%c0_170, %c0_171] : memref<1x128xf32, #tpu.memory_space<vmem>>, vector<1x128xf32>
    %171 = vector.broadcast %170 : vector<1x128xf32> to vector<8x128xf32>
    %172 = arith.addf %169, %171 : vector<8x128xf32>
    %c15_172 = arith.constant 15 : index
    %c0_173 = arith.constant 0 : index
    %c0_174 = arith.constant 0 : index
    %173 = vector.load %arg3[%c15_172, %c0_173, %c0_174] : memref<25x128x128xf32, #tpu.memory_space<vmem>>, vector<1x128x128xf32>
    %174 = vector.shape_cast %173 : vector<1x128x128xf32> to vector<128x128xf32>
    %cst_175 = arith.constant dense<0.000000e+00> : vector<8x128xf32>
    %175 = tpu.matmul %172, %174, %cst_175 {dimension_numbers = #tpu.dot_dimension_numbers<[1], [0], [0], [1], [0, 0, 1, 1], [], []>} : vector<8x128xf32>, vector<128x128xf32>, vector<8x128xf32> -> vector<8x128xf32>
    %176 = arith.addf %165, %175 : vector<8x128xf32>
    %c16 = arith.constant 16 : index
    %c0_176 = arith.constant 0 : index
    %c0_177 = arith.constant 0 : index
    %177 = vector.load %arg0[%c16, %c0_176, %c0_177] : memref<25x8x256xf32, #tpu.memory_space<vmem>>, vector<1x8x256xf32>
    %178 = vector.shape_cast %177 : vector<1x8x256xf32> to vector<8x256xf32>
    %c0_178 = arith.constant 0 : index
    %c0_179 = arith.constant 0 : index
    %179 = vector.load %arg1[%c0_178, %c0_179] : memref<256x128xf32, #tpu.memory_space<vmem>>, vector<256x128xf32>
    %cst_180 = arith.constant dense<0.000000e+00> : vector<8x128xf32>
    %180 = tpu.matmul %178, %179, %cst_180 {dimension_numbers = #tpu.dot_dimension_numbers<[1], [0], [0], [1], [0, 0, 1, 1], [], []>} : vector<8x256xf32>, vector<256x128xf32>, vector<8x128xf32> -> vector<8x128xf32>
    %c0_181 = arith.constant 0 : index
    %c0_182 = arith.constant 0 : index
    %181 = vector.load %arg2[%c0_181, %c0_182] : memref<1x128xf32, #tpu.memory_space<vmem>>, vector<1x128xf32>
    %182 = vector.broadcast %181 : vector<1x128xf32> to vector<8x128xf32>
    %183 = arith.addf %180, %182 : vector<8x128xf32>
    %c16_183 = arith.constant 16 : index
    %c0_184 = arith.constant 0 : index
    %c0_185 = arith.constant 0 : index
    %184 = vector.load %arg3[%c16_183, %c0_184, %c0_185] : memref<25x128x128xf32, #tpu.memory_space<vmem>>, vector<1x128x128xf32>
    %185 = vector.shape_cast %184 : vector<1x128x128xf32> to vector<128x128xf32>
    %cst_186 = arith.constant dense<0.000000e+00> : vector<8x128xf32>
    %186 = tpu.matmul %183, %185, %cst_186 {dimension_numbers = #tpu.dot_dimension_numbers<[1], [0], [0], [1], [0, 0, 1, 1], [], []>} : vector<8x128xf32>, vector<128x128xf32>, vector<8x128xf32> -> vector<8x128xf32>
    %187 = arith.addf %176, %186 : vector<8x128xf32>
    %c17 = arith.constant 17 : index
    %c0_187 = arith.constant 0 : index
    %c0_188 = arith.constant 0 : index
    %188 = vector.load %arg0[%c17, %c0_187, %c0_188] : memref<25x8x256xf32, #tpu.memory_space<vmem>>, vector<1x8x256xf32>
    %189 = vector.shape_cast %188 : vector<1x8x256xf32> to vector<8x256xf32>
    %c0_189 = arith.constant 0 : index
    %c0_190 = arith.constant 0 : index
    %190 = vector.load %arg1[%c0_189, %c0_190] : memref<256x128xf32, #tpu.memory_space<vmem>>, vector<256x128xf32>
    %cst_191 = arith.constant dense<0.000000e+00> : vector<8x128xf32>
    %191 = tpu.matmul %189, %190, %cst_191 {dimension_numbers = #tpu.dot_dimension_numbers<[1], [0], [0], [1], [0, 0, 1, 1], [], []>} : vector<8x256xf32>, vector<256x128xf32>, vector<8x128xf32> -> vector<8x128xf32>
    %c0_192 = arith.constant 0 : index
    %c0_193 = arith.constant 0 : index
    %192 = vector.load %arg2[%c0_192, %c0_193] : memref<1x128xf32, #tpu.memory_space<vmem>>, vector<1x128xf32>
    %193 = vector.broadcast %192 : vector<1x128xf32> to vector<8x128xf32>
    %194 = arith.addf %191, %193 : vector<8x128xf32>
    %c17_194 = arith.constant 17 : index
    %c0_195 = arith.constant 0 : index
    %c0_196 = arith.constant 0 : index
    %195 = vector.load %arg3[%c17_194, %c0_195, %c0_196] : memref<25x128x128xf32, #tpu.memory_space<vmem>>, vector<1x128x128xf32>
    %196 = vector.shape_cast %195 : vector<1x128x128xf32> to vector<128x128xf32>
    %cst_197 = arith.constant dense<0.000000e+00> : vector<8x128xf32>
    %197 = tpu.matmul %194, %196, %cst_197 {dimension_numbers = #tpu.dot_dimension_numbers<[1], [0], [0], [1], [0, 0, 1, 1], [], []>} : vector<8x128xf32>, vector<128x128xf32>, vector<8x128xf32> -> vector<8x128xf32>
    %198 = arith.addf %187, %197 : vector<8x128xf32>
    %c18 = arith.constant 18 : index
    %c0_198 = arith.constant 0 : index
    %c0_199 = arith.constant 0 : index
    %199 = vector.load %arg0[%c18, %c0_198, %c0_199] : memref<25x8x256xf32, #tpu.memory_space<vmem>>, vector<1x8x256xf32>
    %200 = vector.shape_cast %199 : vector<1x8x256xf32> to vector<8x256xf32>
    %c0_200 = arith.constant 0 : index
    %c0_201 = arith.constant 0 : index
    %201 = vector.load %arg1[%c0_200, %c0_201] : memref<256x128xf32, #tpu.memory_space<vmem>>, vector<256x128xf32>
    %cst_202 = arith.constant dense<0.000000e+00> : vector<8x128xf32>
    %202 = tpu.matmul %200, %201, %cst_202 {dimension_numbers = #tpu.dot_dimension_numbers<[1], [0], [0], [1], [0, 0, 1, 1], [], []>} : vector<8x256xf32>, vector<256x128xf32>, vector<8x128xf32> -> vector<8x128xf32>
    %c0_203 = arith.constant 0 : index
    %c0_204 = arith.constant 0 : index
    %203 = vector.load %arg2[%c0_203, %c0_204] : memref<1x128xf32, #tpu.memory_space<vmem>>, vector<1x128xf32>
    %204 = vector.broadcast %203 : vector<1x128xf32> to vector<8x128xf32>
    %205 = arith.addf %202, %204 : vector<8x128xf32>
    %c18_205 = arith.constant 18 : index
    %c0_206 = arith.constant 0 : index
    %c0_207 = arith.constant 0 : index
    %206 = vector.load %arg3[%c18_205, %c0_206, %c0_207] : memref<25x128x128xf32, #tpu.memory_space<vmem>>, vector<1x128x128xf32>
    %207 = vector.shape_cast %206 : vector<1x128x128xf32> to vector<128x128xf32>
    %cst_208 = arith.constant dense<0.000000e+00> : vector<8x128xf32>
    %208 = tpu.matmul %205, %207, %cst_208 {dimension_numbers = #tpu.dot_dimension_numbers<[1], [0], [0], [1], [0, 0, 1, 1], [], []>} : vector<8x128xf32>, vector<128x128xf32>, vector<8x128xf32> -> vector<8x128xf32>
    %209 = arith.addf %198, %208 : vector<8x128xf32>
    %c19 = arith.constant 19 : index
    %c0_209 = arith.constant 0 : index
    %c0_210 = arith.constant 0 : index
    %210 = vector.load %arg0[%c19, %c0_209, %c0_210] : memref<25x8x256xf32, #tpu.memory_space<vmem>>, vector<1x8x256xf32>
    %211 = vector.shape_cast %210 : vector<1x8x256xf32> to vector<8x256xf32>
    %c0_211 = arith.constant 0 : index
    %c0_212 = arith.constant 0 : index
    %212 = vector.load %arg1[%c0_211, %c0_212] : memref<256x128xf32, #tpu.memory_space<vmem>>, vector<256x128xf32>
    %cst_213 = arith.constant dense<0.000000e+00> : vector<8x128xf32>
    %213 = tpu.matmul %211, %212, %cst_213 {dimension_numbers = #tpu.dot_dimension_numbers<[1], [0], [0], [1], [0, 0, 1, 1], [], []>} : vector<8x256xf32>, vector<256x128xf32>, vector<8x128xf32> -> vector<8x128xf32>
    %c0_214 = arith.constant 0 : index
    %c0_215 = arith.constant 0 : index
    %214 = vector.load %arg2[%c0_214, %c0_215] : memref<1x128xf32, #tpu.memory_space<vmem>>, vector<1x128xf32>
    %215 = vector.broadcast %214 : vector<1x128xf32> to vector<8x128xf32>
    %216 = arith.addf %213, %215 : vector<8x128xf32>
    %c19_216 = arith.constant 19 : index
    %c0_217 = arith.constant 0 : index
    %c0_218 = arith.constant 0 : index
    %217 = vector.load %arg3[%c19_216, %c0_217, %c0_218] : memref<25x128x128xf32, #tpu.memory_space<vmem>>, vector<1x128x128xf32>
    %218 = vector.shape_cast %217 : vector<1x128x128xf32> to vector<128x128xf32>
    %cst_219 = arith.constant dense<0.000000e+00> : vector<8x128xf32>
    %219 = tpu.matmul %216, %218, %cst_219 {dimension_numbers = #tpu.dot_dimension_numbers<[1], [0], [0], [1], [0, 0, 1, 1], [], []>} : vector<8x128xf32>, vector<128x128xf32>, vector<8x128xf32> -> vector<8x128xf32>
    %220 = arith.addf %209, %219 : vector<8x128xf32>
    %c20 = arith.constant 20 : index
    %c0_220 = arith.constant 0 : index
    %c0_221 = arith.constant 0 : index
    %221 = vector.load %arg0[%c20, %c0_220, %c0_221] : memref<25x8x256xf32, #tpu.memory_space<vmem>>, vector<1x8x256xf32>
    %222 = vector.shape_cast %221 : vector<1x8x256xf32> to vector<8x256xf32>
    %c0_222 = arith.constant 0 : index
    %c0_223 = arith.constant 0 : index
    %223 = vector.load %arg1[%c0_222, %c0_223] : memref<256x128xf32, #tpu.memory_space<vmem>>, vector<256x128xf32>
    %cst_224 = arith.constant dense<0.000000e+00> : vector<8x128xf32>
    %224 = tpu.matmul %222, %223, %cst_224 {dimension_numbers = #tpu.dot_dimension_numbers<[1], [0], [0], [1], [0, 0, 1, 1], [], []>} : vector<8x256xf32>, vector<256x128xf32>, vector<8x128xf32> -> vector<8x128xf32>
    %c0_225 = arith.constant 0 : index
    %c0_226 = arith.constant 0 : index
    %225 = vector.load %arg2[%c0_225, %c0_226] : memref<1x128xf32, #tpu.memory_space<vmem>>, vector<1x128xf32>
    %226 = vector.broadcast %225 : vector<1x128xf32> to vector<8x128xf32>
    %227 = arith.addf %224, %226 : vector<8x128xf32>
    %c20_227 = arith.constant 20 : index
    %c0_228 = arith.constant 0 : index
    %c0_229 = arith.constant 0 : index
    %228 = vector.load %arg3[%c20_227, %c0_228, %c0_229] : memref<25x128x128xf32, #tpu.memory_space<vmem>>, vector<1x128x128xf32>
    %229 = vector.shape_cast %228 : vector<1x128x128xf32> to vector<128x128xf32>
    %cst_230 = arith.constant dense<0.000000e+00> : vector<8x128xf32>
    %230 = tpu.matmul %227, %229, %cst_230 {dimension_numbers = #tpu.dot_dimension_numbers<[1], [0], [0], [1], [0, 0, 1, 1], [], []>} : vector<8x128xf32>, vector<128x128xf32>, vector<8x128xf32> -> vector<8x128xf32>
    %231 = arith.addf %220, %230 : vector<8x128xf32>
    %c21 = arith.constant 21 : index
    %c0_231 = arith.constant 0 : index
    %c0_232 = arith.constant 0 : index
    %232 = vector.load %arg0[%c21, %c0_231, %c0_232] : memref<25x8x256xf32, #tpu.memory_space<vmem>>, vector<1x8x256xf32>
    %233 = vector.shape_cast %232 : vector<1x8x256xf32> to vector<8x256xf32>
    %c0_233 = arith.constant 0 : index
    %c0_234 = arith.constant 0 : index
    %234 = vector.load %arg1[%c0_233, %c0_234] : memref<256x128xf32, #tpu.memory_space<vmem>>, vector<256x128xf32>
    %cst_235 = arith.constant dense<0.000000e+00> : vector<8x128xf32>
    %235 = tpu.matmul %233, %234, %cst_235 {dimension_numbers = #tpu.dot_dimension_numbers<[1], [0], [0], [1], [0, 0, 1, 1], [], []>} : vector<8x256xf32>, vector<256x128xf32>, vector<8x128xf32> -> vector<8x128xf32>
    %c0_236 = arith.constant 0 : index
    %c0_237 = arith.constant 0 : index
    %236 = vector.load %arg2[%c0_236, %c0_237] : memref<1x128xf32, #tpu.memory_space<vmem>>, vector<1x128xf32>
    %237 = vector.broadcast %236 : vector<1x128xf32> to vector<8x128xf32>
    %238 = arith.addf %235, %237 : vector<8x128xf32>
    %c21_238 = arith.constant 21 : index
    %c0_239 = arith.constant 0 : index
    %c0_240 = arith.constant 0 : index
    %239 = vector.load %arg3[%c21_238, %c0_239, %c0_240] : memref<25x128x128xf32, #tpu.memory_space<vmem>>, vector<1x128x128xf32>
    %240 = vector.shape_cast %239 : vector<1x128x128xf32> to vector<128x128xf32>
    %cst_241 = arith.constant dense<0.000000e+00> : vector<8x128xf32>
    %241 = tpu.matmul %238, %240, %cst_241 {dimension_numbers = #tpu.dot_dimension_numbers<[1], [0], [0], [1], [0, 0, 1, 1], [], []>} : vector<8x128xf32>, vector<128x128xf32>, vector<8x128xf32> -> vector<8x128xf32>
    %242 = arith.addf %231, %241 : vector<8x128xf32>
    %c22 = arith.constant 22 : index
    %c0_242 = arith.constant 0 : index
    %c0_243 = arith.constant 0 : index
    %243 = vector.load %arg0[%c22, %c0_242, %c0_243] : memref<25x8x256xf32, #tpu.memory_space<vmem>>, vector<1x8x256xf32>
    %244 = vector.shape_cast %243 : vector<1x8x256xf32> to vector<8x256xf32>
    %c0_244 = arith.constant 0 : index
    %c0_245 = arith.constant 0 : index
    %245 = vector.load %arg1[%c0_244, %c0_245] : memref<256x128xf32, #tpu.memory_space<vmem>>, vector<256x128xf32>
    %cst_246 = arith.constant dense<0.000000e+00> : vector<8x128xf32>
    %246 = tpu.matmul %244, %245, %cst_246 {dimension_numbers = #tpu.dot_dimension_numbers<[1], [0], [0], [1], [0, 0, 1, 1], [], []>} : vector<8x256xf32>, vector<256x128xf32>, vector<8x128xf32> -> vector<8x128xf32>
    %c0_247 = arith.constant 0 : index
    %c0_248 = arith.constant 0 : index
    %247 = vector.load %arg2[%c0_247, %c0_248] : memref<1x128xf32, #tpu.memory_space<vmem>>, vector<1x128xf32>
    %248 = vector.broadcast %247 : vector<1x128xf32> to vector<8x128xf32>
    %249 = arith.addf %246, %248 : vector<8x128xf32>
    %c22_249 = arith.constant 22 : index
    %c0_250 = arith.constant 0 : index
    %c0_251 = arith.constant 0 : index
    %250 = vector.load %arg3[%c22_249, %c0_250, %c0_251] : memref<25x128x128xf32, #tpu.memory_space<vmem>>, vector<1x128x128xf32>
    %251 = vector.shape_cast %250 : vector<1x128x128xf32> to vector<128x128xf32>
    %cst_252 = arith.constant dense<0.000000e+00> : vector<8x128xf32>
    %252 = tpu.matmul %249, %251, %cst_252 {dimension_numbers = #tpu.dot_dimension_numbers<[1], [0], [0], [1], [0, 0, 1, 1], [], []>} : vector<8x128xf32>, vector<128x128xf32>, vector<8x128xf32> -> vector<8x128xf32>
    %253 = arith.addf %242, %252 : vector<8x128xf32>
    %c23 = arith.constant 23 : index
    %c0_253 = arith.constant 0 : index
    %c0_254 = arith.constant 0 : index
    %254 = vector.load %arg0[%c23, %c0_253, %c0_254] : memref<25x8x256xf32, #tpu.memory_space<vmem>>, vector<1x8x256xf32>
    %255 = vector.shape_cast %254 : vector<1x8x256xf32> to vector<8x256xf32>
    %c0_255 = arith.constant 0 : index
    %c0_256 = arith.constant 0 : index
    %256 = vector.load %arg1[%c0_255, %c0_256] : memref<256x128xf32, #tpu.memory_space<vmem>>, vector<256x128xf32>
    %cst_257 = arith.constant dense<0.000000e+00> : vector<8x128xf32>
    %257 = tpu.matmul %255, %256, %cst_257 {dimension_numbers = #tpu.dot_dimension_numbers<[1], [0], [0], [1], [0, 0, 1, 1], [], []>} : vector<8x256xf32>, vector<256x128xf32>, vector<8x128xf32> -> vector<8x128xf32>
    %c0_258 = arith.constant 0 : index
    %c0_259 = arith.constant 0 : index
    %258 = vector.load %arg2[%c0_258, %c0_259] : memref<1x128xf32, #tpu.memory_space<vmem>>, vector<1x128xf32>
    %259 = vector.broadcast %258 : vector<1x128xf32> to vector<8x128xf32>
    %260 = arith.addf %257, %259 : vector<8x128xf32>
    %c23_260 = arith.constant 23 : index
    %c0_261 = arith.constant 0 : index
    %c0_262 = arith.constant 0 : index
    %261 = vector.load %arg3[%c23_260, %c0_261, %c0_262] : memref<25x128x128xf32, #tpu.memory_space<vmem>>, vector<1x128x128xf32>
    %262 = vector.shape_cast %261 : vector<1x128x128xf32> to vector<128x128xf32>
    %cst_263 = arith.constant dense<0.000000e+00> : vector<8x128xf32>
    %263 = tpu.matmul %260, %262, %cst_263 {dimension_numbers = #tpu.dot_dimension_numbers<[1], [0], [0], [1], [0, 0, 1, 1], [], []>} : vector<8x128xf32>, vector<128x128xf32>, vector<8x128xf32> -> vector<8x128xf32>
    %264 = arith.addf %253, %263 : vector<8x128xf32>
    %c24 = arith.constant 24 : index
    %c0_264 = arith.constant 0 : index
    %c0_265 = arith.constant 0 : index
    %265 = vector.load %arg0[%c24, %c0_264, %c0_265] : memref<25x8x256xf32, #tpu.memory_space<vmem>>, vector<1x8x256xf32>
    %266 = vector.shape_cast %265 : vector<1x8x256xf32> to vector<8x256xf32>
    %c0_266 = arith.constant 0 : index
    %c0_267 = arith.constant 0 : index
    %267 = vector.load %arg1[%c0_266, %c0_267] : memref<256x128xf32, #tpu.memory_space<vmem>>, vector<256x128xf32>
    %cst_268 = arith.constant dense<0.000000e+00> : vector<8x128xf32>
    %268 = tpu.matmul %266, %267, %cst_268 {dimension_numbers = #tpu.dot_dimension_numbers<[1], [0], [0], [1], [0, 0, 1, 1], [], []>} : vector<8x256xf32>, vector<256x128xf32>, vector<8x128xf32> -> vector<8x128xf32>
    %c0_269 = arith.constant 0 : index
    %c0_270 = arith.constant 0 : index
    %269 = vector.load %arg2[%c0_269, %c0_270] : memref<1x128xf32, #tpu.memory_space<vmem>>, vector<1x128xf32>
    %270 = vector.broadcast %269 : vector<1x128xf32> to vector<8x128xf32>
    %271 = arith.addf %268, %270 : vector<8x128xf32>
    %c24_271 = arith.constant 24 : index
    %c0_272 = arith.constant 0 : index
    %c0_273 = arith.constant 0 : index
    %272 = vector.load %arg3[%c24_271, %c0_272, %c0_273] : memref<25x128x128xf32, #tpu.memory_space<vmem>>, vector<1x128x128xf32>
    %273 = vector.shape_cast %272 : vector<1x128x128xf32> to vector<128x128xf32>
    %cst_274 = arith.constant dense<0.000000e+00> : vector<8x128xf32>
    %274 = tpu.matmul %271, %273, %cst_274 {dimension_numbers = #tpu.dot_dimension_numbers<[1], [0], [0], [1], [0, 0, 1, 1], [], []>} : vector<8x128xf32>, vector<128x128xf32>, vector<8x128xf32> -> vector<8x128xf32>
    %275 = arith.addf %264, %274 : vector<8x128xf32>
    %c0_275 = arith.constant 0 : index
    %c0_276 = arith.constant 0 : index
    %276 = vector.load %arg4[%c0_275, %c0_276] : memref<1x128xf32, #tpu.memory_space<vmem>>, vector<1x128xf32>
    %277 = vector.broadcast %276 : vector<1x128xf32> to vector<8x128xf32>
    %278 = arith.addf %275, %277 : vector<8x128xf32>
    %cst_277 = arith.constant 0.000000e+00 : f32
    %279 = vector.broadcast %cst_277 : f32 to vector<8x128xf32>
    %280 = arith.maximumf %278, %279 : vector<8x128xf32>
    %c0_278 = arith.constant 0 : index
    %c0_279 = arith.constant 0 : index
    %281 = vector.load %arg5[%c0_278, %c0_279] : memref<128x128xf32, #tpu.memory_space<vmem>>, vector<128x128xf32>
    %cst_280 = arith.constant dense<0.000000e+00> : vector<8x128xf32>
    %282 = tpu.matmul %280, %281, %cst_280 {dimension_numbers = #tpu.dot_dimension_numbers<[1], [0], [0], [1], [0, 0, 1, 1], [], []>} : vector<8x128xf32>, vector<128x128xf32>, vector<8x128xf32> -> vector<8x128xf32>
    %c0_281 = arith.constant 0 : index
    %c0_282 = arith.constant 0 : index
    %283 = vector.load %arg6[%c0_281, %c0_282] : memref<1x128xf32, #tpu.memory_space<vmem>>, vector<1x128xf32>
    %284 = vector.broadcast %283 : vector<1x128xf32> to vector<8x128xf32>
    %285 = arith.addf %282, %284 : vector<8x128xf32>
    %cst_283 = arith.constant 0.000000e+00 : f32
    %286 = vector.broadcast %cst_283 : f32 to vector<8x128xf32>
    %287 = arith.maximumf %285, %286 : vector<8x128xf32>
    %c0_284 = arith.constant 0 : index
    %c0_285 = arith.constant 0 : index
    %288 = vector.load %arg7[%c0_284, %c0_285] : memref<128x128xf32, #tpu.memory_space<vmem>>, vector<128x128xf32>
    %cst_286 = arith.constant dense<0.000000e+00> : vector<8x128xf32>
    %289 = tpu.matmul %287, %288, %cst_286 {dimension_numbers = #tpu.dot_dimension_numbers<[1], [0], [0], [1], [0, 0, 1, 1], [], []>} : vector<8x128xf32>, vector<128x128xf32>, vector<8x128xf32> -> vector<8x128xf32>
    %c0_287 = arith.constant 0 : index
    %c0_288 = arith.constant 0 : index
    %290 = vector.load %arg8[%c0_287, %c0_288] : memref<1x128xf32, #tpu.memory_space<vmem>>, vector<1x128xf32>
    %291 = vector.broadcast %290 : vector<1x128xf32> to vector<8x128xf32>
    %292 = arith.addf %289, %291 : vector<8x128xf32>
    %293 = vector.extract_strided_slice %292 {offsets = [0, 0], sizes = [2, 10], strides = [1, 1]} : vector<8x128xf32> to vector<2x10xf32>
    %c0_289 = arith.constant 0 : index
    %c0_290 = arith.constant 0 : index
    %294 = vector.load %arg9[%c0_289, %c0_290] : memref<2x10xf32, #tpu.memory_space<vmem>>, vector<2x10xf32>
    tpu.vector_store %arg9[%c0_289, %c0_290], %293 {strides = array<i32>} : memref<2x10xf32, #tpu.memory_space<vmem>>, vector<2x10xf32>,
    return
  }
}

</mosaic_0001>

<llo_original>
// kernel: lenet5_forward.2
$region0: #{lenet5_forward.2}
  #allocation0 [shape = 'u32[]', space=smem, size = 0x4, offset = 0x4, fixed_abs, tag = 'smem constant byte address 0x4 - core index']
  #allocation1 [shape = 'u32[144,128]{1,0:T(1,128)}', space=vmem, size = 0x12000, scoped, tag = 'internal scratch']
  %s0 = inlined_call_operand.vmem [shape: f32[392,128], index: 0, kind: input, shape index: {}]
  %s1 = inlined_call_operand.vmem [shape: f32[128,128], index: 1, kind: input, shape index: {}]
  %s2 = inlined_call_operand.vmem [shape: f32[1,128], index: 2, kind: input, shape index: {}]
  %s3 = inlined_call_operand.vmem [shape: f32[392,128], index: 3, kind: output, shape index: {}]
  %s4 = sld [smem:[#allocation0]]
  $region22: #{lenet5_forward.2} parent=0
    _
  %s6 = ssub.s32 1, %s4
  %s7 = scalar_select 0, %s6, %s4
  // Predicated region
  $region2: #{lenet5_forward.2} parent=0 // pred_check
    _
  $region3: #{lenet5_forward.2} parent=0 // pred_check_branch
    %9 = sbr.rel (0) target = $region5
  $region4: #{lenet5_forward.2} parent=0 // pred_region
    _
  $region5: #{lenet5_forward.2} parent=0 // pred_fallthru
    _
  // Predicated region
  $region6: #{lenet5_forward.2} parent=0 // pred_check
    _
  $region7: #{lenet5_forward.2} parent=0 // pred_check_branch
    %11 = sbr.rel (0) target = $region9
  $region8: #{lenet5_forward.2} parent=0 // pred_region
    _
  $region9: #{lenet5_forward.2} parent=0 // pred_fallthru
    _
  // Predicated region
  $region10: #{lenet5_forward.2} parent=0 // pred_check
    _
  $region11: #{lenet5_forward.2} parent=0 // pred_check_branch
    %13 = sbr.rel (0) target = $region13
  $region12: #{lenet5_forward.2} parent=0 // pred_region
    _
  $region13: #{lenet5_forward.2} parent=0 // pred_fallthru
    _
  %v14 = vld [vmem:[%s0] sm:$0xff]
  %v15 = vld [vmem:[%s0 + $0x8] sm:$0xff]
  %v16 = vld [vmem:[%s0 + $0x10] sm:$0xff]
  %v17 = vld [vmem:[%s0 + $0x18] sm:$0xff]
  %v18 = vld [vmem:[%s0 + $0x20] sm:$0xff]
  %v19 = vld [vmem:[%s0 + $0x28] sm:$0xff]
  %v20 = vld [vmem:[%s0 + $0x30] sm:$0xff]
  %v21 = vld [vmem:[%s0 + $0x38] sm:$0xff]
  %v22 = vld [vmem:[%s0 + $0x40] sm:$0xff]
  %v23 = vld [vmem:[%s0 + $0x48] sm:$0xff]
  %v24 = vld [vmem:[%s0 + $0x50] sm:$0xff]
  %v25 = vld [vmem:[%s0 + $0x58] sm:$0xff]
  %v26 = vld [vmem:[%s0 + $0x60] sm:$0xff]
  %v27 = vld [vmem:[%s0 + $0x68] sm:$0xff]
  %v28 = vld [vmem:[%s0 + $0x70] sm:$0xff]
  %v29 = vld [vmem:[%s0 + $0x78] sm:$0xff]
  %v30 = vld [vmem:[%s0 + $0x80] sm:$0xff]
  %v31 = vld [vmem:[%s0 + $0x88] sm:$0xff]
  %v32 = vld [vmem:[%s0 + $0x90] sm:$0xff]
  %v33 = vld [vmem:[%s0 + $0x98] sm:$0xff]
  %v34 = vld [vmem:[%s0 + $0xa0] sm:$0xff]
  %v35 = vld [vmem:[%s0 + $0xa8] sm:$0xff]
  %v36 = vld [vmem:[%s0 + $0xb0] sm:$0xff]
  %v37 = vld [vmem:[%s0 + $0xb8] sm:$0xff]
  %v38 = vld [vmem:[%s0 + $0xc0] sm:$0xff]
  %v39 = vld [vmem:[%s0 + $0xc8] sm:$0xff]
  %v40 = vld [vmem:[%s0 + $0xd0] sm:$0xff]
  %v41 = vld [vmem:[%s0 + $0xd8] sm:$0xff]
  %v42 = vld [vmem:[%s0 + $0xe0] sm:$0xff]
  %v43 = vld [vmem:[%s0 + $0xe8] sm:$0xff]
  %v44 = vld [vmem:[%s0 + $0xf0] sm:$0xff]
  %v45 = vld [vmem:[%s0 + $0xf8] sm:$0xff]
  %v46 = vld [vmem:[%s0 + $0x100] sm:$0xff]
  %v47 = vld [vmem:[%s0 + $0x108] sm:$0xff]
  %v48 = vld [vmem:[%s0 + $0x110] sm:$0xff]
  %v49 = vld [vmem:[%s0 + $0x118] sm:$0xff]
  %v50 = vld [vmem:[%s0 + $0x120] sm:$0xff]
  %v51 = vld [vmem:[%s0 + $0x128] sm:$0xff]
  %v52 = vld [vmem:[%s0 + $0x130] sm:$0xff]
  %v53 = vld [vmem:[%s0 + $0x138] sm:$0xff]
  %v54 = vld [vmem:[%s0 + $0x140] sm:$0xff]
  %v55 = vld [vmem:[%s0 + $0x148] sm:$0xff]
  %v56 = vld [vmem:[%s0 + $0x150] sm:$0xff]
  %v57 = vld [vmem:[%s0 + $0x158] sm:$0xff]
  %v58 = vld [vmem:[%s0 + $0x160] sm:$0xff]
  %v59 = vld [vmem:[%s0 + $0x168] sm:$0xff]
  %v60 = vld [vmem:[%s0 + $0x170] sm:$0xff]
  %v61 = vld [vmem:[%s0 + $0x178] sm:$0xff]
  %v62 = vld [vmem:[%s0 + $0x180] sm:$0xff]
  %v63 = vld [vmem:[%s1] sm:$0xff]
  %v64 = vld [vmem:[%s1 + $0x8] sm:$0xff]
  %v65 = vld [vmem:[%s1 + $0x10] sm:$0xff]
  %v66 = vld [vmem:[%s1 + $0x18] sm:$0xff]
  %v67 = vld [vmem:[%s1 + $0x20] sm:$0xff]
  %v68 = vld [vmem:[%s1 + $0x28] sm:$0xff]
  %v69 = vld [vmem:[%s1 + $0x30] sm:$0xff]
  %v70 = vld [vmem:[%s1 + $0x38] sm:$0xff]
  %v71 = vld [vmem:[%s1 + $0x40] sm:$0xff]
  %v72 = vld [vmem:[%s1 + $0x48] sm:$0xff]
  %v73 = vld [vmem:[%s1 + $0x50] sm:$0xff]
  %v74 = vld [vmem:[%s1 + $0x58] sm:$0xff]
  %v75 = vld [vmem:[%s1 + $0x60] sm:$0xff]
  %v76 = vld [vmem:[%s1 + $0x68] sm:$0xff]
  %v77 = vld [vmem:[%s1 + $0x70] sm:$0xff]
  %v78 = vld [vmem:[%s1 + $0x78] sm:$0xff]
  %v79 = vld [vmem:[%s2] sm:$0x1]
  %v81 = vlaneseq
  %v82 = vshrl.u32 %v81, 7
  %v83 = vsub.s32 0, %v82
  %v84 = vrot.slane %v79, %v83
  %86 = vmatprep.subr.mxu0 0.0
  %87 = vmatpush1.msra.mxu0 %v78
  %88 = vmatprep.subr.mxu0 0.0
  %89 = vmatpush1.msra.mxu0 %v77
  %90 = vmatprep.subr.mxu0 0.0
  %91 = vmatpush1.msra.mxu0 %v76
  %92 = vmatprep.subr.mxu0 0.0
  %93 = vmatpush1.msra.mxu0 %v75
  %94 = vmatprep.subr.mxu0 0.0
  %95 = vmatpush1.msra.mxu0 %v74
  %96 = vmatprep.subr.mxu0 0.0
  %97 = vmatpush1.msra.mxu0 %v73
  %98 = vmatprep.subr.mxu0 0.0
  %99 = vmatpush1.msra.mxu0 %v72
  %100 = vmatprep.subr.mxu0 0.0
  %101 = vmatpush1.msra.mxu0 %v71
  %102 = vmatprep.subr.mxu0 0.0
  %103 = vmatpush1.msra.mxu0 %v70
  %104 = vmatprep.subr.mxu0 0.0
  %105 = vmatpush1.msra.mxu0 %v69
  %106 = vmatprep.subr.mxu0 0.0
  %107 = vmatpush1.msra.mxu0 %v68
  %108 = vmatprep.subr.mxu0 0.0
  %109 = vmatpush1.msra.mxu0 %v67
  %110 = vmatprep.subr.mxu0 0.0
  %111 = vmatpush1.msra.mxu0 %v66
  %112 = vmatprep.subr.mxu0 0.0
  %113 = vmatpush1.msra.mxu0 %v65
  %114 = vmatprep.subr.mxu0 0.0
  %115 = vmatpush1.msra.mxu0 %v64
  %116 = vmatprep.subr.mxu0 0.0
  %117 = vmatpush1.msra.mxu0 %v63
  %118 = vmatprep.subr.mxu0 0.0
  %119 = vmatpush2.msra.mxu0 0.0
  %120 = vmatprep.subr.mxu0 0.0
  %121 = vmatpush2.msra.mxu0 0.0
  %122 = vmatprep.subr.mxu0 0.0
  %123 = vmatpush2.msra.mxu0 0.0
  %124 = vmatprep.subr.mxu0 0.0
  %125 = vmatpush2.msra.mxu0 0.0
  %126 = vmatprep.subr.mxu0 0.0
  %127 = vmatpush2.msra.mxu0 0.0
  %128 = vmatprep.subr.mxu0 0.0
  %129 = vmatpush2.msra.mxu0 0.0
  %130 = vmatprep.subr.mxu0 0.0
  %131 = vmatpush2.msra.mxu0 0.0
  %132 = vmatprep.subr.mxu0 0.0
  %133 = vmatpush2.msra.mxu0 0.0
  %134 = vmatprep.subr.mxu0 0.0
  %135 = vmatpush2.msra.mxu0 0.0
  %136 = vmatprep.subr.mxu0 0.0
  %137 = vmatpush2.msra.mxu0 0.0
  %138 = vmatprep.subr.mxu0 0.0
  %139 = vmatpush2.msra.mxu0 0.0
  %140 = vmatprep.subr.mxu0 0.0
  %141 = vmatpush2.msra.mxu0 0.0
  %142 = vmatprep.subr.mxu0 0.0
  %143 = vmatpush2.msra.mxu0 0.0
  %144 = vmatprep.subr.mxu0 0.0
  %145 = vmatpush2.msra.mxu0 0.0
  %146 = vmatprep.subr.mxu0 0.0
  %147 = vmatpush2.msra.mxu0 0.0
  %148 = vmatprep.subr.mxu0 0.0
  %149 = vmatpush2.msra.mxu0 0.0
  %150 = vmatprep.mubr.f32.mxu0 0.0
  %151 = vmatmul.mubr.f32.gmra.mxu0 %v14
  %v152 = vpop.f32.mrf.mxu0
  %v153 = vadd.f32 %v84, %v152
  %v154 = vpop.f32.mrf.mxu0
  %155 = vmatprep.mubr.f32.mxu0 0.0
  %156 = vmatmul.mubr.f32.gmra.mxu0 %v15
  %v157 = vpop.f32.mrf.mxu0
  %v158 = vadd.f32 %v84, %v157
  %v159 = vpop.f32.mrf.mxu0
  %160 = vmatprep.mubr.f32.mxu0 0.0
  %161 = vmatmul.mubr.f32.gmra.mxu0 %v16
  %v162 = vpop.f32.mrf.mxu0
  %v163 = vadd.f32 %v84, %v162
  %v164 = vpop.f32.mrf.mxu0
  %165 = vmatprep.mubr.f32.mxu0 0.0
  %166 = vmatmul.mubr.f32.gmra.mxu0 %v17
  %v167 = vpop.f32.mrf.mxu0
  %v168 = vadd.f32 %v84, %v167
  %v169 = vpop.f32.mrf.mxu0
  %170 = vmatprep.mubr.f32.mxu0 0.0
  %171 = vmatmul.mubr.f32.gmra.mxu0 %v18
  %v172 = vpop.f32.mrf.mxu0
  %v173 = vadd.f32 %v84, %v172
  %v174 = vpop.f32.mrf.mxu0
  %175 = vmatprep.mubr.f32.mxu0 0.0
  %176 = vmatmul.mubr.f32.gmra.mxu0 %v19
  %v177 = vpop.f32.mrf.mxu0
  %v178 = vadd.f32 %v84, %v177
  %v179 = vpop.f32.mrf.mxu0
  %180 = vmatprep.mubr.f32.mxu0 0.0
  %181 = vmatmul.mubr.f32.gmra.mxu0 %v20
  %v182 = vpop.f32.mrf.mxu0
  %v183 = vadd.f32 %v84, %v182
  %v184 = vpop.f32.mrf.mxu0
  %185 = vmatprep.mubr.f32.mxu0 0.0
  %186 = vmatmul.mubr.f32.gmra.mxu0 %v21
  %v187 = vpop.f32.mrf.mxu0
  %v188 = vadd.f32 %v84, %v187
  %v189 = vpop.f32.mrf.mxu0
  %190 = vmatprep.mubr.f32.mxu0 0.0
  %191 = vmatmul.mubr.f32.gmra.mxu0 %v22
  %v192 = vpop.f32.mrf.mxu0
  %v193 = vadd.f32 %v84, %v192
  %v194 = vpop.f32.mrf.mxu0
  %195 = vmatprep.mubr.f32.mxu0 0.0
  %196 = vmatmul.mubr.f32.gmra.mxu0 %v23
  %v197 = vpop.f32.mrf.mxu0
  %v198 = vadd.f32 %v84, %v197
  %v199 = vpop.f32.mrf.mxu0
  %200 = vmatprep.mubr.f32.mxu0 0.0
  %201 = vmatmul.mubr.f32.gmra.mxu0 %v24
  %v202 = vpop.f32.mrf.mxu0
  %v203 = vadd.f32 %v84, %v202
  %v204 = vpop.f32.mrf.mxu0
  %205 = vmatprep.mubr.f32.mxu0 0.0
  %206 = vmatmul.mubr.f32.gmra.mxu0 %v25
  %v207 = vpop.f32.mrf.mxu0
  %v208 = vadd.f32 %v84, %v207
  %v209 = vpop.f32.mrf.mxu0
  %210 = vmatprep.mubr.f32.mxu0 0.0
  %211 = vmatmul.mubr.f32.gmra.mxu0 %v26
  %v212 = vpop.f32.mrf.mxu0
  %v213 = vadd.f32 %v84, %v212
  %v214 = vpop.f32.mrf.mxu0
  %215 = vmatprep.mubr.f32.mxu0 0.0
  %216 = vmatmul.mubr.f32.gmra.mxu0 %v27
  %v217 = vpop.f32.mrf.mxu0
  %v218 = vadd.f32 %v84, %v217
  %v219 = vpop.f32.mrf.mxu0
  %220 = vmatprep.mubr.f32.mxu0 0.0
  %221 = vmatmul.mubr.f32.gmra.mxu0 %v28
  %v222 = vpop.f32.mrf.mxu0
  %v223 = vadd.f32 %v84, %v222
  %v224 = vpop.f32.mrf.mxu0
  %225 = vmatprep.mubr.f32.mxu0 0.0
  %226 = vmatmul.mubr.f32.gmra.mxu0 %v29
  %v227 = vpop.f32.mrf.mxu0
  %v228 = vadd.f32 %v84, %v227
  %v229 = vpop.f32.mrf.mxu0
  %230 = vmatprep.mubr.f32.mxu0 0.0
  %231 = vmatmul.mubr.f32.gmra.mxu0 %v30
  %v232 = vpop.f32.mrf.mxu0
  %v233 = vadd.f32 %v84, %v232
  %v234 = vpop.f32.mrf.mxu0
  %235 = vmatprep.mubr.f32.mxu0 0.0
  %236 = vmatmul.mubr.f32.gmra.mxu0 %v31
  %v237 = vpop.f32.mrf.mxu0
  %v238 = vadd.f32 %v84, %v237
  %v239 = vpop.f32.mrf.mxu0
  %240 = vmatprep.mubr.f32.mxu0 0.0
  %241 = vmatmul.mubr.f32.gmra.mxu0 %v32
  %v242 = vpop.f32.mrf.mxu0
  %v243 = vadd.f32 %v84, %v242
  %v244 = vpop.f32.mrf.mxu0
  %245 = vmatprep.mubr.f32.mxu0 0.0
  %246 = vmatmul.mubr.f32.gmra.mxu0 %v33
  %v247 = vpop.f32.mrf.mxu0
  %v248 = vadd.f32 %v84, %v247
  %v249 = vpop.f32.mrf.mxu0
  %250 = vmatprep.mubr.f32.mxu0 0.0
  %251 = vmatmul.mubr.f32.gmra.mxu0 %v34
  %v252 = vpop.f32.mrf.mxu0
  %v253 = vadd.f32 %v84, %v252
  %v254 = vpop.f32.mrf.mxu0
  %255 = vmatprep.mubr.f32.mxu0 0.0
  %256 = vmatmul.mubr.f32.gmra.mxu0 %v35
  %v257 = vpop.f32.mrf.mxu0
  %v258 = vadd.f32 %v84, %v257
  %v259 = vpop.f32.mrf.mxu0
  %260 = vmatprep.mubr.f32.mxu0 0.0
  %261 = vmatmul.mubr.f32.gmra.mxu0 %v36
  %v262 = vpop.f32.mrf.mxu0
  %v263 = vadd.f32 %v84, %v262
  %v264 = vpop.f32.mrf.mxu0
  %265 = vmatprep.mubr.f32.mxu0 0.0
  %266 = vmatmul.mubr.f32.gmra.mxu0 %v37
  %v267 = vpop.f32.mrf.mxu0
  %v268 = vadd.f32 %v84, %v267
  %v269 = vpop.f32.mrf.mxu0
  %270 = vmatprep.mubr.f32.mxu0 0.0
  %271 = vmatmul.mubr.f32.gmra.mxu0 %v38
  %v272 = vpop.f32.mrf.mxu0
  %v273 = vadd.f32 %v84, %v272
  %v274 = vpop.f32.mrf.mxu0
  %275 = vmatprep.mubr.f32.mxu0 0.0
  %276 = vmatmul.mubr.f32.gmra.mxu0 %v39
  %v277 = vpop.f32.mrf.mxu0
  %v278 = vadd.f32 %v84, %v277
  %v279 = vpop.f32.mrf.mxu0
  %280 = vmatprep.mubr.f32.mxu0 0.0
  %281 = vmatmul.mubr.f32.gmra.mxu0 %v40
  %v282 = vpop.f32.mrf.mxu0
  %v283 = vadd.f32 %v84, %v282
  %v284 = vpop.f32.mrf.mxu0
  %285 = vmatprep.mubr.f32.mxu0 0.0
  %286 = vmatmul.mubr.f32.gmra.mxu0 %v41
  %v287 = vpop.f32.mrf.mxu0
  %v288 = vadd.f32 %v84, %v287
  %v289 = vpop.f32.mrf.mxu0
  %290 = vmatprep.mubr.f32.mxu0 0.0
  %291 = vmatmul.mubr.f32.gmra.mxu0 %v42
  %v292 = vpop.f32.mrf.mxu0
  %v293 = vadd.f32 %v84, %v292
  %v294 = vpop.f32.mrf.mxu0
  %295 = vmatprep.mubr.f32.mxu0 0.0
  %296 = vmatmul.mubr.f32.gmra.mxu0 %v43
  %v297 = vpop.f32.mrf.mxu0
  %v298 = vadd.f32 %v84, %v297
  %v299 = vpop.f32.mrf.mxu0
  %300 = vmatprep.mubr.f32.mxu0 0.0
  %301 = vmatmul.mubr.f32.gmra.mxu0 %v44
  %v302 = vpop.f32.mrf.mxu0
  %v303 = vadd.f32 %v84, %v302
  %v304 = vpop.f32.mrf.mxu0
  %305 = vmatprep.mubr.f32.mxu0 0.0
  %306 = vmatmul.mubr.f32.gmra.mxu0 %v45
  %v307 = vpop.f32.mrf.mxu0
  %v308 = vadd.f32 %v84, %v307
  %v309 = vpop.f32.mrf.mxu0
  %310 = vmatprep.mubr.f32.mxu0 0.0
  %311 = vmatmul.mubr.f32.gmra.mxu0 %v46
  %v312 = vpop.f32.mrf.mxu0
  %v313 = vadd.f32 %v84, %v312
  %v314 = vpop.f32.mrf.mxu0
  %315 = vmatprep.mubr.f32.mxu0 0.0
  %316 = vmatmul.mubr.f32.gmra.mxu0 %v47
  %v317 = vpop.f32.mrf.mxu0
  %v318 = vadd.f32 %v84, %v317
  %v319 = vpop.f32.mrf.mxu0
  %320 = vmatprep.mubr.f32.mxu0 0.0
  %321 = vmatmul.mubr.f32.gmra.mxu0 %v48
  %v322 = vpop.f32.mrf.mxu0
  %v323 = vadd.f32 %v84, %v322
  %v324 = vpop.f32.mrf.mxu0
  %325 = vmatprep.mubr.f32.mxu0 0.0
  %326 = vmatmul.mubr.f32.gmra.mxu0 %v49
  %v327 = vpop.f32.mrf.mxu0
  %v328 = vadd.f32 %v84, %v327
  %v329 = vpop.f32.mrf.mxu0
  %330 = vmatprep.mubr.f32.mxu0 0.0
  %331 = vmatmul.mubr.f32.gmra.mxu0 %v50
  %v332 = vpop.f32.mrf.mxu0
  %v333 = vadd.f32 %v84, %v332
  %v334 = vpop.f32.mrf.mxu0
  %335 = vmatprep.mubr.f32.mxu0 0.0
  %336 = vmatmul.mubr.f32.gmra.mxu0 %v51
  %v337 = vpop.f32.mrf.mxu0
  %v338 = vadd.f32 %v84, %v337
  %v339 = vpop.f32.mrf.mxu0
  %340 = vmatprep.mubr.f32.mxu0 0.0
  %341 = vmatmul.mubr.f32.gmra.mxu0 %v52
  %v342 = vpop.f32.mrf.mxu0
  %v343 = vadd.f32 %v84, %v342
  %v344 = vpop.f32.mrf.mxu0
  %345 = vmatprep.mubr.f32.mxu0 0.0
  %346 = vmatmul.mubr.f32.gmra.mxu0 %v53
  %v347 = vpop.f32.mrf.mxu0
  %v348 = vadd.f32 %v84, %v347
  %v349 = vpop.f32.mrf.mxu0
  %350 = vmatprep.mubr.f32.mxu0 0.0
  %351 = vmatmul.mubr.f32.gmra.mxu0 %v54
  %v352 = vpop.f32.mrf.mxu0
  %v353 = vadd.f32 %v84, %v352
  %v354 = vpop.f32.mrf.mxu0
  %355 = vmatprep.mubr.f32.mxu0 0.0
  %356 = vmatmul.mubr.f32.gmra.mxu0 %v55
  %v357 = vpop.f32.mrf.mxu0
  %v358 = vadd.f32 %v84, %v357
  %v359 = vpop.f32.mrf.mxu0
  %360 = vmatprep.mubr.f32.mxu0 0.0
  %361 = vmatmul.mubr.f32.gmra.mxu0 %v56
  %v362 = vpop.f32.mrf.mxu0
  %v363 = vadd.f32 %v84, %v362
  %v364 = vpop.f32.mrf.mxu0
  %365 = vmatprep.mubr.f32.mxu0 0.0
  %366 = vmatmul.mubr.f32.gmra.mxu0 %v57
  %v367 = vpop.f32.mrf.mxu0
  %v368 = vadd.f32 %v84, %v367
  %v369 = vpop.f32.mrf.mxu0
  %370 = vmatprep.mubr.f32.mxu0 0.0
  %371 = vmatmul.mubr.f32.gmra.mxu0 %v58
  %v372 = vpop.f32.mrf.mxu0
  %v373 = vadd.f32 %v84, %v372
  %v374 = vpop.f32.mrf.mxu0
  %375 = vmatprep.mubr.f32.mxu0 0.0
  %376 = vmatmul.mubr.f32.gmra.mxu0 %v59
  %v377 = vpop.f32.mrf.mxu0
  %v378 = vadd.f32 %v84, %v377
  %v379 = vpop.f32.mrf.mxu0
  %380 = vmatprep.mubr.f32.mxu0 0.0
  %381 = vmatmul.mubr.f32.gmra.mxu0 %v60
  %v382 = vpop.f32.mrf.mxu0
  %v383 = vadd.f32 %v84, %v382
  %v384 = vpop.f32.mrf.mxu0
  %385 = vmatprep.mubr.f32.mxu0 0.0
  %386 = vmatmul.mubr.f32.gmra.mxu0 %v61
  %v387 = vpop.f32.mrf.mxu0
  %v388 = vadd.f32 %v84, %v387
  %v389 = vpop.f32.mrf.mxu0
  %390 = vmatprep.mubr.f32.mxu0 0.0
  %391 = vmatmul.mubr.f32.gmra.mxu0 %v62
  %v392 = vpop.f32.mrf.mxu0
  %v393 = vadd.f32 %v84, %v392
  %v394 = vpop.f32.mrf.mxu0
  %395 = vdwg.mxu0
  %396 = vst [vmem:[%s3] sm:$0xff] %v153
  %397 = vst [vmem:[%s3 + $0x8] sm:$0xff] %v158
  %398 = vst [vmem:[%s3 + $0x10] sm:$0xff] %v163
  %399 = vst [vmem:[%s3 + $0x18] sm:$0xff] %v168
  %400 = vst [vmem:[%s3 + $0x20] sm:$0xff] %v173
  %401 = vst [vmem:[%s3 + $0x28] sm:$0xff] %v178
  %402 = vst [vmem:[%s3 + $0x30] sm:$0xff] %v183
  %403 = vst [vmem:[%s3 + $0x38] sm:$0xff] %v188
  %404 = vst [vmem:[%s3 + $0x40] sm:$0xff] %v193
  %405 = vst [vmem:[%s3 + $0x48] sm:$0xff] %v198
  %406 = vst [vmem:[%s3 + $0x50] sm:$0xff] %v203
  %407 = vst [vmem:[%s3 + $0x58] sm:$0xff] %v208
  %408 = vst [vmem:[%s3 + $0x60] sm:$0xff] %v213
  %409 = vst [vmem:[%s3 + $0x68] sm:$0xff] %v218
  %410 = vst [vmem:[%s3 + $0x70] sm:$0xff] %v223
  %411 = vst [vmem:[%s3 + $0x78] sm:$0xff] %v228
  %412 = vst [vmem:[%s3 + $0x80] sm:$0xff] %v233
  %413 = vst [vmem:[%s3 + $0x88] sm:$0xff] %v238
  %414 = vst [vmem:[%s3 + $0x90] sm:$0xff] %v243
  %415 = vst [vmem:[%s3 + $0x98] sm:$0xff] %v248
  %416 = vst [vmem:[%s3 + $0xa0] sm:$0xff] %v253
  %417 = vst [vmem:[%s3 + $0xa8] sm:$0xff] %v258
  %418 = vst [vmem:[%s3 + $0xb0] sm:$0xff] %v263
  %419 = vst [vmem:[%s3 + $0xb8] sm:$0xff] %v268
  %420 = vst [vmem:[%s3 + $0xc0] sm:$0xff] %v273
  %421 = vst [vmem:[%s3 + $0xc8] sm:$0xff] %v278
  %422 = vst [vmem:[%s3 + $0xd0] sm:$0xff] %v283
  %423 = vst [vmem:[%s3 + $0xd8] sm:$0xff] %v288
  %424 = vst [vmem:[%s3 + $0xe0] sm:$0xff] %v293
  %425 = vst [vmem:[%s3 + $0xe8] sm:$0xff] %v298
  %426 = vst [vmem:[%s3 + $0xf0] sm:$0xff] %v303
  %427 = vst [vmem:[%s3 + $0xf8] sm:$0xff] %v308
  %428 = vst [vmem:[%s3 + $0x100] sm:$0xff] %v313
  %429 = vst [vmem:[%s3 + $0x108] sm:$0xff] %v318
  %430 = vst [vmem:[%s3 + $0x110] sm:$0xff] %v323
  %431 = vst [vmem:[%s3 + $0x118] sm:$0xff] %v328
  %432 = vst [vmem:[%s3 + $0x120] sm:$0xff] %v333
  %433 = vst [vmem:[%s3 + $0x128] sm:$0xff] %v338
  %434 = vst [vmem:[%s3 + $0x130] sm:$0xff] %v343
  %435 = vst [vmem:[%s3 + $0x138] sm:$0xff] %v348
  %436 = vst [vmem:[%s3 + $0x140] sm:$0xff] %v353
  %437 = vst [vmem:[%s3 + $0x148] sm:$0xff] %v358
  %438 = vst [vmem:[%s3 + $0x150] sm:$0xff] %v363
  %439 = vst [vmem:[%s3 + $0x158] sm:$0xff] %v368
  %440 = vst [vmem:[%s3 + $0x160] sm:$0xff] %v373
  %441 = vst [vmem:[%s3 + $0x168] sm:$0xff] %v378
  %442 = vst [vmem:[%s3 + $0x170] sm:$0xff] %v383
  %443 = vst [vmem:[%s3 + $0x178] sm:$0xff] %v388
  %444 = vst [vmem:[%s3 + $0x180] sm:$0xff] %v393
  // Predicated region
  $region14: #{lenet5_forward.2} parent=0 // pred_check
    _
  $region15: #{lenet5_forward.2} parent=0 // pred_check_branch
    %446 = sbr.rel (0) target = $region17
  $region16: #{lenet5_forward.2} parent=0 // pred_region
    _
  $region17: #{lenet5_forward.2} parent=0 // pred_fallthru
    _
  // Predicated region
  $region18: #{lenet5_forward.2} parent=0 // pred_check
    _
  $region19: #{lenet5_forward.2} parent=0 // pred_check_branch
    %448 = sbr.rel (0) target = $region21
  $region20: #{lenet5_forward.2} parent=0 // pred_region
    _
  $region21: #{lenet5_forward.2} parent=0 // pred_fallthru
    _

// kernel: lenet5_forward.3
$region0: #{lenet5_forward.3}
  #allocation0 [shape = 'u32[]', space=smem, size = 0x4, offset = 0x4, fixed_abs, tag = 'smem constant byte address 0x4 - core index']
  #allocation1 [shape = 'u32[144,128]{1,0:T(1,128)}', space=vmem, size = 0x12000, scoped, tag = 'internal scratch']
  %s0 = inlined_call_operand.vmem [shape: f32[25,8,256], index: 0, kind: input, shape index: {}]
  %s1 = inlined_call_operand.vmem [shape: f32[256,128], index: 1, kind: input, shape index: {}]
  %s2 = inlined_call_operand.vmem [shape: f32[1,128], index: 2, kind: input, shape index: {}]
  %s3 = inlined_call_operand.vmem [shape: f32[25,128,128], index: 3, kind: input, shape index: {}]
  %s4 = inlined_call_operand.vmem [shape: f32[1,128], index: 4, kind: input, shape index: {}]
  %s5 = inlined_call_operand.vmem [shape: f32[128,128], index: 5, kind: input, shape index: {}]
  %s6 = inlined_call_operand.vmem [shape: f32[1,128], index: 6, kind: input, shape index: {}]
  %s7 = inlined_call_operand.vmem [shape: f32[128,128], index: 7, kind: input, shape index: {}]
  %s8 = inlined_call_operand.vmem [shape: f32[1,128], index: 8, kind: input, shape index: {}]
  %s9 = inlined_call_operand.hbm [shape: f32[2,10], index: 9, kind: output, shape index: {}]
  %s10 = sld [smem:[#allocation0]]
  $region46: #{lenet5_forward.3} parent=0
    _
  %s12 = ssub.s32 1, %s10
  %s13 = scalar_select 0, %s12, %s10
  $region1: #{lenet5_forward.3} parent=0
    #allocation2 [shape = 'u8[1024]{0}', space=vmem, size = 0x400, scoped, tag = 'output window, operand 0, single buffered']
    #allocation3 [shape = 's32[1]{0}', space=sflag, size = 0x4, scoped, tag = 'scoped memory for lenet5_forward.3']
    %14 = vsyncpa [#allocation3], 0
    // Predicated region
    $region2: #{lenet5_forward.3} parent=1 // pred_check
      _
    $region3: #{lenet5_forward.3} parent=1 // pred_check_branch
      %16 = sbr.rel (0) target = $region5
    $region4: #{lenet5_forward.3} parent=1 // pred_region
      _
    $region5: #{lenet5_forward.3} parent=1 // pred_fallthru
      _
    // Predicated region
    $region6: #{lenet5_forward.3} parent=1 // pred_check
      _
    $region7: #{lenet5_forward.3} parent=1 // pred_check_branch
      %18 = sbr.rel (0) target = $region9
    $region8: #{lenet5_forward.3} parent=1 // pred_region
      _
    $region9: #{lenet5_forward.3} parent=1 // pred_fallthru
      _
    // Predicated region
    $region10: #{lenet5_forward.3} parent=1 // pred_check
      _
    $region11: #{lenet5_forward.3} parent=1 // pred_check_branch
      %20 = sbr.rel (0) target = $region13
    $region12: #{lenet5_forward.3} parent=1 // pred_region
      _
    $region13: #{lenet5_forward.3} parent=1 // pred_fallthru
      _
    // Predicated region
    $region14: #{lenet5_forward.3} parent=1 // pred_check
      _
    $region15: #{lenet5_forward.3} parent=1 // pred_check_branch
      %22 = sbr.rel (0) target = $region17
    $region16: #{lenet5_forward.3} parent=1 // pred_region
      _
    $region17: #{lenet5_forward.3} parent=1 // pred_fallthru
      _
    // Predicated region
    $region18: #{lenet5_forward.3} parent=1 // pred_check
      _
    $region19: #{lenet5_forward.3} parent=1 // pred_check_branch
      %24 = sbr.rel (0) target = $region21
    $region20: #{lenet5_forward.3} parent=1 // pred_region
      _
    $region21: #{lenet5_forward.3} parent=1 // pred_fallthru
      _
    // Predicated region
    $region22: #{lenet5_forward.3} parent=1 // pred_check
      _
    $region23: #{lenet5_forward.3} parent=1 // pred_check_branch
      %26 = sbr.rel (0) target = $region25
    $region24: #{lenet5_forward.3} parent=1 // pred_region
      _
    $region25: #{lenet5_forward.3} parent=1 // pred_fallthru
      _
    // Predicated region
    $region26: #{lenet5_forward.3} parent=1 // pred_check
      _
    $region27: #{lenet5_forward.3} parent=1 // pred_check_branch
      %28 = sbr.rel (0) target = $region29
    $region28: #{lenet5_forward.3} parent=1 // pred_region
      _
    $region29: #{lenet5_forward.3} parent=1 // pred_fallthru
      _
    // Predicated region
    $region30: #{lenet5_forward.3} parent=1 // pred_check
      _
    $region31: #{lenet5_forward.3} parent=1 // pred_check_branch
      %30 = sbr.rel (0) target = $region33
    $region32: #{lenet5_forward.3} parent=1 // pred_region
      _
    $region33: #{lenet5_forward.3} parent=1 // pred_fallthru
      _
    // Predicated region
    $region34: #{lenet5_forward.3} parent=1 // pred_check
      _
    $region35: #{lenet5_forward.3} parent=1 // pred_check_branch
      %32 = sbr.rel (0) target = $region37
    $region36: #{lenet5_forward.3} parent=1 // pred_region
      _
    $region37: #{lenet5_forward.3} parent=1 // pred_fallthru
      _
    %v33 = vld [vmem:[%s0] sm:$0xff]
    %v34 = vld [vmem:[%s0 + $0x8] sm:$0xff]
    %v35 = vld [vmem:[%s1] sm:$0xff]
    %v36 = vld [vmem:[%s1 + $0x8] sm:$0xff]
    %v37 = vld [vmem:[%s1 + $0x10] sm:$0xff]
    %v38 = vld [vmem:[%s1 + $0x18] sm:$0xff]
    %v39 = vld [vmem:[%s1 + $0x20] sm:$0xff]
    %v40 = vld [vmem:[%s1 + $0x28] sm:$0xff]
    %v41 = vld [vmem:[%s1 + $0x30] sm:$0xff]
    %v42 = vld [vmem:[%s1 + $0x38] sm:$0xff]
    %v43 = vld [vmem:[%s1 + $0x40] sm:$0xff]
    %v44 = vld [vmem:[%s1 + $0x48] sm:$0xff]
    %v45 = vld [vmem:[%s1 + $0x50] sm:$0xff]
    %v46 = vld [vmem:[%s1 + $0x58] sm:$0xff]
    %v47 = vld [vmem:[%s1 + $0x60] sm:$0xff]
    %v48 = vld [vmem:[%s1 + $0x68] sm:$0xff]
    %v49 = vld [vmem:[%s1 + $0x70] sm:$0xff]
    %v50 = vld [vmem:[%s1 + $0x78] sm:$0xff]
    %v51 = vld [vmem:[%s1 + $0x80] sm:$0xff]
    %v52 = vld [vmem:[%s1 + $0x88] sm:$0xff]
    %v53 = vld [vmem:[%s1 + $0x90] sm:$0xff]
    %v54 = vld [vmem:[%s1 + $0x98] sm:$0xff]
    %v55 = vld [vmem:[%s1 + $0xa0] sm:$0xff]
    %v56 = vld [vmem:[%s1 + $0xa8] sm:$0xff]
    %v57 = vld [vmem:[%s1 + $0xb0] sm:$0xff]
    %v58 = vld [vmem:[%s1 + $0xb8] sm:$0xff]
    %v59 = vld [vmem:[%s1 + $0xc0] sm:$0xff]
    %v60 = vld [vmem:[%s1 + $0xc8] sm:$0xff]
    %v61 = vld [vmem:[%s1 + $0xd0] sm:$0xff]
    %v62 = vld [vmem:[%s1 + $0xd8] sm:$0xff]
    %v63 = vld [vmem:[%s1 + $0xe0] sm:$0xff]
    %v64 = vld [vmem:[%s1 + $0xe8] sm:$0xff]
    %v65 = vld [vmem:[%s1 + $0xf0] sm:$0xff]
    %v66 = vld [vmem:[%s1 + $0xf8] sm:$0xff]
    %v67 = vld [vmem:[%s2] sm:$0x1]
    %v69 = vlaneseq
    %v70 = vshrl.u32 %v69, 7
    %v71 = vsub.s32 0, %v70
    %v72 = vrot.slane %v67, %v71
    %74 = vmatprep.subr.mxu0 0.0
    %75 = vmatpush1.msra.mxu0 %v50
    %76 = vmatprep.subr.mxu0 0.0
    %77 = vmatpush1.msra.mxu0 %v49
    %78 = vmatprep.subr.mxu0 0.0
    %79 = vmatpush1.msra.mxu0 %v48
    %80 = vmatprep.subr.mxu0 0.0
    %81 = vmatpush1.msra.mxu0 %v47
    %82 = vmatprep.subr.mxu0 0.0
    %83 = vmatpush1.msra.mxu0 %v46
    %84 = vmatprep.subr.mxu0 0.0
    %85 = vmatpush1.msra.mxu0 %v45
    %86 = vmatprep.subr.mxu0 0.0
    %87 = vmatpush1.msra.mxu0 %v44
    %88 = vmatprep.subr.mxu0 0.0
    %89 = vmatpush1.msra.mxu0 %v43
    %90 = vmatprep.subr.mxu0 0.0
    %91 = vmatpush1.msra.mxu0 %v42
    %92 = vmatprep.subr.mxu0 0.0
    %93 = vmatpush1.msra.mxu0 %v41
    %94 = vmatprep.subr.mxu0 0.0
    %95 = vmatpush1.msra.mxu0 %v40
    %96 = vmatprep.subr.mxu0 0.0
    %97 = vmatpush1.msra.mxu0 %v39
    %98 = vmatprep.subr.mxu0 0.0
    %99 = vmatpush1.msra.mxu0 %v38
    %100 = vmatprep.subr.mxu0 0.0
    %101 = vmatpush1.msra.mxu0 %v37
    %102 = vmatprep.subr.mxu0 0.0
    %103 = vmatpush1.msra.mxu0 %v36
    %104 = vmatprep.subr.mxu0 0.0
    %105 = vmatpush1.msra.mxu0 %v35
    %106 = vmatprep.subr.mxu0 0.0
    %107 = vmatpush2.msra.mxu0 %v66
    %108 = vmatprep.subr.mxu0 0.0
    %109 = vmatpush2.msra.mxu0 %v65
    %110 = vmatprep.subr.mxu0 0.0
    %111 = vmatpush2.msra.mxu0 %v64
    %112 = vmatprep.subr.mxu0 0.0
    %113 = vmatpush2.msra.mxu0 %v63
    %114 = vmatprep.subr.mxu0 0.0
    %115 = vmatpush2.msra.mxu0 %v62
    %116 = vmatprep.subr.mxu0 0.0
    %117 = vmatpush2.msra.mxu0 %v61
    %118 = vmatprep.subr.mxu0 0.0
    %119 = vmatpush2.msra.mxu0 %v60
    %120 = vmatprep.subr.mxu0 0.0
    %121 = vmatpush2.msra.mxu0 %v59
    %122 = vmatprep.subr.mxu0 0.0
    %123 = vmatpush2.msra.mxu0 %v58
    %124 = vmatprep.subr.mxu0 0.0
    %125 = vmatpush2.msra.mxu0 %v57
    %126 = vmatprep.subr.mxu0 0.0
    %127 = vmatpush2.msra.mxu0 %v56
    %128 = vmatprep.subr.mxu0 0.0
    %129 = vmatpush2.msra.mxu0 %v55
    %130 = vmatprep.subr.mxu0 0.0
    %131 = vmatpush2.msra.mxu0 %v54
    %132 = vmatprep.subr.mxu0 0.0
    %133 = vmatpush2.msra.mxu0 %v53
    %134 = vmatprep.subr.mxu0 0.0
    %135 = vmatpush2.msra.mxu0 %v52
    %136 = vmatprep.subr.mxu0 0.0
    %137 = vmatpush2.msra.mxu0 %v51
    %138 = vmatprep.mubr.f32.mxu0 %v34
    %139 = vmatmul.mubr.f32.gmra.mxu0 %v33
    %v140 = vpop.f32.mrf.mxu0
    %v141 = vadd.f32 %v72, %v140
    %v142 = vpop.f32.mrf.mxu0
    %143 = vdwg.mxu0
    %v144 = vld [vmem:[%s3] sm:$0xff]
    %v145 = vld [vmem:[%s3 + $0x8] sm:$0xff]
    %v146 = vld [vmem:[%s3 + $0x10] sm:$0xff]
    %v147 = vld [vmem:[%s3 + $0x18] sm:$0xff]
    %v148 = vld [vmem:[%s3 + $0x20] sm:$0xff]
    %v149 = vld [vmem:[%s3 + $0x28] sm:$0xff]
    %v150 = vld [vmem:[%s3 + $0x30] sm:$0xff]
    %v151 = vld [vmem:[%s3 + $0x38] sm:$0xff]
    %v152 = vld [vmem:[%s3 + $0x40] sm:$0xff]
    %v153 = vld [vmem:[%s3 + $0x48] sm:$0xff]
    %v154 = vld [vmem:[%s3 + $0x50] sm:$0xff]
    %v155 = vld [vmem:[%s3 + $0x58] sm:$0xff]
    %v156 = vld [vmem:[%s3 + $0x60] sm:$0xff]
    %v157 = vld [vmem:[%s3 + $0x68] sm:$0xff]
    %v158 = vld [vmem:[%s3 + $0x70] sm:$0xff]
    %v159 = vld [vmem:[%s3 + $0x78] sm:$0xff]
    %s160 = scalar_lea.vmem %s0, 16
    %v161 = vld [vmem:[%s160] sm:$0xff]
    %v162 = vld [vmem:[%s160 + $0x8] sm:$0xff]
    %163 = vmatprep.subr.mxu0 0.0
    %164 = vmatpush1.msra.mxu0 %v50
    %165 = vmatprep.subr.mxu0 0.0
    %166 = vmatpush1.msra.mxu0 %v49
    %167 = vmatprep.subr.mxu0 0.0
    %168 = vmatpush1.msra.mxu0 %v48
    %169 = vmatprep.subr.mxu0 0.0
    %170 = vmatpush1.msra.mxu0 %v47
    %171 = vmatprep.subr.mxu0 0.0
    %172 = vmatpush1.msra.mxu0 %v46
    %173 = vmatprep.subr.mxu0 0.0
    %174 = vmatpush1.msra.mxu0 %v45
    %175 = vmatprep.subr.mxu0 0.0
    %176 = vmatpush1.msra.mxu0 %v44
    %177 = vmatprep.subr.mxu0 0.0
    %178 = vmatpush1.msra.mxu0 %v43
    %179 = vmatprep.subr.mxu0 0.0
    %180 = vmatpush1.msra.mxu0 %v42
    %181 = vmatprep.subr.mxu0 0.0
    %182 = vmatpush1.msra.mxu0 %v41
    %183 = vmatprep.subr.mxu0 0.0
    %184 = vmatpush1.msra.mxu0 %v40
    %185 = vmatprep.subr.mxu0 0.0
    %186 = vmatpush1.msra.mxu0 %v39
    %187 = vmatprep.subr.mxu0 0.0
    %188 = vmatpush1.msra.mxu0 %v38
    %189 = vmatprep.subr.mxu0 0.0
    %190 = vmatpush1.msra.mxu0 %v37
    %191 = vmatprep.subr.mxu0 0.0
    %192 = vmatpush1.msra.mxu0 %v36
    %193 = vmatprep.subr.mxu0 0.0
    %194 = vmatpush1.msra.mxu0 %v35
    %195 = vmatprep.subr.mxu0 0.0
    %196 = vmatpush2.msra.mxu0 %v66
    %197 = vmatprep.subr.mxu0 0.0
    %198 = vmatpush2.msra.mxu0 %v65
    %199 = vmatprep.subr.mxu0 0.0
    %200 = vmatpush2.msra.mxu0 %v64
    %201 = vmatprep.subr.mxu0 0.0
    %202 = vmatpush2.msra.mxu0 %v63
    %203 = vmatprep.subr.mxu0 0.0
    %204 = vmatpush2.msra.mxu0 %v62
    %205 = vmatprep.subr.mxu0 0.0
    %206 = vmatpush2.msra.mxu0 %v61
    %207 = vmatprep.subr.mxu0 0.0
    %208 = vmatpush2.msra.mxu0 %v60
    %209 = vmatprep.subr.mxu0 0.0
    %210 = vmatpush2.msra.mxu0 %v59
    %211 = vmatprep.subr.mxu0 0.0
    %212 = vmatpush2.msra.mxu0 %v58
    %213 = vmatprep.subr.mxu0 0.0
    %214 = vmatpush2.msra.mxu0 %v57
    %215 = vmatprep.subr.mxu0 0.0
    %216 = vmatpush2.msra.mxu0 %v56
    %217 = vmatprep.subr.mxu0 0.0
    %218 = vmatpush2.msra.mxu0 %v55
    %219 = vmatprep.subr.mxu0 0.0
    %220 = vmatpush2.msra.mxu0 %v54
    %221 = vmatprep.subr.mxu0 0.0
    %222 = vmatpush2.msra.mxu0 %v53
    %223 = vmatprep.subr.mxu0 0.0
    %224 = vmatpush2.msra.mxu0 %v52
    %225 = vmatprep.subr.mxu0 0.0
    %226 = vmatpush2.msra.mxu0 %v51
    %227 = vmatprep.mubr.f32.mxu0 %v162
    %228 = vmatmul.mubr.f32.gmra.mxu0 %v161
    %v229 = vpop.f32.mrf.mxu0
    %v230 = vadd.f32 %v72, %v229
    %v231 = vpop.f32.mrf.mxu0
    %232 = vdwg.mxu0
    %s233 = scalar_lea.vmem %s3, 128
    %v234 = vld [vmem:[%s233] sm:$0xff]
    %v235 = vld [vmem:[%s233 + $0x8] sm:$0xff]
    %v236 = vld [vmem:[%s233 + $0x10] sm:$0xff]
    %v237 = vld [vmem:[%s233 + $0x18] sm:$0xff]
    %v238 = vld [vmem:[%s233 + $0x20] sm:$0xff]
    %v239 = vld [vmem:[%s233 + $0x28] sm:$0xff]
    %v240 = vld [vmem:[%s233 + $0x30] sm:$0xff]
    %v241 = vld [vmem:[%s233 + $0x38] sm:$0xff]
    %v242 = vld [vmem:[%s233 + $0x40] sm:$0xff]
    %v243 = vld [vmem:[%s233 + $0x48] sm:$0xff]
    %v244 = vld [vmem:[%s233 + $0x50] sm:$0xff]
    %v245 = vld [vmem:[%s233 + $0x58] sm:$0xff]
    %v246 = vld [vmem:[%s233 + $0x60] sm:$0xff]
    %v247 = vld [vmem:[%s233 + $0x68] sm:$0xff]
    %v248 = vld [vmem:[%s233 + $0x70] sm:$0xff]
    %v249 = vld [vmem:[%s233 + $0x78] sm:$0xff]
    %250 = vmatprep.subr.mxu0 0.0
    %251 = vmatpush1.msra.mxu0 %v249
    %252 = vmatprep.subr.mxu0 0.0
    %253 = vmatpush1.msra.mxu0 %v248
    %254 = vmatprep.subr.mxu0 0.0
    %255 = vmatpush1.msra.mxu0 %v247
    %256 = vmatprep.subr.mxu0 0.0
    %257 = vmatpush1.msra.mxu0 %v246
    %258 = vmatprep.subr.mxu0 0.0
    %259 = vmatpush1.msra.mxu0 %v245
    %260 = vmatprep.subr.mxu0 0.0
    %261 = vmatpush1.msra.mxu0 %v244
    %262 = vmatprep.subr.mxu0 0.0
    %263 = vmatpush1.msra.mxu0 %v243
    %264 = vmatprep.subr.mxu0 0.0
    %265 = vmatpush1.msra.mxu0 %v242
    %266 = vmatprep.subr.mxu0 0.0
    %267 = vmatpush1.msra.mxu0 %v241
    %268 = vmatprep.subr.mxu0 0.0
    %269 = vmatpush1.msra.mxu0 %v240
    %270 = vmatprep.subr.mxu0 0.0
    %271 = vmatpush1.msra.mxu0 %v239
    %272 = vmatprep.subr.mxu0 0.0
    %273 = vmatpush1.msra.mxu0 %v238
    %274 = vmatprep.subr.mxu0 0.0
    %275 = vmatpush1.msra.mxu0 %v237
    %276 = vmatprep.subr.mxu0 0.0
    %277 = vmatpush1.msra.mxu0 %v236
    %278 = vmatprep.subr.mxu0 0.0
    %279 = vmatpush1.msra.mxu0 %v235
    %280 = vmatprep.subr.mxu0 0.0
    %281 = vmatpush1.msra.mxu0 %v234
    %282 = vmatprep.subr.mxu0 0.0
    %283 = vmatpush2.msra.mxu0 0.0
    %284 = vmatprep.subr.mxu0 0.0
    %285 = vmatpush2.msra.mxu0 0.0
    %286 = vmatprep.subr.mxu0 0.0
    %287 = vmatpush2.msra.mxu0 0.0
    %288 = vmatprep.subr.mxu0 0.0
    %289 = vmatpush2.msra.mxu0 0.0
    %290 = vmatprep.subr.mxu0 0.0
    %291 = vmatpush2.msra.mxu0 0.0
    %292 = vmatprep.subr.mxu0 0.0
    %293 = vmatpush2.msra.mxu0 0.0
    %294 = vmatprep.subr.mxu0 0.0
    %295 = vmatpush2.msra.mxu0 0.0
    %296 = vmatprep.subr.mxu0 0.0
    %297 = vmatpush2.msra.mxu0 0.0
    %298 = vmatprep.subr.mxu0 0.0
    %299 = vmatpush2.msra.mxu0 0.0
    %300 = vmatprep.subr.mxu0 0.0
    %301 = vmatpush2.msra.mxu0 0.0
    %302 = vmatprep.subr.mxu0 0.0
    %303 = vmatpush2.msra.mxu0 0.0
    %304 = vmatprep.subr.mxu0 0.0
    %305 = vmatpush2.msra.mxu0 0.0
    %306 = vmatprep.subr.mxu0 0.0
    %307 = vmatpush2.msra.mxu0 0.0
    %308 = vmatprep.subr.mxu0 0.0
    %309 = vmatpush2.msra.mxu0 0.0
    %310 = vmatprep.subr.mxu0 0.0
    %311 = vmatpush2.msra.mxu0 0.0
    %312 = vmatprep.subr.mxu0 0.0
    %313 = vmatpush2.msra.mxu0 0.0
    %314 = vmatprep.mubr.f32.mxu0 0.0
    %315 = vmatmul.mubr.f32.gmra.mxu0 %v230
    %v316 = vpop.f32.mrf.mxu0
    %v317 = vadd.f32 0.0, %v316
    %v318 = vpop.f32.mrf.mxu0
    %319 = vdwg.mxu0
    %320 = vmatprep.subr.mxu0 0.0
    %321 = vmatpush1.msra.mxu0 %v159
    %322 = vmatprep.subr.mxu0 0.0
    %323 = vmatpush1.msra.mxu0 %v158
    %324 = vmatprep.subr.mxu0 0.0
    %325 = vmatpush1.msra.mxu0 %v157
    %326 = vmatprep.subr.mxu0 0.0
    %327 = vmatpush1.msra.mxu0 %v156
    %328 = vmatprep.subr.mxu0 0.0
    %329 = vmatpush1.msra.mxu0 %v155
    %330 = vmatprep.subr.mxu0 0.0
    %331 = vmatpush1.msra.mxu0 %v154
    %332 = vmatprep.subr.mxu0 0.0
    %333 = vmatpush1.msra.mxu0 %v153
    %334 = vmatprep.subr.mxu0 0.0
    %335 = vmatpush1.msra.mxu0 %v152
    %336 = vmatprep.subr.mxu0 0.0
    %337 = vmatpush1.msra.mxu0 %v151
    %338 = vmatprep.subr.mxu0 0.0
    %339 = vmatpush1.msra.mxu0 %v150
    %340 = vmatprep.subr.mxu0 0.0
    %341 = vmatpush1.msra.mxu0 %v149
    %342 = vmatprep.subr.mxu0 0.0
    %343 = vmatpush1.msra.mxu0 %v148
    %344 = vmatprep.subr.mxu0 0.0
    %345 = vmatpush1.msra.mxu0 %v147
    %346 = vmatprep.subr.mxu0 0.0
    %347 = vmatpush1.msra.mxu0 %v146
    %348 = vmatprep.subr.mxu0 0.0
    %349 = vmatpush1.msra.mxu0 %v145
    %350 = vmatprep.subr.mxu0 0.0
    %351 = vmatpush1.msra.mxu0 %v144
    %352 = vmatprep.subr.mxu0 0.0
    %353 = vmatpush2.msra.mxu0 0.0
    %354 = vmatprep.subr.mxu0 0.0
    %355 = vmatpush2.msra.mxu0 0.0
    %356 = vmatprep.subr.mxu0 0.0
    %357 = vmatpush2.msra.mxu0 0.0
    %358 = vmatprep.subr.mxu0 0.0
    %359 = vmatpush2.msra.mxu0 0.0
    %360 = vmatprep.subr.mxu0 0.0
    %361 = vmatpush2.msra.mxu0 0.0
    %362 = vmatprep.subr.mxu0 0.0
    %363 = vmatpush2.msra.mxu0 0.0
    %364 = vmatprep.subr.mxu0 0.0
    %365 = vmatpush2.msra.mxu0 0.0
    %366 = vmatprep.subr.mxu0 0.0
    %367 = vmatpush2.msra.mxu0 0.0
    %368 = vmatprep.subr.mxu0 0.0
    %369 = vmatpush2.msra.mxu0 0.0
    %370 = vmatprep.subr.mxu0 0.0
    %371 = vmatpush2.msra.mxu0 0.0
    %372 = vmatprep.subr.mxu0 0.0
    %373 = vmatpush2.msra.mxu0 0.0
    %374 = vmatprep.subr.mxu0 0.0
    %375 = vmatpush2.msra.mxu0 0.0
    %376 = vmatprep.subr.mxu0 0.0
    %377 = vmatpush2.msra.mxu0 0.0
    %378 = vmatprep.subr.mxu0 0.0
    %379 = vmatpush2.msra.mxu0 0.0
    %380 = vmatprep.subr.mxu0 0.0
    %381 = vmatpush2.msra.mxu0 0.0
    %382 = vmatprep.subr.mxu0 0.0
    %383 = vmatpush2.msra.mxu0 0.0
    %384 = vmatprep.mubr.f32.mxu0 0.0
    %385 = vmatmul.mubr.f32.gmra.mxu0 %v141
    %v386 = vpop.f32.mrf.mxu0
    %v387 = vadd.f32 %v317, %v386
    %v388 = vpop.f32.mrf.mxu0
    %389 = vdwg.mxu0
    %s390 = scalar_lea.vmem %s0, 32
    %v391 = vld [vmem:[%s390] sm:$0xff]
    %v392 = vld [vmem:[%s390 + $0x8] sm:$0xff]
    %393 = vmatprep.subr.mxu0 0.0
    %394 = vmatpush1.msra.mxu0 %v50
    %395 = vmatprep.subr.mxu0 0.0
    %396 = vmatpush1.msra.mxu0 %v49
    %397 = vmatprep.subr.mxu0 0.0
    %398 = vmatpush1.msra.mxu0 %v48
    %399 = vmatprep.subr.mxu0 0.0
    %400 = vmatpush1.msra.mxu0 %v47
    %401 = vmatprep.subr.mxu0 0.0
    %402 = vmatpush1.msra.mxu0 %v46
    %403 = vmatprep.subr.mxu0 0.0
    %404 = vmatpush1.msra.mxu0 %v45
    %405 = vmatprep.subr.mxu0 0.0
    %406 = vmatpush1.msra.mxu0 %v44
    %407 = vmatprep.subr.mxu0 0.0
    %408 = vmatpush1.msra.mxu0 %v43
    %409 = vmatprep.subr.mxu0 0.0
    %410 = vmatpush1.msra.mxu0 %v42
    %411 = vmatprep.subr.mxu0 0.0
    %412 = vmatpush1.msra.mxu0 %v41
    %413 = vmatprep.subr.mxu0 0.0
    %414 = vmatpush1.msra.mxu0 %v40
    %415 = vmatprep.subr.mxu0 0.0
    %416 = vmatpush1.msra.mxu0 %v39
    %417 = vmatprep.subr.mxu0 0.0
    %418 = vmatpush1.msra.mxu0 %v38
    %419 = vmatprep.subr.mxu0 0.0
    %420 = vmatpush1.msra.mxu0 %v37
    %421 = vmatprep.subr.mxu0 0.0
    %422 = vmatpush1.msra.mxu0 %v36
    %423 = vmatprep.subr.mxu0 0.0
    %424 = vmatpush1.msra.mxu0 %v35
    %425 = vmatprep.subr.mxu0 0.0
    %426 = vmatpush2.msra.mxu0 %v66
    %427 = vmatprep.subr.mxu0 0.0
    %428 = vmatpush2.msra.mxu0 %v65
    %429 = vmatprep.subr.mxu0 0.0
    %430 = vmatpush2.msra.mxu0 %v64
    %431 = vmatprep.subr.mxu0 0.0
    %432 = vmatpush2.msra.mxu0 %v63
    %433 = vmatprep.subr.mxu0 0.0
    %434 = vmatpush2.msra.mxu0 %v62
    %435 = vmatprep.subr.mxu0 0.0
    %436 = vmatpush2.msra.mxu0 %v61
    %437 = vmatprep.subr.mxu0 0.0
    %438 = vmatpush2.msra.mxu0 %v60
    %439 = vmatprep.subr.mxu0 0.0
    %440 = vmatpush2.msra.mxu0 %v59
    %441 = vmatprep.subr.mxu0 0.0
    %442 = vmatpush2.msra.mxu0 %v58
    %443 = vmatprep.subr.mxu0 0.0
    %444 = vmatpush2.msra.mxu0 %v57
    %445 = vmatprep.subr.mxu0 0.0
    %446 = vmatpush2.msra.mxu0 %v56
    %447 = vmatprep.subr.mxu0 0.0
    %448 = vmatpush2.msra.mxu0 %v55
    %449 = vmatprep.subr.mxu0 0.0
    %450 = vmatpush2.msra.mxu0 %v54
    %451 = vmatprep.subr.mxu0 0.0
    %452 = vmatpush2.msra.mxu0 %v53
    %453 = vmatprep.subr.mxu0 0.0
    %454 = vmatpush2.msra.mxu0 %v52
    %455 = vmatprep.subr.mxu0 0.0
    %456 = vmatpush2.msra.mxu0 %v51
    %457 = vmatprep.mubr.f32.mxu0 %v392
    %458 = vmatmul.mubr.f32.gmra.mxu0 %v391
    %v459 = vpop.f32.mrf.mxu0
    %v460 = vadd.f32 %v72, %v459
    %v461 = vpop.f32.mrf.mxu0
    %462 = vdwg.mxu0
    %s463 = scalar_lea.vmem %s3, 256
    %v464 = vld [vmem:[%s463] sm:$0xff]
    %v465 = vld [vmem:[%s463 + $0x8] sm:$0xff]
    %v466 = vld [vmem:[%s463 + $0x10] sm:$0xff]
    %v467 = vld [vmem:[%s463 + $0x18] sm:$0xff]
    %v468 = vld [vmem:[%s463 + $0x20] sm:$0xff]
    %v469 = vld [vmem:[%s463 + $0x28] sm:$0xff]
    %v470 = vld [vmem:[%s463 + $0x30] sm:$0xff]
    %v471 = vld [vmem:[%s463 + $0x38] sm:$0xff]
    %v472 = vld [vmem:[%s463 + $0x40] sm:$0xff]
    %v473 = vld [vmem:[%s463 + $0x48] sm:$0xff]
    %v474 = vld [vmem:[%s463 + $0x50] sm:$0xff]
    %v475 = vld [vmem:[%s463 + $0x58] sm:$0xff]
    %v476 = vld [vmem:[%s463 + $0x60] sm:$0xff]
    %v477 = vld [vmem:[%s463 + $0x68] sm:$0xff]
    %v478 = vld [vmem:[%s463 + $0x70] sm:$0xff]
    %v479 = vld [vmem:[%s463 + $0x78] sm:$0xff]
    %480 = vmatprep.subr.mxu0 0.0
    %481 = vmatpush1.msra.mxu0 %v479
    %482 = vmatprep.subr.mxu0 0.0
    %483 = vmatpush1.msra.mxu0 %v478
    %484 = vmatprep.subr.mxu0 0.0
    %485 = vmatpush1.msra.mxu0 %v477
    %486 = vmatprep.subr.mxu0 0.0
    %487 = vmatpush1.msra.mxu0 %v476
    %488 = vmatprep.subr.mxu0 0.0
    %489 = vmatpush1.msra.mxu0 %v475
    %490 = vmatprep.subr.mxu0 0.0
    %491 = vmatpush1.msra.mxu0 %v474
    %492 = vmatprep.subr.mxu0 0.0
    %493 = vmatpush1.msra.mxu0 %v473
    %494 = vmatprep.subr.mxu0 0.0
    %495 = vmatpush1.msra.mxu0 %v472
    %496 = vmatprep.subr.mxu0 0.0
    %497 = vmatpush1.msra.mxu0 %v471
    %498 = vmatprep.subr.mxu0 0.0
    %499 = vmatpush1.msra.mxu0 %v470
    %500 = vmatprep.subr.mxu0 0.0
    %501 = vmatpush1.msra.mxu0 %v469
    %502 = vmatprep.subr.mxu0 0.0
    %503 = vmatpush1.msra.mxu0 %v468
    %504 = vmatprep.subr.mxu0 0.0
    %505 = vmatpush1.msra.mxu0 %v467
    %506 = vmatprep.subr.mxu0 0.0
    %507 = vmatpush1.msra.mxu0 %v466
    %508 = vmatprep.subr.mxu0 0.0
    %509 = vmatpush1.msra.mxu0 %v465
    %510 = vmatprep.subr.mxu0 0.0
    %511 = vmatpush1.msra.mxu0 %v464
    %512 = vmatprep.subr.mxu0 0.0
    %513 = vmatpush2.msra.mxu0 0.0
    %514 = vmatprep.subr.mxu0 0.0
    %515 = vmatpush2.msra.mxu0 0.0
    %516 = vmatprep.subr.mxu0 0.0
    %517 = vmatpush2.msra.mxu0 0.0
    %518 = vmatprep.subr.mxu0 0.0
    %519 = vmatpush2.msra.mxu0 0.0
    %520 = vmatprep.subr.mxu0 0.0
    %521 = vmatpush2.msra.mxu0 0.0
    %522 = vmatprep.subr.mxu0 0.0
    %523 = vmatpush2.msra.mxu0 0.0
    %524 = vmatprep.subr.mxu0 0.0
    %525 = vmatpush2.msra.mxu0 0.0
    %526 = vmatprep.subr.mxu0 0.0
    %527 = vmatpush2.msra.mxu0 0.0
    %528 = vmatprep.subr.mxu0 0.0
    %529 = vmatpush2.msra.mxu0 0.0
    %530 = vmatprep.subr.mxu0 0.0
    %531 = vmatpush2.msra.mxu0 0.0
    %532 = vmatprep.subr.mxu0 0.0
    %533 = vmatpush2.msra.mxu0 0.0
    %534 = vmatprep.subr.mxu0 0.0
    %535 = vmatpush2.msra.mxu0 0.0
    %536 = vmatprep.subr.mxu0 0.0
    %537 = vmatpush2.msra.mxu0 0.0
    %538 = vmatprep.subr.mxu0 0.0
    %539 = vmatpush2.msra.mxu0 0.0
    %540 = vmatprep.subr.mxu0 0.0
    %541 = vmatpush2.msra.mxu0 0.0
    %542 = vmatprep.subr.mxu0 0.0
    %543 = vmatpush2.msra.mxu0 0.0
    %544 = vmatprep.mubr.f32.mxu0 0.0
    %545 = vmatmul.mubr.f32.gmra.mxu0 %v460
    %v546 = vpop.f32.mrf.mxu0
    %v547 = vadd.f32 0.0, %v546
    %v548 = vpop.f32.mrf.mxu0
    %549 = vdwg.mxu0
    %v550 = vadd.f32 %v387, %v547
    %s551 = scalar_lea.vmem %s0, 48
    %v552 = vld [vmem:[%s551] sm:$0xff]
    %v553 = vld [vmem:[%s551 + $0x8] sm:$0xff]
    %554 = vmatprep.subr.mxu0 0.0
    %555 = vmatpush1.msra.mxu0 %v50
    %556 = vmatprep.subr.mxu0 0.0
    %557 = vmatpush1.msra.mxu0 %v49
    %558 = vmatprep.subr.mxu0 0.0
    %559 = vmatpush1.msra.mxu0 %v48
    %560 = vmatprep.subr.mxu0 0.0
    %561 = vmatpush1.msra.mxu0 %v47
    %562 = vmatprep.subr.mxu0 0.0
    %563 = vmatpush1.msra.mxu0 %v46
    %564 = vmatprep.subr.mxu0 0.0
    %565 = vmatpush1.msra.mxu0 %v45
    %566 = vmatprep.subr.mxu0 0.0
    %567 = vmatpush1.msra.mxu0 %v44
    %568 = vmatprep.subr.mxu0 0.0
    %569 = vmatpush1.msra.mxu0 %v43
    %570 = vmatprep.subr.mxu0 0.0
    %571 = vmatpush1.msra.mxu0 %v42
    %572 = vmatprep.subr.mxu0 0.0
    %573 = vmatpush1.msra.mxu0 %v41
    %574 = vmatprep.subr.mxu0 0.0
    %575 = vmatpush1.msra.mxu0 %v40
    %576 = vmatprep.subr.mxu0 0.0
    %577 = vmatpush1.msra.mxu0 %v39
    %578 = vmatprep.subr.mxu0 0.0
    %579 = vmatpush1.msra.mxu0 %v38
    %580 = vmatprep.subr.mxu0 0.0
    %581 = vmatpush1.msra.mxu0 %v37
    %582 = vmatprep.subr.mxu0 0.0
    %583 = vmatpush1.msra.mxu0 %v36
    %584 = vmatprep.subr.mxu0 0.0
    %585 = vmatpush1.msra.mxu0 %v35
    %586 = vmatprep.subr.mxu0 0.0
    %587 = vmatpush2.msra.mxu0 %v66
    %588 = vmatprep.subr.mxu0 0.0
    %589 = vmatpush2.msra.mxu0 %v65
    %590 = vmatprep.subr.mxu0 0.0
    %591 = vmatpush2.msra.mxu0 %v64
    %592 = vmatprep.subr.mxu0 0.0
    %593 = vmatpush2.msra.mxu0 %v63
    %594 = vmatprep.subr.mxu0 0.0
    %595 = vmatpush2.msra.mxu0 %v62
    %596 = vmatprep.subr.mxu0 0.0
    %597 = vmatpush2.msra.mxu0 %v61
    %598 = vmatprep.subr.mxu0 0.0
    %599 = vmatpush2.msra.mxu0 %v60
    %600 = vmatprep.subr.mxu0 0.0
    %601 = vmatpush2.msra.mxu0 %v59
    %602 = vmatprep.subr.mxu0 0.0
    %603 = vmatpush2.msra.mxu0 %v58
    %604 = vmatprep.subr.mxu0 0.0
    %605 = vmatpush2.msra.mxu0 %v57
    %606 = vmatprep.subr.mxu0 0.0
    %607 = vmatpush2.msra.mxu0 %v56
    %608 = vmatprep.subr.mxu0 0.0
    %609 = vmatpush2.msra.mxu0 %v55
    %610 = vmatprep.subr.mxu0 0.0
    %611 = vmatpush2.msra.mxu0 %v54
    %612 = vmatprep.subr.mxu0 0.0
    %613 = vmatpush2.msra.mxu0 %v53
    %614 = vmatprep.subr.mxu0 0.0
    %615 = vmatpush2.msra.mxu0 %v52
    %616 = vmatprep.subr.mxu0 0.0
    %617 = vmatpush2.msra.mxu0 %v51
    %618 = vmatprep.mubr.f32.mxu0 %v553
    %619 = vmatmul.mubr.f32.gmra.mxu0 %v552
    %v620 = vpop.f32.mrf.mxu0
    %v621 = vadd.f32 %v72, %v620
    %v622 = vpop.f32.mrf.mxu0
    %623 = vdwg.mxu0
    %s624 = scalar_lea.vmem %s3, 384
    %v625 = vld [vmem:[%s624] sm:$0xff]
    %v626 = vld [vmem:[%s624 + $0x8] sm:$0xff]
    %v627 = vld [vmem:[%s624 + $0x10] sm:$0xff]
    %v628 = vld [vmem:[%s624 + $0x18] sm:$0xff]
    %v629 = vld [vmem:[%s624 + $0x20] sm:$0xff]
    %v630 = vld [vmem:[%s624 + $0x28] sm:$0xff]
    %v631 = vld [vmem:[%s624 + $0x30] sm:$0xff]
    %v632 = vld [vmem:[%s624 + $0x38] sm:$0xff]
    %v633 = vld [vmem:[%s624 + $0x40] sm:$0xff]
    %v634 = vld [vmem:[%s624 + $0x48] sm:$0xff]
    %v635 = vld [vmem:[%s624 + $0x50] sm:$0xff]
    %v636 = vld [vmem:[%s624 + $0x58] sm:$0xff]
    %v637 = vld [vmem:[%s624 + $0x60] sm:$0xff]
    %v638 = vld [vmem:[%s624 + $0x68] sm:$0xff]
    %v639 = vld [vmem:[%s624 + $0x70] sm:$0xff]
    %v640 = vld [vmem:[%s624 + $0x78] sm:$0xff]
    %641 = vmatprep.subr.mxu0 0.0
    %642 = vmatpush1.msra.mxu0 %v640
    %643 = vmatprep.subr.mxu0 0.0
    %644 = vmatpush1.msra.mxu0 %v639
    %645 = vmatprep.subr.mxu0 0.0
    %646 = vmatpush1.msra.mxu0 %v638
    %647 = vmatprep.subr.mxu0 0.0
    %648 = vmatpush1.msra.mxu0 %v637
    %649 = vmatprep.subr.mxu0 0.0
    %650 = vmatpush1.msra.mxu0 %v636
    %651 = vmatprep.subr.mxu0 0.0
    %652 = vmatpush1.msra.mxu0 %v635
    %653 = vmatprep.subr.mxu0 0.0
    %654 = vmatpush1.msra.mxu0 %v634
    %655 = vmatprep.subr.mxu0 0.0
    %656 = vmatpush1.msra.mxu0 %v633
    %657 = vmatprep.subr.mxu0 0.0
    %658 = vmatpush1.msra.mxu0 %v632
    %659 = vmatprep.subr.mxu0 0.0
    %660 = vmatpush1.msra.mxu0 %v631
    %661 = vmatprep.subr.mxu0 0.0
    %662 = vmatpush1.msra.mxu0 %v630
    %663 = vmatprep.subr.mxu0 0.0
    %664 = vmatpush1.msra.mxu0 %v629
    %665 = vmatprep.subr.mxu0 0.0
    %666 = vmatpush1.msra.mxu0 %v628
    %667 = vmatprep.subr.mxu0 0.0
    %668 = vmatpush1.msra.mxu0 %v627
    %669 = vmatprep.subr.mxu0 0.0
    %670 = vmatpush1.msra.mxu0 %v626
    %671 = vmatprep.subr.mxu0 0.0
    %672 = vmatpush1.msra.mxu0 %v625
    %673 = vmatprep.subr.mxu0 0.0
    %674 = vmatpush2.msra.mxu0 0.0
    %675 = vmatprep.subr.mxu0 0.0
    %676 = vmatpush2.msra.mxu0 0.0
    %677 = vmatprep.subr.mxu0 0.0
    %678 = vmatpush2.msra.mxu0 0.0
    %679 = vmatprep.subr.mxu0 0.0
    %680 = vmatpush2.msra.mxu0 0.0
    %681 = vmatprep.subr.mxu0 0.0
    %682 = vmatpush2.msra.mxu0 0.0
    %683 = vmatprep.subr.mxu0 0.0
    %684 = vmatpush2.msra.mxu0 0.0
    %685 = vmatprep.subr.mxu0 0.0
    %686 = vmatpush2.msra.mxu0 0.0
    %687 = vmatprep.subr.mxu0 0.0
    %688 = vmatpush2.msra.mxu0 0.0
    %689 = vmatprep.subr.mxu0 0.0
    %690 = vmatpush2.msra.mxu0 0.0
    %691 = vmatprep.subr.mxu0 0.0
    %692 = vmatpush2.msra.mxu0 0.0
    %693 = vmatprep.subr.mxu0 0.0
    %694 = vmatpush2.msra.mxu0 0.0
    %695 = vmatprep.subr.mxu0 0.0
    %696 = vmatpush2.msra.mxu0 0.0
    %697 = vmatprep.subr.mxu0 0.0
    %698 = vmatpush2.msra.mxu0 0.0
    %699 = vmatprep.subr.mxu0 0.0
    %700 = vmatpush2.msra.mxu0 0.0
    %701 = vmatprep.subr.mxu0 0.0
    %702 = vmatpush2.msra.mxu0 0.0
    %703 = vmatprep.subr.mxu0 0.0
    %704 = vmatpush2.msra.mxu0 0.0
    %705 = vmatprep.mubr.f32.mxu0 0.0
    %706 = vmatmul.mubr.f32.gmra.mxu0 %v621
    %v707 = vpop.f32.mrf.mxu0
    %v708 = vadd.f32 0.0, %v707
    %v709 = vpop.f32.mrf.mxu0
    %710 = vdwg.mxu0
    %v711 = vadd.f32 %v550, %v708
    %s712 = scalar_lea.vmem %s0, 64
    %v713 = vld [vmem:[%s712] sm:$0xff]
    %v714 = vld [vmem:[%s712 + $0x8] sm:$0xff]
    %715 = vmatprep.subr.mxu0 0.0
    %716 = vmatpush1.msra.mxu0 %v50
    %717 = vmatprep.subr.mxu0 0.0
    %718 = vmatpush1.msra.mxu0 %v49
    %719 = vmatprep.subr.mxu0 0.0
    %720 = vmatpush1.msra.mxu0 %v48
    %721 = vmatprep.subr.mxu0 0.0
    %722 = vmatpush1.msra.mxu0 %v47
    %723 = vmatprep.subr.mxu0 0.0
    %724 = vmatpush1.msra.mxu0 %v46
    %725 = vmatprep.subr.mxu0 0.0
    %726 = vmatpush1.msra.mxu0 %v45
    %727 = vmatprep.subr.mxu0 0.0
    %728 = vmatpush1.msra.mxu0 %v44
    %729 = vmatprep.subr.mxu0 0.0
    %730 = vmatpush1.msra.mxu0 %v43
    %731 = vmatprep.subr.mxu0 0.0
    %732 = vmatpush1.msra.mxu0 %v42
    %733 = vmatprep.subr.mxu0 0.0
    %734 = vmatpush1.msra.mxu0 %v41
    %735 = vmatprep.subr.mxu0 0.0
    %736 = vmatpush1.msra.mxu0 %v40
    %737 = vmatprep.subr.mxu0 0.0
    %738 = vmatpush1.msra.mxu0 %v39
    %739 = vmatprep.subr.mxu0 0.0
    %740 = vmatpush1.msra.mxu0 %v38
    %741 = vmatprep.subr.mxu0 0.0
    %742 = vmatpush1.msra.mxu0 %v37
    %743 = vmatprep.subr.mxu0 0.0
    %744 = vmatpush1.msra.mxu0 %v36
    %745 = vmatprep.subr.mxu0 0.0
    %746 = vmatpush1.msra.mxu0 %v35
    %747 = vmatprep.subr.mxu0 0.0
    %748 = vmatpush2.msra.mxu0 %v66
    %749 = vmatprep.subr.mxu0 0.0
    %750 = vmatpush2.msra.mxu0 %v65
    %751 = vmatprep.subr.mxu0 0.0
    %752 = vmatpush2.msra.mxu0 %v64
    %753 = vmatprep.subr.mxu0 0.0
    %754 = vmatpush2.msra.mxu0 %v63
    %755 = vmatprep.subr.mxu0 0.0
    %756 = vmatpush2.msra.mxu0 %v62
    %757 = vmatprep.subr.mxu0 0.0
    %758 = vmatpush2.msra.mxu0 %v61
    %759 = vmatprep.subr.mxu0 0.0
    %760 = vmatpush2.msra.mxu0 %v60
    %761 = vmatprep.subr.mxu0 0.0
    %762 = vmatpush2.msra.mxu0 %v59
    %763 = vmatprep.subr.mxu0 0.0
    %764 = vmatpush2.msra.mxu0 %v58
    %765 = vmatprep.subr.mxu0 0.0
    %766 = vmatpush2.msra.mxu0 %v57
    %767 = vmatprep.subr.mxu0 0.0
    %768 = vmatpush2.msra.mxu0 %v56
    %769 = vmatprep.subr.mxu0 0.0
    %770 = vmatpush2.msra.mxu0 %v55
    %771 = vmatprep.subr.mxu0 0.0
    %772 = vmatpush2.msra.mxu0 %v54
    %773 = vmatprep.subr.mxu0 0.0
    %774 = vmatpush2.msra.mxu0 %v53
    %775 = vmatprep.subr.mxu0 0.0
    %776 = vmatpush2.msra.mxu0 %v52
    %777 = vmatprep.subr.mxu0 0.0
    %778 = vmatpush2.msra.mxu0 %v51
    %779 = vmatprep.mubr.f32.mxu0 %v714
    %780 = vmatmul.mubr.f32.gmra.mxu0 %v713
    %v781 = vpop.f32.mrf.mxu0
    %v782 = vadd.f32 %v72, %v781
    %v783 = vpop.f32.mrf.mxu0
    %784 = vdwg.mxu0
    %s785 = scalar_lea.vmem %s3, 512
    %v786 = vld [vmem:[%s785] sm:$0xff]
    %v787 = vld [vmem:[%s785 + $0x8] sm:$0xff]
    %v788 = vld [vmem:[%s785 + $0x10] sm:$0xff]
    %v789 = vld [vmem:[%s785 + $0x18] sm:$0xff]
    %v790 = vld [vmem:[%s785 + $0x20] sm:$0xff]
    %v791 = vld [vmem:[%s785 + $0x28] sm:$0xff]
    %v792 = vld [vmem:[%s785 + $0x30] sm:$0xff]
    %v793 = vld [vmem:[%s785 + $0x38] sm:$0xff]
    %v794 = vld [vmem:[%s785 + $0x40] sm:$0xff]
    %v795 = vld [vmem:[%s785 + $0x48] sm:$0xff]
    %v796 = vld [vmem:[%s785 + $0x50] sm:$0xff]
    %v797 = vld [vmem:[%s785 + $0x58] sm:$0xff]
    %v798 = vld [vmem:[%s785 + $0x60] sm:$0xff]
    %v799 = vld [vmem:[%s785 + $0x68] sm:$0xff]
    %v800 = vld [vmem:[%s785 + $0x70] sm:$0xff]
    %v801 = vld [vmem:[%s785 + $0x78] sm:$0xff]
    %802 = vmatprep.subr.mxu0 0.0
    %803 = vmatpush1.msra.mxu0 %v801
    %804 = vmatprep.subr.mxu0 0.0
    %805 = vmatpush1.msra.mxu0 %v800
    %806 = vmatprep.subr.mxu0 0.0
    %807 = vmatpush1.msra.mxu0 %v799
    %808 = vmatprep.subr.mxu0 0.0
    %809 = vmatpush1.msra.mxu0 %v798
    %810 = vmatprep.subr.mxu0 0.0
    %811 = vmatpush1.msra.mxu0 %v797
    %812 = vmatprep.subr.mxu0 0.0
    %813 = vmatpush1.msra.mxu0 %v796
    %814 = vmatprep.subr.mxu0 0.0
    %815 = vmatpush1.msra.mxu0 %v795
    %816 = vmatprep.subr.mxu0 0.0
    %817 = vmatpush1.msra.mxu0 %v794
    %818 = vmatprep.subr.mxu0 0.0
    %819 = vmatpush1.msra.mxu0 %v793
    %820 = vmatprep.subr.mxu0 0.0
    %821 = vmatpush1.msra.mxu0 %v792
    %822 = vmatprep.subr.mxu0 0.0
    %823 = vmatpush1.msra.mxu0 %v791
    %824 = vmatprep.subr.mxu0 0.0
    %825 = vmatpush1.msra.mxu0 %v790
    %826 = vmatprep.subr.mxu0 0.0
    %827 = vmatpush1.msra.mxu0 %v789
    %828 = vmatprep.subr.mxu0 0.0
    %829 = vmatpush1.msra.mxu0 %v788
    %830 = vmatprep.subr.mxu0 0.0
    %831 = vmatpush1.msra.mxu0 %v787
    %832 = vmatprep.subr.mxu0 0.0
    %833 = vmatpush1.msra.mxu0 %v786
    %834 = vmatprep.subr.mxu0 0.0
    %835 = vmatpush2.msra.mxu0 0.0
    %836 = vmatprep.subr.mxu0 0.0
    %837 = vmatpush2.msra.mxu0 0.0
    %838 = vmatprep.subr.mxu0 0.0
    %839 = vmatpush2.msra.mxu0 0.0
    %840 = vmatprep.subr.mxu0 0.0
    %841 = vmatpush2.msra.mxu0 0.0
    %842 = vmatprep.subr.mxu0 0.0
    %843 = vmatpush2.msra.mxu0 0.0
    %844 = vmatprep.subr.mxu0 0.0
    %845 = vmatpush2.msra.mxu0 0.0
    %846 = vmatprep.subr.mxu0 0.0
    %847 = vmatpush2.msra.mxu0 0.0
    %848 = vmatprep.subr.mxu0 0.0
    %849 = vmatpush2.msra.mxu0 0.0
    %850 = vmatprep.subr.mxu0 0.0
    %851 = vmatpush2.msra.mxu0 0.0
    %852 = vmatprep.subr.mxu0 0.0
    %853 = vmatpush2.msra.mxu0 0.0
    %854 = vmatprep.subr.mxu0 0.0
    %855 = vmatpush2.msra.mxu0 0.0
    %856 = vmatprep.subr.mxu0 0.0
    %857 = vmatpush2.msra.mxu0 0.0
    %858 = vmatprep.subr.mxu0 0.0
    %859 = vmatpush2.msra.mxu0 0.0
    %860 = vmatprep.subr.mxu0 0.0
    %861 = vmatpush2.msra.mxu0 0.0
    %862 = vmatprep.subr.mxu0 0.0
    %863 = vmatpush2.msra.mxu0 0.0
    %864 = vmatprep.subr.mxu0 0.0
    %865 = vmatpush2.msra.mxu0 0.0
    %866 = vmatprep.mubr.f32.mxu0 0.0
    %867 = vmatmul.mubr.f32.gmra.mxu0 %v782
    %v868 = vpop.f32.mrf.mxu0
    %v869 = vadd.f32 0.0, %v868
    %v870 = vpop.f32.mrf.mxu0
    %871 = vdwg.mxu0
    %v872 = vadd.f32 %v711, %v869
    %s873 = scalar_lea.vmem %s0, 80
    %v874 = vld [vmem:[%s873] sm:$0xff]
    %v875 = vld [vmem:[%s873 + $0x8] sm:$0xff]
    %876 = vmatprep.subr.mxu0 0.0
    %877 = vmatpush1.msra.mxu0 %v50
    %878 = vmatprep.subr.mxu0 0.0
    %879 = vmatpush1.msra.mxu0 %v49
    %880 = vmatprep.subr.mxu0 0.0
    %881 = vmatpush1.msra.mxu0 %v48
    %882 = vmatprep.subr.mxu0 0.0
    %883 = vmatpush1.msra.mxu0 %v47
    %884 = vmatprep.subr.mxu0 0.0
    %885 = vmatpush1.msra.mxu0 %v46
    %886 = vmatprep.subr.mxu0 0.0
    %887 = vmatpush1.msra.mxu0 %v45
    %888 = vmatprep.subr.mxu0 0.0
    %889 = vmatpush1.msra.mxu0 %v44
    %890 = vmatprep.subr.mxu0 0.0
    %891 = vmatpush1.msra.mxu0 %v43
    %892 = vmatprep.subr.mxu0 0.0
    %893 = vmatpush1.msra.mxu0 %v42
    %894 = vmatprep.subr.mxu0 0.0
    %895 = vmatpush1.msra.mxu0 %v41
    %896 = vmatprep.subr.mxu0 0.0
    %897 = vmatpush1.msra.mxu0 %v40
    %898 = vmatprep.subr.mxu0 0.0
    %899 = vmatpush1.msra.mxu0 %v39
    %900 = vmatprep.subr.mxu0 0.0
    %901 = vmatpush1.msra.mxu0 %v38
    %902 = vmatprep.subr.mxu0 0.0
    %903 = vmatpush1.msra.mxu0 %v37
    %904 = vmatprep.subr.mxu0 0.0
    %905 = vmatpush1.msra.mxu0 %v36
    %906 = vmatprep.subr.mxu0 0.0
    %907 = vmatpush1.msra.mxu0 %v35
    %908 = vmatprep.subr.mxu0 0.0
    %909 = vmatpush2.msra.mxu0 %v66
    %910 = vmatprep.subr.mxu0 0.0
    %911 = vmatpush2.msra.mxu0 %v65
    %912 = vmatprep.subr.mxu0 0.0
    %913 = vmatpush2.msra.mxu0 %v64
    %914 = vmatprep.subr.mxu0 0.0
    %915 = vmatpush2.msra.mxu0 %v63
    %916 = vmatprep.subr.mxu0 0.0
    %917 = vmatpush2.msra.mxu0 %v62
    %918 = vmatprep.subr.mxu0 0.0
    %919 = vmatpush2.msra.mxu0 %v61
    %920 = vmatprep.subr.mxu0 0.0
    %921 = vmatpush2.msra.mxu0 %v60
    %922 = vmatprep.subr.mxu0 0.0
    %923 = vmatpush2.msra.mxu0 %v59
    %924 = vmatprep.subr.mxu0 0.0
    %925 = vmatpush2.msra.mxu0 %v58
    %926 = vmatprep.subr.mxu0 0.0
    %927 = vmatpush2.msra.mxu0 %v57
    %928 = vmatprep.subr.mxu0 0.0
    %929 = vmatpush2.msra.mxu0 %v56
    %930 = vmatprep.subr.mxu0 0.0
    %931 = vmatpush2.msra.mxu0 %v55
    %932 = vmatprep.subr.mxu0 0.0
    %933 = vmatpush2.msra.mxu0 %v54
    %934 = vmatprep.subr.mxu0 0.0
    %935 = vmatpush2.msra.mxu0 %v53
    %936 = vmatprep.subr.mxu0 0.0
    %937 = vmatpush2.msra.mxu0 %v52
    %938 = vmatprep.subr.mxu0 0.0
    %939 = vmatpush2.msra.mxu0 %v51
    %940 = vmatprep.mubr.f32.mxu0 %v875
    %941 = vmatmul.mubr.f32.gmra.mxu0 %v874
    %v942 = vpop.f32.mrf.mxu0
    %v943 = vadd.f32 %v72, %v942
    %v944 = vpop.f32.mrf.mxu0
    %945 = vdwg.mxu0
    %s946 = scalar_lea.vmem %s3, 640
    %v947 = vld [vmem:[%s946] sm:$0xff]
    %v948 = vld [vmem:[%s946 + $0x8] sm:$0xff]
    %v949 = vld [vmem:[%s946 + $0x10] sm:$0xff]
    %v950 = vld [vmem:[%s946 + $0x18] sm:$0xff]
    %v951 = vld [vmem:[%s946 + $0x20] sm:$0xff]
    %v952 = vld [vmem:[%s946 + $0x28] sm:$0xff]
    %v953 = vld [vmem:[%s946 + $0x30] sm:$0xff]
    %v954 = vld [vmem:[%s946 + $0x38] sm:$0xff]
    %v955 = vld [vmem:[%s946 + $0x40] sm:$0xff]
    %v956 = vld [vmem:[%s946 + $0x48] sm:$0xff]
    %v957 = vld [vmem:[%s946 + $0x50] sm:$0xff]
    %v958 = vld [vmem:[%s946 + $0x58] sm:$0xff]
    %v959 = vld [vmem:[%s946 + $0x60] sm:$0xff]
    %v960 = vld [vmem:[%s946 + $0x68] sm:$0xff]
    %v961 = vld [vmem:[%s946 + $0x70] sm:$0xff]
    %v962 = vld [vmem:[%s946 + $0x78] sm:$0xff]
    %963 = vmatprep.subr.mxu0 0.0
    %964 = vmatpush1.msra.mxu0 %v962
    %965 = vmatprep.subr.mxu0 0.0
    %966 = vmatpush1.msra.mxu0 %v961
    %967 = vmatprep.subr.mxu0 0.0
    %968 = vmatpush1.msra.mxu0 %v960
    %969 = vmatprep.subr.mxu0 0.0
    %970 = vmatpush1.msra.mxu0 %v959
    %971 = vmatprep.subr.mxu0 0.0
    %972 = vmatpush1.msra.mxu0 %v958
    %973 = vmatprep.subr.mxu0 0.0
    %974 = vmatpush1.msra.mxu0 %v957
    %975 = vmatprep.subr.mxu0 0.0
    %976 = vmatpush1.msra.mxu0 %v956
    %977 = vmatprep.subr.mxu0 0.0
    %978 = vmatpush1.msra.mxu0 %v955
    %979 = vmatprep.subr.mxu0 0.0
    %980 = vmatpush1.msra.mxu0 %v954
    %981 = vmatprep.subr.mxu0 0.0
    %982 = vmatpush1.msra.mxu0 %v953
    %983 = vmatprep.subr.mxu0 0.0
    %984 = vmatpush1.msra.mxu0 %v952
    %985 = vmatprep.subr.mxu0 0.0
    %986 = vmatpush1.msra.mxu0 %v951
    %987 = vmatprep.subr.mxu0 0.0
    %988 = vmatpush1.msra.mxu0 %v950
    %989 = vmatprep.subr.mxu0 0.0
    %990 = vmatpush1.msra.mxu0 %v949
    %991 = vmatprep.subr.mxu0 0.0
    %992 = vmatpush1.msra.mxu0 %v948
    %993 = vmatprep.subr.mxu0 0.0
    %994 = vmatpush1.msra.mxu0 %v947
    %995 = vmatprep.subr.mxu0 0.0
    %996 = vmatpush2.msra.mxu0 0.0
    %997 = vmatprep.subr.mxu0 0.0
    %998 = vmatpush2.msra.mxu0 0.0
    %999 = vmatprep.subr.mxu0 0.0
    %1000 = vmatpush2.msra.mxu0 0.0
    %1001 = vmatprep.subr.mxu0 0.0
    %1002 = vmatpush2.msra.mxu0 0.0
    %1003 = vmatprep.subr.mxu0 0.0
    %1004 = vmatpush2.msra.mxu0 0.0
    %1005 = vmatprep.subr.mxu0 0.0
    %1006 = vmatpush2.msra.mxu0 0.0
    %1007 = vmatprep.subr.mxu0 0.0
    %1008 = vmatpush2.msra.mxu0 0.0
    %1009 = vmatprep.subr.mxu0 0.0
    %1010 = vmatpush2.msra.mxu0 0.0
    %1011 = vmatprep.subr.mxu0 0.0
    %1012 = vmatpush2.msra.mxu0 0.0
    %1013 = vmatprep.subr.mxu0 0.0
    %1014 = vmatpush2.msra.mxu0 0.0
    %1015 = vmatprep.subr.mxu0 0.0
    %1016 = vmatpush2.msra.mxu0 0.0
    %1017 = vmatprep.subr.mxu0 0.0
    %1018 = vmatpush2.msra.mxu0 0.0
    %1019 = vmatprep.subr.mxu0 0.0
    %1020 = vmatpush2.msra.mxu0 0.0
    %1021 = vmatprep.subr.mxu0 0.0
    %1022 = vmatpush2.msra.mxu0 0.0
    %1023 = vmatprep.subr.mxu0 0.0
    %1024 = vmatpush2.msra.mxu0 0.0
    %1025 = vmatprep.subr.mxu0 0.0
    %1026 = vmatpush2.msra.mxu0 0.0
    %1027 = vmatprep.mubr.f32.mxu0 0.0
    %1028 = vmatmul.mubr.f32.gmra.mxu0 %v943
    %v1029 = vpop.f32.mrf.mxu0
    %v1030 = vadd.f32 0.0, %v1029
    %v1031 = vpop.f32.mrf.mxu0
    %1032 = vdwg.mxu0
    %v1033 = vadd.f32 %v872, %v1030
    %s1034 = scalar_lea.vmem %s0, 96
    %v1035 = vld [vmem:[%s1034] sm:$0xff]
    %v1036 = vld [vmem:[%s1034 + $0x8] sm:$0xff]
    %1037 = vmatprep.subr.mxu0 0.0
    %1038 = vmatpush1.msra.mxu0 %v50
    %1039 = vmatprep.subr.mxu0 0.0
    %1040 = vmatpush1.msra.mxu0 %v49
    %1041 = vmatprep.subr.mxu0 0.0
    %1042 = vmatpush1.msra.mxu0 %v48
    %1043 = vmatprep.subr.mxu0 0.0
    %1044 = vmatpush1.msra.mxu0 %v47
    %1045 = vmatprep.subr.mxu0 0.0
    %1046 = vmatpush1.msra.mxu0 %v46
    %1047 = vmatprep.subr.mxu0 0.0
    %1048 = vmatpush1.msra.mxu0 %v45
    %1049 = vmatprep.subr.mxu0 0.0
    %1050 = vmatpush1.msra.mxu0 %v44
    %1051 = vmatprep.subr.mxu0 0.0
    %1052 = vmatpush1.msra.mxu0 %v43
    %1053 = vmatprep.subr.mxu0 0.0
    %1054 = vmatpush1.msra.mxu0 %v42
    %1055 = vmatprep.subr.mxu0 0.0
    %1056 = vmatpush1.msra.mxu0 %v41
    %1057 = vmatprep.subr.mxu0 0.0
    %1058 = vmatpush1.msra.mxu0 %v40
    %1059 = vmatprep.subr.mxu0 0.0
    %1060 = vmatpush1.msra.mxu0 %v39
    %1061 = vmatprep.subr.mxu0 0.0
    %1062 = vmatpush1.msra.mxu0 %v38
    %1063 = vmatprep.subr.mxu0 0.0
    %1064 = vmatpush1.msra.mxu0 %v37
    %1065 = vmatprep.subr.mxu0 0.0
    %1066 = vmatpush1.msra.mxu0 %v36
    %1067 = vmatprep.subr.mxu0 0.0
    %1068 = vmatpush1.msra.mxu0 %v35
    %1069 = vmatprep.subr.mxu0 0.0
    %1070 = vmatpush2.msra.mxu0 %v66
    %1071 = vmatprep.subr.mxu0 0.0
    %1072 = vmatpush2.msra.mxu0 %v65
    %1073 = vmatprep.subr.mxu0 0.0
    %1074 = vmatpush2.msra.mxu0 %v64
    %1075 = vmatprep.subr.mxu0 0.0
    %1076 = vmatpush2.msra.mxu0 %v63
    %1077 = vmatprep.subr.mxu0 0.0
    %1078 = vmatpush2.msra.mxu0 %v62
    %1079 = vmatprep.subr.mxu0 0.0
    %1080 = vmatpush2.msra.mxu0 %v61
    %1081 = vmatprep.subr.mxu0 0.0
    %1082 = vmatpush2.msra.mxu0 %v60
    %1083 = vmatprep.subr.mxu0 0.0
    %1084 = vmatpush2.msra.mxu0 %v59
    %1085 = vmatprep.subr.mxu0 0.0
    %1086 = vmatpush2.msra.mxu0 %v58
    %1087 = vmatprep.subr.mxu0 0.0
    %1088 = vmatpush2.msra.mxu0 %v57
    %1089 = vmatprep.subr.mxu0 0.0
    %1090 = vmatpush2.msra.mxu0 %v56
    %1091 = vmatprep.subr.mxu0 0.0
    %1092 = vmatpush2.msra.mxu0 %v55
    %1093 = vmatprep.subr.mxu0 0.0
    %1094 = vmatpush2.msra.mxu0 %v54
    %1095 = vmatprep.subr.mxu0 0.0
    %1096 = vmatpush2.msra.mxu0 %v53
    %1097 = vmatprep.subr.mxu0 0.0
    %1098 = vmatpush2.msra.mxu0 %v52
    %1099 = vmatprep.subr.mxu0 0.0
    %1100 = vmatpush2.msra.mxu0 %v51
    %1101 = vmatprep.mubr.f32.mxu0 %v1036
    %1102 = vmatmul.mubr.f32.gmra.mxu0 %v1035
    %v1103 = vpop.f32.mrf.mxu0
    %v1104 = vadd.f32 %v72, %v1103
    %v1105 = vpop.f32.mrf.mxu0
    %1106 = vdwg.mxu0
    %s1107 = scalar_lea.vmem %s3, 768
    %v1108 = vld [vmem:[%s1107] sm:$0xff]
    %v1109 = vld [vmem:[%s1107 + $0x8] sm:$0xff]
    %v1110 = vld [vmem:[%s1107 + $0x10] sm:$0xff]
    %v1111 = vld [vmem:[%s1107 + $0x18] sm:$0xff]
    %v1112 = vld [vmem:[%s1107 + $0x20] sm:$0xff]
    %v1113 = vld [vmem:[%s1107 + $0x28] sm:$0xff]
    %v1114 = vld [vmem:[%s1107 + $0x30] sm:$0xff]
    %v1115 = vld [vmem:[%s1107 + $0x38] sm:$0xff]
    %v1116 = vld [vmem:[%s1107 + $0x40] sm:$0xff]
    %v1117 = vld [vmem:[%s1107 + $0x48] sm:$0xff]
    %v1118 = vld [vmem:[%s1107 + $0x50] sm:$0xff]
    %v1119 = vld [vmem:[%s1107 + $0x58] sm:$0xff]
    %v1120 = vld [vmem:[%s1107 + $0x60] sm:$0xff]
    %v1121 = vld [vmem:[%s1107 + $0x68] sm:$0xff]
    %v1122 = vld [vmem:[%s1107 + $0x70] sm:$0xff]
    %v1123 = vld [vmem:[%s1107 + $0x78] sm:$0xff]
    %1124 = vmatprep.subr.mxu0 0.0
    %1125 = vmatpush1.msra.mxu0 %v1123
    %1126 = vmatprep.subr.mxu0 0.0
    %1127 = vmatpush1.msra.mxu0 %v1122
    %1128 = vmatprep.subr.mxu0 0.0
    %1129 = vmatpush1.msra.mxu0 %v1121
    %1130 = vmatprep.subr.mxu0 0.0
    %1131 = vmatpush1.msra.mxu0 %v1120
    %1132 = vmatprep.subr.mxu0 0.0
    %1133 = vmatpush1.msra.mxu0 %v1119
    %1134 = vmatprep.subr.mxu0 0.0
    %1135 = vmatpush1.msra.mxu0 %v1118
    %1136 = vmatprep.subr.mxu0 0.0
    %1137 = vmatpush1.msra.mxu0 %v1117
    %1138 = vmatprep.subr.mxu0 0.0
    %1139 = vmatpush1.msra.mxu0 %v1116
    %1140 = vmatprep.subr.mxu0 0.0
    %1141 = vmatpush1.msra.mxu0 %v1115
    %1142 = vmatprep.subr.mxu0 0.0
    %1143 = vmatpush1.msra.mxu0 %v1114
    %1144 = vmatprep.subr.mxu0 0.0
    %1145 = vmatpush1.msra.mxu0 %v1113
    %1146 = vmatprep.subr.mxu0 0.0
    %1147 = vmatpush1.msra.mxu0 %v1112
    %1148 = vmatprep.subr.mxu0 0.0
    %1149 = vmatpush1.msra.mxu0 %v1111
    %1150 = vmatprep.subr.mxu0 0.0
    %1151 = vmatpush1.msra.mxu0 %v1110
    %1152 = vmatprep.subr.mxu0 0.0
    %1153 = vmatpush1.msra.mxu0 %v1109
    %1154 = vmatprep.subr.mxu0 0.0
    %1155 = vmatpush1.msra.mxu0 %v1108
    %1156 = vmatprep.subr.mxu0 0.0
    %1157 = vmatpush2.msra.mxu0 0.0
    %1158 = vmatprep.subr.mxu0 0.0
    %1159 = vmatpush2.msra.mxu0 0.0
    %1160 = vmatprep.subr.mxu0 0.0
    %1161 = vmatpush2.msra.mxu0 0.0
    %1162 = vmatprep.subr.mxu0 0.0
    %1163 = vmatpush2.msra.mxu0 0.0
    %1164 = vmatprep.subr.mxu0 0.0
    %1165 = vmatpush2.msra.mxu0 0.0
    %1166 = vmatprep.subr.mxu0 0.0
    %1167 = vmatpush2.msra.mxu0 0.0
    %1168 = vmatprep.subr.mxu0 0.0
    %1169 = vmatpush2.msra.mxu0 0.0
    %1170 = vmatprep.subr.mxu0 0.0
    %1171 = vmatpush2.msra.mxu0 0.0
    %1172 = vmatprep.subr.mxu0 0.0
    %1173 = vmatpush2.msra.mxu0 0.0
    %1174 = vmatprep.subr.mxu0 0.0
    %1175 = vmatpush2.msra.mxu0 0.0
    %1176 = vmatprep.subr.mxu0 0.0
    %1177 = vmatpush2.msra.mxu0 0.0
    %1178 = vmatprep.subr.mxu0 0.0
    %1179 = vmatpush2.msra.mxu0 0.0
    %1180 = vmatprep.subr.mxu0 0.0
    %1181 = vmatpush2.msra.mxu0 0.0
    %1182 = vmatprep.subr.mxu0 0.0
    %1183 = vmatpush2.msra.mxu0 0.0
    %1184 = vmatprep.subr.mxu0 0.0
    %1185 = vmatpush2.msra.mxu0 0.0
    %1186 = vmatprep.subr.mxu0 0.0
    %1187 = vmatpush2.msra.mxu0 0.0
    %1188 = vmatprep.mubr.f32.mxu0 0.0
    %1189 = vmatmul.mubr.f32.gmra.mxu0 %v1104
    %v1190 = vpop.f32.mrf.mxu0
    %v1191 = vadd.f32 0.0, %v1190
    %v1192 = vpop.f32.mrf.mxu0
    %1193 = vdwg.mxu0
    %v1194 = vadd.f32 %v1033, %v1191
    %s1195 = scalar_lea.vmem %s0, 112
    %v1196 = vld [vmem:[%s1195] sm:$0xff]
    %v1197 = vld [vmem:[%s1195 + $0x8] sm:$0xff]
    %1198 = vmatprep.subr.mxu0 0.0
    %1199 = vmatpush1.msra.mxu0 %v50
    %1200 = vmatprep.subr.mxu0 0.0
    %1201 = vmatpush1.msra.mxu0 %v49
    %1202 = vmatprep.subr.mxu0 0.0
    %1203 = vmatpush1.msra.mxu0 %v48
    %1204 = vmatprep.subr.mxu0 0.0
    %1205 = vmatpush1.msra.mxu0 %v47
    %1206 = vmatprep.subr.mxu0 0.0
    %1207 = vmatpush1.msra.mxu0 %v46
    %1208 = vmatprep.subr.mxu0 0.0
    %1209 = vmatpush1.msra.mxu0 %v45
    %1210 = vmatprep.subr.mxu0 0.0
    %1211 = vmatpush1.msra.mxu0 %v44
    %1212 = vmatprep.subr.mxu0 0.0
    %1213 = vmatpush1.msra.mxu0 %v43
    %1214 = vmatprep.subr.mxu0 0.0
    %1215 = vmatpush1.msra.mxu0 %v42
    %1216 = vmatprep.subr.mxu0 0.0
    %1217 = vmatpush1.msra.mxu0 %v41
    %1218 = vmatprep.subr.mxu0 0.0
    %1219 = vmatpush1.msra.mxu0 %v40
    %1220 = vmatprep.subr.mxu0 0.0
    %1221 = vmatpush1.msra.mxu0 %v39
    %1222 = vmatprep.subr.mxu0 0.0
    %1223 = vmatpush1.msra.mxu0 %v38
    %1224 = vmatprep.subr.mxu0 0.0
    %1225 = vmatpush1.msra.mxu0 %v37
    %1226 = vmatprep.subr.mxu0 0.0
    %1227 = vmatpush1.msra.mxu0 %v36
    %1228 = vmatprep.subr.mxu0 0.0
    %1229 = vmatpush1.msra.mxu0 %v35
    %1230 = vmatprep.subr.mxu0 0.0
    %1231 = vmatpush2.msra.mxu0 %v66
    %1232 = vmatprep.subr.mxu0 0.0
    %1233 = vmatpush2.msra.mxu0 %v65
    %1234 = vmatprep.subr.mxu0 0.0
    %1235 = vmatpush2.msra.mxu0 %v64
    %1236 = vmatprep.subr.mxu0 0.0
    %1237 = vmatpush2.msra.mxu0 %v63
    %1238 = vmatprep.subr.mxu0 0.0
    %1239 = vmatpush2.msra.mxu0 %v62
    %1240 = vmatprep.subr.mxu0 0.0
    %1241 = vmatpush2.msra.mxu0 %v61
    %1242 = vmatprep.subr.mxu0 0.0
    %1243 = vmatpush2.msra.mxu0 %v60
    %1244 = vmatprep.subr.mxu0 0.0
    %1245 = vmatpush2.msra.mxu0 %v59
    %1246 = vmatprep.subr.mxu0 0.0
    %1247 = vmatpush2.msra.mxu0 %v58
    %1248 = vmatprep.subr.mxu0 0.0
    %1249 = vmatpush2.msra.mxu0 %v57
    %1250 = vmatprep.subr.mxu0 0.0
    %1251 = vmatpush2.msra.mxu0 %v56
    %1252 = vmatprep.subr.mxu0 0.0
    %1253 = vmatpush2.msra.mxu0 %v55
    %1254 = vmatprep.subr.mxu0 0.0
    %1255 = vmatpush2.msra.mxu0 %v54
    %1256 = vmatprep.subr.mxu0 0.0
    %1257 = vmatpush2.msra.mxu0 %v53
    %1258 = vmatprep.subr.mxu0 0.0
    %1259 = vmatpush2.msra.mxu0 %v52
    %1260 = vmatprep.subr.mxu0 0.0
    %1261 = vmatpush2.msra.mxu0 %v51
    %1262 = vmatprep.mubr.f32.mxu0 %v1197
    %1263 = vmatmul.mubr.f32.gmra.mxu0 %v1196
    %v1264 = vpop.f32.mrf.mxu0
    %v1265 = vadd.f32 %v72, %v1264
    %v1266 = vpop.f32.mrf.mxu0
    %1267 = vdwg.mxu0
    %s1268 = scalar_lea.vmem %s3, 896
    %v1269 = vld [vmem:[%s1268] sm:$0xff]
    %v1270 = vld [vmem:[%s1268 + $0x8] sm:$0xff]
    %v1271 = vld [vmem:[%s1268 + $0x10] sm:$0xff]
    %v1272 = vld [vmem:[%s1268 + $0x18] sm:$0xff]
    %v1273 = vld [vmem:[%s1268 + $0x20] sm:$0xff]
    %v1274 = vld [vmem:[%s1268 + $0x28] sm:$0xff]
    %v1275 = vld [vmem:[%s1268 + $0x30] sm:$0xff]
    %v1276 = vld [vmem:[%s1268 + $0x38] sm:$0xff]
    %v1277 = vld [vmem:[%s1268 + $0x40] sm:$0xff]
    %v1278 = vld [vmem:[%s1268 + $0x48] sm:$0xff]
    %v1279 = vld [vmem:[%s1268 + $0x50] sm:$0xff]
    %v1280 = vld [vmem:[%s1268 + $0x58] sm:$0xff]
    %v1281 = vld [vmem:[%s1268 + $0x60] sm:$0xff]
    %v1282 = vld [vmem:[%s1268 + $0x68] sm:$0xff]
    %v1283 = vld [vmem:[%s1268 + $0x70] sm:$0xff]
    %v1284 = vld [vmem:[%s1268 + $0x78] sm:$0xff]
    %1285 = vmatprep.subr.mxu0 0.0
    %1286 = vmatpush1.msra.mxu0 %v1284
    %1287 = vmatprep.subr.mxu0 0.0
    %1288 = vmatpush1.msra.mxu0 %v1283
    %1289 = vmatprep.subr.mxu0 0.0
    %1290 = vmatpush1.msra.mxu0 %v1282
    %1291 = vmatprep.subr.mxu0 0.0
    %1292 = vmatpush1.msra.mxu0 %v1281
    %1293 = vmatprep.subr.mxu0 0.0
    %1294 = vmatpush1.msra.mxu0 %v1280
    %1295 = vmatprep.subr.mxu0 0.0
    %1296 = vmatpush1.msra.mxu0 %v1279
    %1297 = vmatprep.subr.mxu0 0.0
    %1298 = vmatpush1.msra.mxu0 %v1278
    %1299 = vmatprep.subr.mxu0 0.0
    %1300 = vmatpush1.msra.mxu0 %v1277
    %1301 = vmatprep.subr.mxu0 0.0
    %1302 = vmatpush1.msra.mxu0 %v1276
    %1303 = vmatprep.subr.mxu0 0.0
    %1304 = vmatpush1.msra.mxu0 %v1275
    %1305 = vmatprep.subr.mxu0 0.0
    %1306 = vmatpush1.msra.mxu0 %v1274
    %1307 = vmatprep.subr.mxu0 0.0
    %1308 = vmatpush1.msra.mxu0 %v1273
    %1309 = vmatprep.subr.mxu0 0.0
    %1310 = vmatpush1.msra.mxu0 %v1272
    %1311 = vmatprep.subr.mxu0 0.0
    %1312 = vmatpush1.msra.mxu0 %v1271
    %1313 = vmatprep.subr.mxu0 0.0
    %1314 = vmatpush1.msra.mxu0 %v1270
    %1315 = vmatprep.subr.mxu0 0.0
    %1316 = vmatpush1.msra.mxu0 %v1269
    %1317 = vmatprep.subr.mxu0 0.0
    %1318 = vmatpush2.msra.mxu0 0.0
    %1319 = vmatprep.subr.mxu0 0.0
    %1320 = vmatpush2.msra.mxu0 0.0
    %1321 = vmatprep.subr.mxu0 0.0
    %1322 = vmatpush2.msra.mxu0 0.0
    %1323 = vmatprep.subr.mxu0 0.0
    %1324 = vmatpush2.msra.mxu0 0.0
    %1325 = vmatprep.subr.mxu0 0.0
    %1326 = vmatpush2.msra.mxu0 0.0
    %1327 = vmatprep.subr.mxu0 0.0
    %1328 = vmatpush2.msra.mxu0 0.0
    %1329 = vmatprep.subr.mxu0 0.0
    %1330 = vmatpush2.msra.mxu0 0.0
    %1331 = vmatprep.subr.mxu0 0.0
    %1332 = vmatpush2.msra.mxu0 0.0
    %1333 = vmatprep.subr.mxu0 0.0
    %1334 = vmatpush2.msra.mxu0 0.0
    %1335 = vmatprep.subr.mxu0 0.0
    %1336 = vmatpush2.msra.mxu0 0.0
    %1337 = vmatprep.subr.mxu0 0.0
    %1338 = vmatpush2.msra.mxu0 0.0
    %1339 = vmatprep.subr.mxu0 0.0
    %1340 = vmatpush2.msra.mxu0 0.0
    %1341 = vmatprep.subr.mxu0 0.0
    %1342 = vmatpush2.msra.mxu0 0.0
    %1343 = vmatprep.subr.mxu0 0.0
    %1344 = vmatpush2.msra.mxu0 0.0
    %1345 = vmatprep.subr.mxu0 0.0
    %1346 = vmatpush2.msra.mxu0 0.0
    %1347 = vmatprep.subr.mxu0 0.0
    %1348 = vmatpush2.msra.mxu0 0.0
    %1349 = vmatprep.mubr.f32.mxu0 0.0
    %1350 = vmatmul.mubr.f32.gmra.mxu0 %v1265
    %v1351 = vpop.f32.mrf.mxu0
    %v1352 = vadd.f32 0.0, %v1351
    %v1353 = vpop.f32.mrf.mxu0
    %1354 = vdwg.mxu0
    %v1355 = vadd.f32 %v1194, %v1352
    %s1356 = scalar_lea.vmem %s0, 128
    %v1357 = vld [vmem:[%s1356] sm:$0xff]
    %v1358 = vld [vmem:[%s1356 + $0x8] sm:$0xff]
    %1359 = vmatprep.subr.mxu0 0.0
    %1360 = vmatpush1.msra.mxu0 %v50
    %1361 = vmatprep.subr.mxu0 0.0
    %1362 = vmatpush1.msra.mxu0 %v49
    %1363 = vmatprep.subr.mxu0 0.0
    %1364 = vmatpush1.msra.mxu0 %v48
    %1365 = vmatprep.subr.mxu0 0.0
    %1366 = vmatpush1.msra.mxu0 %v47
    %1367 = vmatprep.subr.mxu0 0.0
    %1368 = vmatpush1.msra.mxu0 %v46
    %1369 = vmatprep.subr.mxu0 0.0
    %1370 = vmatpush1.msra.mxu0 %v45
    %1371 = vmatprep.subr.mxu0 0.0
    %1372 = vmatpush1.msra.mxu0 %v44
    %1373 = vmatprep.subr.mxu0 0.0
    %1374 = vmatpush1.msra.mxu0 %v43
    %1375 = vmatprep.subr.mxu0 0.0
    %1376 = vmatpush1.msra.mxu0 %v42
    %1377 = vmatprep.subr.mxu0 0.0
    %1378 = vmatpush1.msra.mxu0 %v41
    %1379 = vmatprep.subr.mxu0 0.0
    %1380 = vmatpush1.msra.mxu0 %v40
    %1381 = vmatprep.subr.mxu0 0.0
    %1382 = vmatpush1.msra.mxu0 %v39
    %1383 = vmatprep.subr.mxu0 0.0
    %1384 = vmatpush1.msra.mxu0 %v38
    %1385 = vmatprep.subr.mxu0 0.0
    %1386 = vmatpush1.msra.mxu0 %v37
    %1387 = vmatprep.subr.mxu0 0.0
    %1388 = vmatpush1.msra.mxu0 %v36
    %1389 = vmatprep.subr.mxu0 0.0
    %1390 = vmatpush1.msra.mxu0 %v35
    %1391 = vmatprep.subr.mxu0 0.0
    %1392 = vmatpush2.msra.mxu0 %v66
    %1393 = vmatprep.subr.mxu0 0.0
    %1394 = vmatpush2.msra.mxu0 %v65
    %1395 = vmatprep.subr.mxu0 0.0
    %1396 = vmatpush2.msra.mxu0 %v64
    %1397 = vmatprep.subr.mxu0 0.0
    %1398 = vmatpush2.msra.mxu0 %v63
    %1399 = vmatprep.subr.mxu0 0.0
    %1400 = vmatpush2.msra.mxu0 %v62
    %1401 = vmatprep.subr.mxu0 0.0
    %1402 = vmatpush2.msra.mxu0 %v61
    %1403 = vmatprep.subr.mxu0 0.0
    %1404 = vmatpush2.msra.mxu0 %v60
    %1405 = vmatprep.subr.mxu0 0.0
    %1406 = vmatpush2.msra.mxu0 %v59
    %1407 = vmatprep.subr.mxu0 0.0
    %1408 = vmatpush2.msra.mxu0 %v58
    %1409 = vmatprep.subr.mxu0 0.0
    %1410 = vmatpush2.msra.mxu0 %v57
    %1411 = vmatprep.subr.mxu0 0.0
    %1412 = vmatpush2.msra.mxu0 %v56
    %1413 = vmatprep.subr.mxu0 0.0
    %1414 = vmatpush2.msra.mxu0 %v55
    %1415 = vmatprep.subr.mxu0 0.0
    %1416 = vmatpush2.msra.mxu0 %v54
    %1417 = vmatprep.subr.mxu0 0.0
    %1418 = vmatpush2.msra.mxu0 %v53
    %1419 = vmatprep.subr.mxu0 0.0
    %1420 = vmatpush2.msra.mxu0 %v52
    %1421 = vmatprep.subr.mxu0 0.0
    %1422 = vmatpush2.msra.mxu0 %v51
    %1423 = vmatprep.mubr.f32.mxu0 %v1358
    %1424 = vmatmul.mubr.f32.gmra.mxu0 %v1357
    %v1425 = vpop.f32.mrf.mxu0
    %v1426 = vadd.f32 %v72, %v1425
    %v1427 = vpop.f32.mrf.mxu0
    %1428 = vdwg.mxu0
    %s1429 = scalar_lea.vmem %s3, 1024
    %v1430 = vld [vmem:[%s1429] sm:$0xff]
    %v1431 = vld [vmem:[%s1429 + $0x8] sm:$0xff]
    %v1432 = vld [vmem:[%s1429 + $0x10] sm:$0xff]
    %v1433 = vld [vmem:[%s1429 + $0x18] sm:$0xff]
    %v1434 = vld [vmem:[%s1429 + $0x20] sm:$0xff]
    %v1435 = vld [vmem:[%s1429 + $0x28] sm:$0xff]
    %v1436 = vld [vmem:[%s1429 + $0x30] sm:$0xff]
    %v1437 = vld [vmem:[%s1429 + $0x38] sm:$0xff]
    %v1438 = vld [vmem:[%s1429 + $0x40] sm:$0xff]
    %v1439 = vld [vmem:[%s1429 + $0x48] sm:$0xff]
    %v1440 = vld [vmem:[%s1429 + $0x50] sm:$0xff]
    %v1441 = vld [vmem:[%s1429 + $0x58] sm:$0xff]
    %v1442 = vld [vmem:[%s1429 + $0x60] sm:$0xff]
    %v1443 = vld [vmem:[%s1429 + $0x68] sm:$0xff]
    %v1444 = vld [vmem:[%s1429 + $0x70] sm:$0xff]
    %v1445 = vld [vmem:[%s1429 + $0x78] sm:$0xff]
    %1446 = vmatprep.subr.mxu0 0.0
    %1447 = vmatpush1.msra.mxu0 %v1445
    %1448 = vmatprep.subr.mxu0 0.0
    %1449 = vmatpush1.msra.mxu0 %v1444
    %1450 = vmatprep.subr.mxu0 0.0
    %1451 = vmatpush1.msra.mxu0 %v1443
    %1452 = vmatprep.subr.mxu0 0.0
    %1453 = vmatpush1.msra.mxu0 %v1442
    %1454 = vmatprep.subr.mxu0 0.0
    %1455 = vmatpush1.msra.mxu0 %v1441
    %1456 = vmatprep.subr.mxu0 0.0
    %1457 = vmatpush1.msra.mxu0 %v1440
    %1458 = vmatprep.subr.mxu0 0.0
    %1459 = vmatpush1.msra.mxu0 %v1439
    %1460 = vmatprep.subr.mxu0 0.0
    %1461 = vmatpush1.msra.mxu0 %v1438
    %1462 = vmatprep.subr.mxu0 0.0
    %1463 = vmatpush1.msra.mxu0 %v1437
    %1464 = vmatprep.subr.mxu0 0.0
    %1465 = vmatpush1.msra.mxu0 %v1436
    %1466 = vmatprep.subr.mxu0 0.0
    %1467 = vmatpush1.msra.mxu0 %v1435
    %1468 = vmatprep.subr.mxu0 0.0
    %1469 = vmatpush1.msra.mxu0 %v1434
    %1470 = vmatprep.subr.mxu0 0.0
    %1471 = vmatpush1.msra.mxu0 %v1433
    %1472 = vmatprep.subr.mxu0 0.0
    %1473 = vmatpush1.msra.mxu0 %v1432
    %1474 = vmatprep.subr.mxu0 0.0
    %1475 = vmatpush1.msra.mxu0 %v1431
    %1476 = vmatprep.subr.mxu0 0.0
    %1477 = vmatpush1.msra.mxu0 %v1430
    %1478 = vmatprep.subr.mxu0 0.0
    %1479 = vmatpush2.msra.mxu0 0.0
    %1480 = vmatprep.subr.mxu0 0.0
    %1481 = vmatpush2.msra.mxu0 0.0
    %1482 = vmatprep.subr.mxu0 0.0
    %1483 = vmatpush2.msra.mxu0 0.0
    %1484 = vmatprep.subr.mxu0 0.0
    %1485 = vmatpush2.msra.mxu0 0.0
    %1486 = vmatprep.subr.mxu0 0.0
    %1487 = vmatpush2.msra.mxu0 0.0
    %1488 = vmatprep.subr.mxu0 0.0
    %1489 = vmatpush2.msra.mxu0 0.0
    %1490 = vmatprep.subr.mxu0 0.0
    %1491 = vmatpush2.msra.mxu0 0.0
    %1492 = vmatprep.subr.mxu0 0.0
    %1493 = vmatpush2.msra.mxu0 0.0
    %1494 = vmatprep.subr.mxu0 0.0
    %1495 = vmatpush2.msra.mxu0 0.0
    %1496 = vmatprep.subr.mxu0 0.0
    %1497 = vmatpush2.msra.mxu0 0.0
    %1498 = vmatprep.subr.mxu0 0.0
    %1499 = vmatpush2.msra.mxu0 0.0
    %1500 = vmatprep.subr.mxu0 0.0
    %1501 = vmatpush2.msra.mxu0 0.0
    %1502 = vmatprep.subr.mxu0 0.0
    %1503 = vmatpush2.msra.mxu0 0.0
    %1504 = vmatprep.subr.mxu0 0.0
    %1505 = vmatpush2.msra.mxu0 0.0
    %1506 = vmatprep.subr.mxu0 0.0
    %1507 = vmatpush2.msra.mxu0 0.0
    %1508 = vmatprep.subr.mxu0 0.0
    %1509 = vmatpush2.msra.mxu0 0.0
    %1510 = vmatprep.mubr.f32.mxu0 0.0
    %1511 = vmatmul.mubr.f32.gmra.mxu0 %v1426
    %v1512 = vpop.f32.mrf.mxu0
    %v1513 = vadd.f32 0.0, %v1512
    %v1514 = vpop.f32.mrf.mxu0
    %1515 = vdwg.mxu0
    %v1516 = vadd.f32 %v1355, %v1513
    %s1517 = scalar_lea.vmem %s0, 144
    %v1518 = vld [vmem:[%s1517] sm:$0xff]
    %v1519 = vld [vmem:[%s1517 + $0x8] sm:$0xff]
    %1520 = vmatprep.subr.mxu0 0.0
    %1521 = vmatpush1.msra.mxu0 %v50
    %1522 = vmatprep.subr.mxu0 0.0
    %1523 = vmatpush1.msra.mxu0 %v49
    %1524 = vmatprep.subr.mxu0 0.0
    %1525 = vmatpush1.msra.mxu0 %v48
    %1526 = vmatprep.subr.mxu0 0.0
    %1527 = vmatpush1.msra.mxu0 %v47
    %1528 = vmatprep.subr.mxu0 0.0
    %1529 = vmatpush1.msra.mxu0 %v46
    %1530 = vmatprep.subr.mxu0 0.0
    %1531 = vmatpush1.msra.mxu0 %v45
    %1532 = vmatprep.subr.mxu0 0.0
    %1533 = vmatpush1.msra.mxu0 %v44
    %1534 = vmatprep.subr.mxu0 0.0
    %1535 = vmatpush1.msra.mxu0 %v43
    %1536 = vmatprep.subr.mxu0 0.0
    %1537 = vmatpush1.msra.mxu0 %v42
    %1538 = vmatprep.subr.mxu0 0.0
    %1539 = vmatpush1.msra.mxu0 %v41
    %1540 = vmatprep.subr.mxu0 0.0
    %1541 = vmatpush1.msra.mxu0 %v40
    %1542 = vmatprep.subr.mxu0 0.0
    %1543 = vmatpush1.msra.mxu0 %v39
    %1544 = vmatprep.subr.mxu0 0.0
    %1545 = vmatpush1.msra.mxu0 %v38
    %1546 = vmatprep.subr.mxu0 0.0
    %1547 = vmatpush1.msra.mxu0 %v37
    %1548 = vmatprep.subr.mxu0 0.0
    %1549 = vmatpush1.msra.mxu0 %v36
    %1550 = vmatprep.subr.mxu0 0.0
    %1551 = vmatpush1.msra.mxu0 %v35
    %1552 = vmatprep.subr.mxu0 0.0
    %1553 = vmatpush2.msra.mxu0 %v66
    %1554 = vmatprep.subr.mxu0 0.0
    %1555 = vmatpush2.msra.mxu0 %v65
    %1556 = vmatprep.subr.mxu0 0.0
    %1557 = vmatpush2.msra.mxu0 %v64
    %1558 = vmatprep.subr.mxu0 0.0
    %1559 = vmatpush2.msra.mxu0 %v63
    %1560 = vmatprep.subr.mxu0 0.0
    %1561 = vmatpush2.msra.mxu0 %v62
    %1562 = vmatprep.subr.mxu0 0.0
    %1563 = vmatpush2.msra.mxu0 %v61
    %1564 = vmatprep.subr.mxu0 0.0
    %1565 = vmatpush2.msra.mxu0 %v60
    %1566 = vmatprep.subr.mxu0 0.0
    %1567 = vmatpush2.msra.mxu0 %v59
    %1568 = vmatprep.subr.mxu0 0.0
    %1569 = vmatpush2.msra.mxu0 %v58
    %1570 = vmatprep.subr.mxu0 0.0
    %1571 = vmatpush2.msra.mxu0 %v57
    %1572 = vmatprep.subr.mxu0 0.0
    %1573 = vmatpush2.msra.mxu0 %v56
    %1574 = vmatprep.subr.mxu0 0.0
    %1575 = vmatpush2.msra.mxu0 %v55
    %1576 = vmatprep.subr.mxu0 0.0
    %1577 = vmatpush2.msra.mxu0 %v54
    %1578 = vmatprep.subr.mxu0 0.0
    %1579 = vmatpush2.msra.mxu0 %v53
    %1580 = vmatprep.subr.mxu0 0.0
    %1581 = vmatpush2.msra.mxu0 %v52
    %1582 = vmatprep.subr.mxu0 0.0
    %1583 = vmatpush2.msra.mxu0 %v51
    %1584 = vmatprep.mubr.f32.mxu0 %v1519
    %1585 = vmatmul.mubr.f32.gmra.mxu0 %v1518
    %v1586 = vpop.f32.mrf.mxu0
    %v1587 = vadd.f32 %v72, %v1586
    %v1588 = vpop.f32.mrf.mxu0
    %1589 = vdwg.mxu0
    %s1590 = scalar_lea.vmem %s3, 1152
    %v1591 = vld [vmem:[%s1590] sm:$0xff]
    %v1592 = vld [vmem:[%s1590 + $0x8] sm:$0xff]
    %v1593 = vld [vmem:[%s1590 + $0x10] sm:$0xff]
    %v1594 = vld [vmem:[%s1590 + $0x18] sm:$0xff]
    %v1595 = vld [vmem:[%s1590 + $0x20] sm:$0xff]
    %v1596 = vld [vmem:[%s1590 + $0x28] sm:$0xff]
    %v1597 = vld [vmem:[%s1590 + $0x30] sm:$0xff]
    %v1598 = vld [vmem:[%s1590 + $0x38] sm:$0xff]
    %v1599 = vld [vmem:[%s1590 + $0x40] sm:$0xff]
    %v1600 = vld [vmem:[%s1590 + $0x48] sm:$0xff]
    %v1601 = vld [vmem:[%s1590 + $0x50] sm:$0xff]
    %v1602 = vld [vmem:[%s1590 + $0x58] sm:$0xff]
    %v1603 = vld [vmem:[%s1590 + $0x60] sm:$0xff]
    %v1604 = vld [vmem:[%s1590 + $0x68] sm:$0xff]
    %v1605 = vld [vmem:[%s1590 + $0x70] sm:$0xff]
    %v1606 = vld [vmem:[%s1590 + $0x78] sm:$0xff]
    %1607 = vmatprep.subr.mxu0 0.0
    %1608 = vmatpush1.msra.mxu0 %v1606
    %1609 = vmatprep.subr.mxu0 0.0
    %1610 = vmatpush1.msra.mxu0 %v1605
    %1611 = vmatprep.subr.mxu0 0.0
    %1612 = vmatpush1.msra.mxu0 %v1604
    %1613 = vmatprep.subr.mxu0 0.0
    %1614 = vmatpush1.msra.mxu0 %v1603
    %1615 = vmatprep.subr.mxu0 0.0
    %1616 = vmatpush1.msra.mxu0 %v1602
    %1617 = vmatprep.subr.mxu0 0.0
    %1618 = vmatpush1.msra.mxu0 %v1601
    %1619 = vmatprep.subr.mxu0 0.0
    %1620 = vmatpush1.msra.mxu0 %v1600
    %1621 = vmatprep.subr.mxu0 0.0
    %1622 = vmatpush1.msra.mxu0 %v1599
    %1623 = vmatprep.subr.mxu0 0.0
    %1624 = vmatpush1.msra.mxu0 %v1598
    %1625 = vmatprep.subr.mxu0 0.0
    %1626 = vmatpush1.msra.mxu0 %v1597
    %1627 = vmatprep.subr.mxu0 0.0
    %1628 = vmatpush1.msra.mxu0 %v1596
    %1629 = vmatprep.subr.mxu0 0.0
    %1630 = vmatpush1.msra.mxu0 %v1595
    %1631 = vmatprep.subr.mxu0 0.0
    %1632 = vmatpush1.msra.mxu0 %v1594
    %1633 = vmatprep.subr.mxu0 0.0
    %1634 = vmatpush1.msra.mxu0 %v1593
    %1635 = vmatprep.subr.mxu0 0.0
    %1636 = vmatpush1.msra.mxu0 %v1592
    %1637 = vmatprep.subr.mxu0 0.0
    %1638 = vmatpush1.msra.mxu0 %v1591
    %1639 = vmatprep.subr.mxu0 0.0
    %1640 = vmatpush2.msra.mxu0 0.0
    %1641 = vmatprep.subr.mxu0 0.0
    %1642 = vmatpush2.msra.mxu0 0.0
    %1643 = vmatprep.subr.mxu0 0.0
    %1644 = vmatpush2.msra.mxu0 0.0
    %1645 = vmatprep.subr.mxu0 0.0
    %1646 = vmatpush2.msra.mxu0 0.0
    %1647 = vmatprep.subr.mxu0 0.0
    %1648 = vmatpush2.msra.mxu0 0.0
    %1649 = vmatprep.subr.mxu0 0.0
    %1650 = vmatpush2.msra.mxu0 0.0
    %1651 = vmatprep.subr.mxu0 0.0
    %1652 = vmatpush2.msra.mxu0 0.0
    %1653 = vmatprep.subr.mxu0 0.0
    %1654 = vmatpush2.msra.mxu0 0.0
    %1655 = vmatprep.subr.mxu0 0.0
    %1656 = vmatpush2.msra.mxu0 0.0
    %1657 = vmatprep.subr.mxu0 0.0
    %1658 = vmatpush2.msra.mxu0 0.0
    %1659 = vmatprep.subr.mxu0 0.0
    %1660 = vmatpush2.msra.mxu0 0.0
    %1661 = vmatprep.subr.mxu0 0.0
    %1662 = vmatpush2.msra.mxu0 0.0
    %1663 = vmatprep.subr.mxu0 0.0
    %1664 = vmatpush2.msra.mxu0 0.0
    %1665 = vmatprep.subr.mxu0 0.0
    %1666 = vmatpush2.msra.mxu0 0.0
    %1667 = vmatprep.subr.mxu0 0.0
    %1668 = vmatpush2.msra.mxu0 0.0
    %1669 = vmatprep.subr.mxu0 0.0
    %1670 = vmatpush2.msra.mxu0 0.0
    %1671 = vmatprep.mubr.f32.mxu0 0.0
    %1672 = vmatmul.mubr.f32.gmra.mxu0 %v1587
    %v1673 = vpop.f32.mrf.mxu0
    %v1674 = vadd.f32 0.0, %v1673
    %v1675 = vpop.f32.mrf.mxu0
    %1676 = vdwg.mxu0
    %v1677 = vadd.f32 %v1516, %v1674
    %s1678 = scalar_lea.vmem %s0, 160
    %v1679 = vld [vmem:[%s1678] sm:$0xff]
    %v1680 = vld [vmem:[%s1678 + $0x8] sm:$0xff]
    %1681 = vmatprep.subr.mxu0 0.0
    %1682 = vmatpush1.msra.mxu0 %v50
    %1683 = vmatprep.subr.mxu0 0.0
    %1684 = vmatpush1.msra.mxu0 %v49
    %1685 = vmatprep.subr.mxu0 0.0
    %1686 = vmatpush1.msra.mxu0 %v48
    %1687 = vmatprep.subr.mxu0 0.0
    %1688 = vmatpush1.msra.mxu0 %v47
    %1689 = vmatprep.subr.mxu0 0.0
    %1690 = vmatpush1.msra.mxu0 %v46
    %1691 = vmatprep.subr.mxu0 0.0
    %1692 = vmatpush1.msra.mxu0 %v45
    %1693 = vmatprep.subr.mxu0 0.0
    %1694 = vmatpush1.msra.mxu0 %v44
    %1695 = vmatprep.subr.mxu0 0.0
    %1696 = vmatpush1.msra.mxu0 %v43
    %1697 = vmatprep.subr.mxu0 0.0
    %1698 = vmatpush1.msra.mxu0 %v42
    %1699 = vmatprep.subr.mxu0 0.0
    %1700 = vmatpush1.msra.mxu0 %v41
    %1701 = vmatprep.subr.mxu0 0.0
    %1702 = vmatpush1.msra.mxu0 %v40
    %1703 = vmatprep.subr.mxu0 0.0
    %1704 = vmatpush1.msra.mxu0 %v39
    %1705 = vmatprep.subr.mxu0 0.0
    %1706 = vmatpush1.msra.mxu0 %v38
    %1707 = vmatprep.subr.mxu0 0.0
    %1708 = vmatpush1.msra.mxu0 %v37
    %1709 = vmatprep.subr.mxu0 0.0
    %1710 = vmatpush1.msra.mxu0 %v36
    %1711 = vmatprep.subr.mxu0 0.0
    %1712 = vmatpush1.msra.mxu0 %v35
    %1713 = vmatprep.subr.mxu0 0.0
    %1714 = vmatpush2.msra.mxu0 %v66
    %1715 = vmatprep.subr.mxu0 0.0
    %1716 = vmatpush2.msra.mxu0 %v65
    %1717 = vmatprep.subr.mxu0 0.0
    %1718 = vmatpush2.msra.mxu0 %v64
    %1719 = vmatprep.subr.mxu0 0.0
    %1720 = vmatpush2.msra.mxu0 %v63
    %1721 = vmatprep.subr.mxu0 0.0
    %1722 = vmatpush2.msra.mxu0 %v62
    %1723 = vmatprep.subr.mxu0 0.0
    %1724 = vmatpush2.msra.mxu0 %v61
    %1725 = vmatprep.subr.mxu0 0.0
    %1726 = vmatpush2.msra.mxu0 %v60
    %1727 = vmatprep.subr.mxu0 0.0
    %1728 = vmatpush2.msra.mxu0 %v59
    %1729 = vmatprep.subr.mxu0 0.0
    %1730 = vmatpush2.msra.mxu0 %v58
    %1731 = vmatprep.subr.mxu0 0.0
    %1732 = vmatpush2.msra.mxu0 %v57
    %1733 = vmatprep.subr.mxu0 0.0
    %1734 = vmatpush2.msra.mxu0 %v56
    %1735 = vmatprep.subr.mxu0 0.0
    %1736 = vmatpush2.msra.mxu0 %v55
    %1737 = vmatprep.subr.mxu0 0.0
    %1738 = vmatpush2.msra.mxu0 %v54
    %1739 = vmatprep.subr.mxu0 0.0
    %1740 = vmatpush2.msra.mxu0 %v53
    %1741 = vmatprep.subr.mxu0 0.0
    %1742 = vmatpush2.msra.mxu0 %v52
    %1743 = vmatprep.subr.mxu0 0.0
    %1744 = vmatpush2.msra.mxu0 %v51
    %1745 = vmatprep.mubr.f32.mxu0 %v1680
    %1746 = vmatmul.mubr.f32.gmra.mxu0 %v1679
    %v1747 = vpop.f32.mrf.mxu0
    %v1748 = vadd.f32 %v72, %v1747
    %v1749 = vpop.f32.mrf.mxu0
    %1750 = vdwg.mxu0
    %s1751 = scalar_lea.vmem %s3, 1280
    %v1752 = vld [vmem:[%s1751] sm:$0xff]
    %v1753 = vld [vmem:[%s1751 + $0x8] sm:$0xff]
    %v1754 = vld [vmem:[%s1751 + $0x10] sm:$0xff]
    %v1755 = vld [vmem:[%s1751 + $0x18] sm:$0xff]
    %v1756 = vld [vmem:[%s1751 + $0x20] sm:$0xff]
    %v1757 = vld [vmem:[%s1751 + $0x28] sm:$0xff]
    %v1758 = vld [vmem:[%s1751 + $0x30] sm:$0xff]
    %v1759 = vld [vmem:[%s1751 + $0x38] sm:$0xff]
    %v1760 = vld [vmem:[%s1751 + $0x40] sm:$0xff]
    %v1761 = vld [vmem:[%s1751 + $0x48] sm:$0xff]
    %v1762 = vld [vmem:[%s1751 + $0x50] sm:$0xff]
    %v1763 = vld [vmem:[%s1751 + $0x58] sm:$0xff]
    %v1764 = vld [vmem:[%s1751 + $0x60] sm:$0xff]
    %v1765 = vld [vmem:[%s1751 + $0x68] sm:$0xff]
    %v1766 = vld [vmem:[%s1751 + $0x70] sm:$0xff]
    %v1767 = vld [vmem:[%s1751 + $0x78] sm:$0xff]
    %1768 = vmatprep.subr.mxu0 0.0
    %1769 = vmatpush1.msra.mxu0 %v1767
    %1770 = vmatprep.subr.mxu0 0.0
    %1771 = vmatpush1.msra.mxu0 %v1766
    %1772 = vmatprep.subr.mxu0 0.0
    %1773 = vmatpush1.msra.mxu0 %v1765
    %1774 = vmatprep.subr.mxu0 0.0
    %1775 = vmatpush1.msra.mxu0 %v1764
    %1776 = vmatprep.subr.mxu0 0.0
    %1777 = vmatpush1.msra.mxu0 %v1763
    %1778 = vmatprep.subr.mxu0 0.0
    %1779 = vmatpush1.msra.mxu0 %v1762
    %1780 = vmatprep.subr.mxu0 0.0
    %1781 = vmatpush1.msra.mxu0 %v1761
    %1782 = vmatprep.subr.mxu0 0.0
    %1783 = vmatpush1.msra.mxu0 %v1760
    %1784 = vmatprep.subr.mxu0 0.0
    %1785 = vmatpush1.msra.mxu0 %v1759
    %1786 = vmatprep.subr.mxu0 0.0
    %1787 = vmatpush1.msra.mxu0 %v1758
    %1788 = vmatprep.subr.mxu0 0.0
    %1789 = vmatpush1.msra.mxu0 %v1757
    %1790 = vmatprep.subr.mxu0 0.0
    %1791 = vmatpush1.msra.mxu0 %v1756
    %1792 = vmatprep.subr.mxu0 0.0
    %1793 = vmatpush1.msra.mxu0 %v1755
    %1794 = vmatprep.subr.mxu0 0.0
    %1795 = vmatpush1.msra.mxu0 %v1754
    %1796 = vmatprep.subr.mxu0 0.0
    %1797 = vmatpush1.msra.mxu0 %v1753
    %1798 = vmatprep.subr.mxu0 0.0
    %1799 = vmatpush1.msra.mxu0 %v1752
    %1800 = vmatprep.subr.mxu0 0.0
    %1801 = vmatpush2.msra.mxu0 0.0
    %1802 = vmatprep.subr.mxu0 0.0
    %1803 = vmatpush2.msra.mxu0 0.0
    %1804 = vmatprep.subr.mxu0 0.0
    %1805 = vmatpush2.msra.mxu0 0.0
    %1806 = vmatprep.subr.mxu0 0.0
    %1807 = vmatpush2.msra.mxu0 0.0
    %1808 = vmatprep.subr.mxu0 0.0
    %1809 = vmatpush2.msra.mxu0 0.0
    %1810 = vmatprep.subr.mxu0 0.0
    %1811 = vmatpush2.msra.mxu0 0.0
    %1812 = vmatprep.subr.mxu0 0.0
    %1813 = vmatpush2.msra.mxu0 0.0
    %1814 = vmatprep.subr.mxu0 0.0
    %1815 = vmatpush2.msra.mxu0 0.0
    %1816 = vmatprep.subr.mxu0 0.0
    %1817 = vmatpush2.msra.mxu0 0.0
    %1818 = vmatprep.subr.mxu0 0.0
    %1819 = vmatpush2.msra.mxu0 0.0
    %1820 = vmatprep.subr.mxu0 0.0
    %1821 = vmatpush2.msra.mxu0 0.0
    %1822 = vmatprep.subr.mxu0 0.0
    %1823 = vmatpush2.msra.mxu0 0.0
    %1824 = vmatprep.subr.mxu0 0.0
    %1825 = vmatpush2.msra.mxu0 0.0
    %1826 = vmatprep.subr.mxu0 0.0
    %1827 = vmatpush2.msra.mxu0 0.0
    %1828 = vmatprep.subr.mxu0 0.0
    %1829 = vmatpush2.msra.mxu0 0.0
    %1830 = vmatprep.subr.mxu0 0.0
    %1831 = vmatpush2.msra.mxu0 0.0
    %1832 = vmatprep.mubr.f32.mxu0 0.0
    %1833 = vmatmul.mubr.f32.gmra.mxu0 %v1748
    %v1834 = vpop.f32.mrf.mxu0
    %v1835 = vadd.f32 0.0, %v1834
    %v1836 = vpop.f32.mrf.mxu0
    %1837 = vdwg.mxu0
    %v1838 = vadd.f32 %v1677, %v1835
    %s1839 = scalar_lea.vmem %s0, 176
    %v1840 = vld [vmem:[%s1839] sm:$0xff]
    %v1841 = vld [vmem:[%s1839 + $0x8] sm:$0xff]
    %1842 = vmatprep.subr.mxu0 0.0
    %1843 = vmatpush1.msra.mxu0 %v50
    %1844 = vmatprep.subr.mxu0 0.0
    %1845 = vmatpush1.msra.mxu0 %v49
    %1846 = vmatprep.subr.mxu0 0.0
    %1847 = vmatpush1.msra.mxu0 %v48
    %1848 = vmatprep.subr.mxu0 0.0
    %1849 = vmatpush1.msra.mxu0 %v47
    %1850 = vmatprep.subr.mxu0 0.0
    %1851 = vmatpush1.msra.mxu0 %v46
    %1852 = vmatprep.subr.mxu0 0.0
    %1853 = vmatpush1.msra.mxu0 %v45
    %1854 = vmatprep.subr.mxu0 0.0
    %1855 = vmatpush1.msra.mxu0 %v44
    %1856 = vmatprep.subr.mxu0 0.0
    %1857 = vmatpush1.msra.mxu0 %v43
    %1858 = vmatprep.subr.mxu0 0.0
    %1859 = vmatpush1.msra.mxu0 %v42
    %1860 = vmatprep.subr.mxu0 0.0
    %1861 = vmatpush1.msra.mxu0 %v41
    %1862 = vmatprep.subr.mxu0 0.0
    %1863 = vmatpush1.msra.mxu0 %v40
    %1864 = vmatprep.subr.mxu0 0.0
    %1865 = vmatpush1.msra.mxu0 %v39
    %1866 = vmatprep.subr.mxu0 0.0
    %1867 = vmatpush1.msra.mxu0 %v38
    %1868 = vmatprep.subr.mxu0 0.0
    %1869 = vmatpush1.msra.mxu0 %v37
    %1870 = vmatprep.subr.mxu0 0.0
    %1871 = vmatpush1.msra.mxu0 %v36
    %1872 = vmatprep.subr.mxu0 0.0
    %1873 = vmatpush1.msra.mxu0 %v35
    %1874 = vmatprep.subr.mxu0 0.0
    %1875 = vmatpush2.msra.mxu0 %v66
    %1876 = vmatprep.subr.mxu0 0.0
    %1877 = vmatpush2.msra.mxu0 %v65
    %1878 = vmatprep.subr.mxu0 0.0
    %1879 = vmatpush2.msra.mxu0 %v64
    %1880 = vmatprep.subr.mxu0 0.0
    %1881 = vmatpush2.msra.mxu0 %v63
    %1882 = vmatprep.subr.mxu0 0.0
    %1883 = vmatpush2.msra.mxu0 %v62
    %1884 = vmatprep.subr.mxu0 0.0
    %1885 = vmatpush2.msra.mxu0 %v61
    %1886 = vmatprep.subr.mxu0 0.0
    %1887 = vmatpush2.msra.mxu0 %v60
    %1888 = vmatprep.subr.mxu0 0.0
    %1889 = vmatpush2.msra.mxu0 %v59
    %1890 = vmatprep.subr.mxu0 0.0
    %1891 = vmatpush2.msra.mxu0 %v58
    %1892 = vmatprep.subr.mxu0 0.0
    %1893 = vmatpush2.msra.mxu0 %v57
    %1894 = vmatprep.subr.mxu0 0.0
    %1895 = vmatpush2.msra.mxu0 %v56
    %1896 = vmatprep.subr.mxu0 0.0
    %1897 = vmatpush2.msra.mxu0 %v55
    %1898 = vmatprep.subr.mxu0 0.0
    %1899 = vmatpush2.msra.mxu0 %v54
    %1900 = vmatprep.subr.mxu0 0.0
    %1901 = vmatpush2.msra.mxu0 %v53
    %1902 = vmatprep.subr.mxu0 0.0
    %1903 = vmatpush2.msra.mxu0 %v52
    %1904 = vmatprep.subr.mxu0 0.0
    %1905 = vmatpush2.msra.mxu0 %v51
    %1906 = vmatprep.mubr.f32.mxu0 %v1841
    %1907 = vmatmul.mubr.f32.gmra.mxu0 %v1840
    %v1908 = vpop.f32.mrf.mxu0
    %v1909 = vadd.f32 %v72, %v1908
    %v1910 = vpop.f32.mrf.mxu0
    %1911 = vdwg.mxu0
    %s1912 = scalar_lea.vmem %s3, 1408
    %v1913 = vld [vmem:[%s1912] sm:$0xff]
    %v1914 = vld [vmem:[%s1912 + $0x8] sm:$0xff]
    %v1915 = vld [vmem:[%s1912 + $0x10] sm:$0xff]
    %v1916 = vld [vmem:[%s1912 + $0x18] sm:$0xff]
    %v1917 = vld [vmem:[%s1912 + $0x20] sm:$0xff]
    %v1918 = vld [vmem:[%s1912 + $0x28] sm:$0xff]
    %v1919 = vld [vmem:[%s1912 + $0x30] sm:$0xff]
    %v1920 = vld [vmem:[%s1912 + $0x38] sm:$0xff]
    %v1921 = vld [vmem:[%s1912 + $0x40] sm:$0xff]
    %v1922 = vld [vmem:[%s1912 + $0x48] sm:$0xff]
    %v1923 = vld [vmem:[%s1912 + $0x50] sm:$0xff]
    %v1924 = vld [vmem:[%s1912 + $0x58] sm:$0xff]
    %v1925 = vld [vmem:[%s1912 + $0x60] sm:$0xff]
    %v1926 = vld [vmem:[%s1912 + $0x68] sm:$0xff]
    %v1927 = vld [vmem:[%s1912 + $0x70] sm:$0xff]
    %v1928 = vld [vmem:[%s1912 + $0x78] sm:$0xff]
    %1929 = vmatprep.subr.mxu0 0.0
    %1930 = vmatpush1.msra.mxu0 %v1928
    %1931 = vmatprep.subr.mxu0 0.0
    %1932 = vmatpush1.msra.mxu0 %v1927
    %1933 = vmatprep.subr.mxu0 0.0
    %1934 = vmatpush1.msra.mxu0 %v1926
    %1935 = vmatprep.subr.mxu0 0.0
    %1936 = vmatpush1.msra.mxu0 %v1925
    %1937 = vmatprep.subr.mxu0 0.0
    %1938 = vmatpush1.msra.mxu0 %v1924
    %1939 = vmatprep.subr.mxu0 0.0
    %1940 = vmatpush1.msra.mxu0 %v1923
    %1941 = vmatprep.subr.mxu0 0.0
    %1942 = vmatpush1.msra.mxu0 %v1922
    %1943 = vmatprep.subr.mxu0 0.0
    %1944 = vmatpush1.msra.mxu0 %v1921
    %1945 = vmatprep.subr.mxu0 0.0
    %1946 = vmatpush1.msra.mxu0 %v1920
    %1947 = vmatprep.subr.mxu0 0.0
    %1948 = vmatpush1.msra.mxu0 %v1919
    %1949 = vmatprep.subr.mxu0 0.0
    %1950 = vmatpush1.msra.mxu0 %v1918
    %1951 = vmatprep.subr.mxu0 0.0
    %1952 = vmatpush1.msra.mxu0 %v1917
    %1953 = vmatprep.subr.mxu0 0.0
    %1954 = vmatpush1.msra.mxu0 %v1916
    %1955 = vmatprep.subr.mxu0 0.0
    %1956 = vmatpush1.msra.mxu0 %v1915
    %1957 = vmatprep.subr.mxu0 0.0
    %1958 = vmatpush1.msra.mxu0 %v1914
    %1959 = vmatprep.subr.mxu0 0.0
    %1960 = vmatpush1.msra.mxu0 %v1913
    %1961 = vmatprep.subr.mxu0 0.0
    %1962 = vmatpush2.msra.mxu0 0.0
    %1963 = vmatprep.subr.mxu0 0.0
    %1964 = vmatpush2.msra.mxu0 0.0
    %1965 = vmatprep.subr.mxu0 0.0
    %1966 = vmatpush2.msra.mxu0 0.0
    %1967 = vmatprep.subr.mxu0 0.0
    %1968 = vmatpush2.msra.mxu0 0.0
    %1969 = vmatprep.subr.mxu0 0.0
    %1970 = vmatpush2.msra.mxu0 0.0
    %1971 = vmatprep.subr.mxu0 0.0
    %1972 = vmatpush2.msra.mxu0 0.0
    %1973 = vmatprep.subr.mxu0 0.0
    %1974 = vmatpush2.msra.mxu0 0.0
    %1975 = vmatprep.subr.mxu0 0.0
    %1976 = vmatpush2.msra.mxu0 0.0
    %1977 = vmatprep.subr.mxu0 0.0
    %1978 = vmatpush2.msra.mxu0 0.0
    %1979 = vmatprep.subr.mxu0 0.0
    %1980 = vmatpush2.msra.mxu0 0.0
    %1981 = vmatprep.subr.mxu0 0.0
    %1982 = vmatpush2.msra.mxu0 0.0
    %1983 = vmatprep.subr.mxu0 0.0
    %1984 = vmatpush2.msra.mxu0 0.0
    %1985 = vmatprep.subr.mxu0 0.0
    %1986 = vmatpush2.msra.mxu0 0.0
    %1987 = vmatprep.subr.mxu0 0.0
    %1988 = vmatpush2.msra.mxu0 0.0
    %1989 = vmatprep.subr.mxu0 0.0
    %1990 = vmatpush2.msra.mxu0 0.0
    %1991 = vmatprep.subr.mxu0 0.0
    %1992 = vmatpush2.msra.mxu0 0.0
    %1993 = vmatprep.mubr.f32.mxu0 0.0
    %1994 = vmatmul.mubr.f32.gmra.mxu0 %v1909
    %v1995 = vpop.f32.mrf.mxu0
    %v1996 = vadd.f32 0.0, %v1995
    %v1997 = vpop.f32.mrf.mxu0
    %1998 = vdwg.mxu0
    %v1999 = vadd.f32 %v1838, %v1996
    %s2000 = scalar_lea.vmem %s0, 192
    %v2001 = vld [vmem:[%s2000] sm:$0xff]
    %v2002 = vld [vmem:[%s2000 + $0x8] sm:$0xff]
    %2003 = vmatprep.subr.mxu0 0.0
    %2004 = vmatpush1.msra.mxu0 %v50
    %2005 = vmatprep.subr.mxu0 0.0
    %2006 = vmatpush1.msra.mxu0 %v49
    %2007 = vmatprep.subr.mxu0 0.0
    %2008 = vmatpush1.msra.mxu0 %v48
    %2009 = vmatprep.subr.mxu0 0.0
    %2010 = vmatpush1.msra.mxu0 %v47
    %2011 = vmatprep.subr.mxu0 0.0
    %2012 = vmatpush1.msra.mxu0 %v46
    %2013 = vmatprep.subr.mxu0 0.0
    %2014 = vmatpush1.msra.mxu0 %v45
    %2015 = vmatprep.subr.mxu0 0.0
    %2016 = vmatpush1.msra.mxu0 %v44
    %2017 = vmatprep.subr.mxu0 0.0
    %2018 = vmatpush1.msra.mxu0 %v43
    %2019 = vmatprep.subr.mxu0 0.0
    %2020 = vmatpush1.msra.mxu0 %v42
    %2021 = vmatprep.subr.mxu0 0.0
    %2022 = vmatpush1.msra.mxu0 %v41
    %2023 = vmatprep.subr.mxu0 0.0
    %2024 = vmatpush1.msra.mxu0 %v40
    %2025 = vmatprep.subr.mxu0 0.0
    %2026 = vmatpush1.msra.mxu0 %v39
    %2027 = vmatprep.subr.mxu0 0.0
    %2028 = vmatpush1.msra.mxu0 %v38
    %2029 = vmatprep.subr.mxu0 0.0
    %2030 = vmatpush1.msra.mxu0 %v37
    %2031 = vmatprep.subr.mxu0 0.0
    %2032 = vmatpush1.msra.mxu0 %v36
    %2033 = vmatprep.subr.mxu0 0.0
    %2034 = vmatpush1.msra.mxu0 %v35
    %2035 = vmatprep.subr.mxu0 0.0
    %2036 = vmatpush2.msra.mxu0 %v66
    %2037 = vmatprep.subr.mxu0 0.0
    %2038 = vmatpush2.msra.mxu0 %v65
    %2039 = vmatprep.subr.mxu0 0.0
    %2040 = vmatpush2.msra.mxu0 %v64
    %2041 = vmatprep.subr.mxu0 0.0
    %2042 = vmatpush2.msra.mxu0 %v63
    %2043 = vmatprep.subr.mxu0 0.0
    %2044 = vmatpush2.msra.mxu0 %v62
    %2045 = vmatprep.subr.mxu0 0.0
    %2046 = vmatpush2.msra.mxu0 %v61
    %2047 = vmatprep.subr.mxu0 0.0
    %2048 = vmatpush2.msra.mxu0 %v60
    %2049 = vmatprep.subr.mxu0 0.0
    %2050 = vmatpush2.msra.mxu0 %v59
    %2051 = vmatprep.subr.mxu0 0.0
    %2052 = vmatpush2.msra.mxu0 %v58
    %2053 = vmatprep.subr.mxu0 0.0
    %2054 = vmatpush2.msra.mxu0 %v57
    %2055 = vmatprep.subr.mxu0 0.0
    %2056 = vmatpush2.msra.mxu0 %v56
    %2057 = vmatprep.subr.mxu0 0.0
    %2058 = vmatpush2.msra.mxu0 %v55
    %2059 = vmatprep.subr.mxu0 0.0
    %2060 = vmatpush2.msra.mxu0 %v54
    %2061 = vmatprep.subr.mxu0 0.0
    %2062 = vmatpush2.msra.mxu0 %v53
    %2063 = vmatprep.subr.mxu0 0.0
    %2064 = vmatpush2.msra.mxu0 %v52
    %2065 = vmatprep.subr.mxu0 0.0
    %2066 = vmatpush2.msra.mxu0 %v51
    %2067 = vmatprep.mubr.f32.mxu0 %v2002
    %2068 = vmatmul.mubr.f32.gmra.mxu0 %v2001
    %v2069 = vpop.f32.mrf.mxu0
    %v2070 = vadd.f32 %v72, %v2069
    %v2071 = vpop.f32.mrf.mxu0
    %2072 = vdwg.mxu0
    %s2073 = scalar_lea.vmem %s3, 1536
    %v2074 = vld [vmem:[%s2073] sm:$0xff]
    %v2075 = vld [vmem:[%s2073 + $0x8] sm:$0xff]
    %v2076 = vld [vmem:[%s2073 + $0x10] sm:$0xff]
    %v2077 = vld [vmem:[%s2073 + $0x18] sm:$0xff]
    %v2078 = vld [vmem:[%s2073 + $0x20] sm:$0xff]
    %v2079 = vld [vmem:[%s2073 + $0x28] sm:$0xff]
    %v2080 = vld [vmem:[%s2073 + $0x30] sm:$0xff]
    %v2081 = vld [vmem:[%s2073 + $0x38] sm:$0xff]
    %v2082 = vld [vmem:[%s2073 + $0x40] sm:$0xff]
    %v2083 = vld [vmem:[%s2073 + $0x48] sm:$0xff]
    %v2084 = vld [vmem:[%s2073 + $0x50] sm:$0xff]
    %v2085 = vld [vmem:[%s2073 + $0x58] sm:$0xff]
    %v2086 = vld [vmem:[%s2073 + $0x60] sm:$0xff]
    %v2087 = vld [vmem:[%s2073 + $0x68] sm:$0xff]
    %v2088 = vld [vmem:[%s2073 + $0x70] sm:$0xff]
    %v2089 = vld [vmem:[%s2073 + $0x78] sm:$0xff]
    %2090 = vmatprep.subr.mxu0 0.0
    %2091 = vmatpush1.msra.mxu0 %v2089
    %2092 = vmatprep.subr.mxu0 0.0
    %2093 = vmatpush1.msra.mxu0 %v2088
    %2094 = vmatprep.subr.mxu0 0.0
    %2095 = vmatpush1.msra.mxu0 %v2087
    %2096 = vmatprep.subr.mxu0 0.0
    %2097 = vmatpush1.msra.mxu0 %v2086
    %2098 = vmatprep.subr.mxu0 0.0
    %2099 = vmatpush1.msra.mxu0 %v2085
    %2100 = vmatprep.subr.mxu0 0.0
    %2101 = vmatpush1.msra.mxu0 %v2084
    %2102 = vmatprep.subr.mxu0 0.0
    %2103 = vmatpush1.msra.mxu0 %v2083
    %2104 = vmatprep.subr.mxu0 0.0
    %2105 = vmatpush1.msra.mxu0 %v2082
    %2106 = vmatprep.subr.mxu0 0.0
    %2107 = vmatpush1.msra.mxu0 %v2081
    %2108 = vmatprep.subr.mxu0 0.0
    %2109 = vmatpush1.msra.mxu0 %v2080
    %2110 = vmatprep.subr.mxu0 0.0
    %2111 = vmatpush1.msra.mxu0 %v2079
    %2112 = vmatprep.subr.mxu0 0.0
    %2113 = vmatpush1.msra.mxu0 %v2078
    %2114 = vmatprep.subr.mxu0 0.0
    %2115 = vmatpush1.msra.mxu0 %v2077
    %2116 = vmatprep.subr.mxu0 0.0
    %2117 = vmatpush1.msra.mxu0 %v2076
    %2118 = vmatprep.subr.mxu0 0.0
    %2119 = vmatpush1.msra.mxu0 %v2075
    %2120 = vmatprep.subr.mxu0 0.0
    %2121 = vmatpush1.msra.mxu0 %v2074
    %2122 = vmatprep.subr.mxu0 0.0
    %2123 = vmatpush2.msra.mxu0 0.0
    %2124 = vmatprep.subr.mxu0 0.0
    %2125 = vmatpush2.msra.mxu0 0.0
    %2126 = vmatprep.subr.mxu0 0.0
    %2127 = vmatpush2.msra.mxu0 0.0
    %2128 = vmatprep.subr.mxu0 0.0
    %2129 = vmatpush2.msra.mxu0 0.0
    %2130 = vmatprep.subr.mxu0 0.0
    %2131 = vmatpush2.msra.mxu0 0.0
    %2132 = vmatprep.subr.mxu0 0.0
    %2133 = vmatpush2.msra.mxu0 0.0
    %2134 = vmatprep.subr.mxu0 0.0
    %2135 = vmatpush2.msra.mxu0 0.0
    %2136 = vmatprep.subr.mxu0 0.0
    %2137 = vmatpush2.msra.mxu0 0.0
    %2138 = vmatprep.subr.mxu0 0.0
    %2139 = vmatpush2.msra.mxu0 0.0
    %2140 = vmatprep.subr.mxu0 0.0
    %2141 = vmatpush2.msra.mxu0 0.0
    %2142 = vmatprep.subr.mxu0 0.0
    %2143 = vmatpush2.msra.mxu0 0.0
    %2144 = vmatprep.subr.mxu0 0.0
    %2145 = vmatpush2.msra.mxu0 0.0
    %2146 = vmatprep.subr.mxu0 0.0
    %2147 = vmatpush2.msra.mxu0 0.0
    %2148 = vmatprep.subr.mxu0 0.0
    %2149 = vmatpush2.msra.mxu0 0.0
    %2150 = vmatprep.subr.mxu0 0.0
    %2151 = vmatpush2.msra.mxu0 0.0
    %2152 = vmatprep.subr.mxu0 0.0
    %2153 = vmatpush2.msra.mxu0 0.0
    %2154 = vmatprep.mubr.f32.mxu0 0.0
    %2155 = vmatmul.mubr.f32.gmra.mxu0 %v2070
    %v2156 = vpop.f32.mrf.mxu0
    %v2157 = vadd.f32 0.0, %v2156
    %v2158 = vpop.f32.mrf.mxu0
    %2159 = vdwg.mxu0
    %v2160 = vadd.f32 %v1999, %v2157
    %s2161 = scalar_lea.vmem %s0, 208
    %v2162 = vld [vmem:[%s2161] sm:$0xff]
    %v2163 = vld [vmem:[%s2161 + $0x8] sm:$0xff]
    %2164 = vmatprep.subr.mxu0 0.0
    %2165 = vmatpush1.msra.mxu0 %v50
    %2166 = vmatprep.subr.mxu0 0.0
    %2167 = vmatpush1.msra.mxu0 %v49
    %2168 = vmatprep.subr.mxu0 0.0
    %2169 = vmatpush1.msra.mxu0 %v48
    %2170 = vmatprep.subr.mxu0 0.0
    %2171 = vmatpush1.msra.mxu0 %v47
    %2172 = vmatprep.subr.mxu0 0.0
    %2173 = vmatpush1.msra.mxu0 %v46
    %2174 = vmatprep.subr.mxu0 0.0
    %2175 = vmatpush1.msra.mxu0 %v45
    %2176 = vmatprep.subr.mxu0 0.0
    %2177 = vmatpush1.msra.mxu0 %v44
    %2178 = vmatprep.subr.mxu0 0.0
    %2179 = vmatpush1.msra.mxu0 %v43
    %2180 = vmatprep.subr.mxu0 0.0
    %2181 = vmatpush1.msra.mxu0 %v42
    %2182 = vmatprep.subr.mxu0 0.0
    %2183 = vmatpush1.msra.mxu0 %v41
    %2184 = vmatprep.subr.mxu0 0.0
    %2185 = vmatpush1.msra.mxu0 %v40
    %2186 = vmatprep.subr.mxu0 0.0
    %2187 = vmatpush1.msra.mxu0 %v39
    %2188 = vmatprep.subr.mxu0 0.0
    %2189 = vmatpush1.msra.mxu0 %v38
    %2190 = vmatprep.subr.mxu0 0.0
    %2191 = vmatpush1.msra.mxu0 %v37
    %2192 = vmatprep.subr.mxu0 0.0
    %2193 = vmatpush1.msra.mxu0 %v36
    %2194 = vmatprep.subr.mxu0 0.0
    %2195 = vmatpush1.msra.mxu0 %v35
    %2196 = vmatprep.subr.mxu0 0.0
    %2197 = vmatpush2.msra.mxu0 %v66
    %2198 = vmatprep.subr.mxu0 0.0
    %2199 = vmatpush2.msra.mxu0 %v65
    %2200 = vmatprep.subr.mxu0 0.0
    %2201 = vmatpush2.msra.mxu0 %v64
    %2202 = vmatprep.subr.mxu0 0.0
    %2203 = vmatpush2.msra.mxu0 %v63
    %2204 = vmatprep.subr.mxu0 0.0
    %2205 = vmatpush2.msra.mxu0 %v62
    %2206 = vmatprep.subr.mxu0 0.0
    %2207 = vmatpush2.msra.mxu0 %v61
    %2208 = vmatprep.subr.mxu0 0.0
    %2209 = vmatpush2.msra.mxu0 %v60
    %2210 = vmatprep.subr.mxu0 0.0
    %2211 = vmatpush2.msra.mxu0 %v59
    %2212 = vmatprep.subr.mxu0 0.0
    %2213 = vmatpush2.msra.mxu0 %v58
    %2214 = vmatprep.subr.mxu0 0.0
    %2215 = vmatpush2.msra.mxu0 %v57
    %2216 = vmatprep.subr.mxu0 0.0
    %2217 = vmatpush2.msra.mxu0 %v56
    %2218 = vmatprep.subr.mxu0 0.0
    %2219 = vmatpush2.msra.mxu0 %v55
    %2220 = vmatprep.subr.mxu0 0.0
    %2221 = vmatpush2.msra.mxu0 %v54
    %2222 = vmatprep.subr.mxu0 0.0
    %2223 = vmatpush2.msra.mxu0 %v53
    %2224 = vmatprep.subr.mxu0 0.0
    %2225 = vmatpush2.msra.mxu0 %v52
    %2226 = vmatprep.subr.mxu0 0.0
    %2227 = vmatpush2.msra.mxu0 %v51
    %2228 = vmatprep.mubr.f32.mxu0 %v2163
    %2229 = vmatmul.mubr.f32.gmra.mxu0 %v2162
    %v2230 = vpop.f32.mrf.mxu0
    %v2231 = vadd.f32 %v72, %v2230
    %v2232 = vpop.f32.mrf.mxu0
    %2233 = vdwg.mxu0
    %s2234 = scalar_lea.vmem %s3, 1664
    %v2235 = vld [vmem:[%s2234] sm:$0xff]
    %v2236 = vld [vmem:[%s2234 + $0x8] sm:$0xff]
    %v2237 = vld [vmem:[%s2234 + $0x10] sm:$0xff]
    %v2238 = vld [vmem:[%s2234 + $0x18] sm:$0xff]
    %v2239 = vld [vmem:[%s2234 + $0x20] sm:$0xff]
    %v2240 = vld [vmem:[%s2234 + $0x28] sm:$0xff]
    %v2241 = vld [vmem:[%s2234 + $0x30] sm:$0xff]
    %v2242 = vld [vmem:[%s2234 + $0x38] sm:$0xff]
    %v2243 = vld [vmem:[%s2234 + $0x40] sm:$0xff]
    %v2244 = vld [vmem:[%s2234 + $0x48] sm:$0xff]
    %v2245 = vld [vmem:[%s2234 + $0x50] sm:$0xff]
    %v2246 = vld [vmem:[%s2234 + $0x58] sm:$0xff]
    %v2247 = vld [vmem:[%s2234 + $0x60] sm:$0xff]
    %v2248 = vld [vmem:[%s2234 + $0x68] sm:$0xff]
    %v2249 = vld [vmem:[%s2234 + $0x70] sm:$0xff]
    %v2250 = vld [vmem:[%s2234 + $0x78] sm:$0xff]
    %2251 = vmatprep.subr.mxu0 0.0
    %2252 = vmatpush1.msra.mxu0 %v2250
    %2253 = vmatprep.subr.mxu0 0.0
    %2254 = vmatpush1.msra.mxu0 %v2249
    %2255 = vmatprep.subr.mxu0 0.0
    %2256 = vmatpush1.msra.mxu0 %v2248
    %2257 = vmatprep.subr.mxu0 0.0
    %2258 = vmatpush1.msra.mxu0 %v2247
    %2259 = vmatprep.subr.mxu0 0.0
    %2260 = vmatpush1.msra.mxu0 %v2246
    %2261 = vmatprep.subr.mxu0 0.0
    %2262 = vmatpush1.msra.mxu0 %v2245
    %2263 = vmatprep.subr.mxu0 0.0
    %2264 = vmatpush1.msra.mxu0 %v2244
    %2265 = vmatprep.subr.mxu0 0.0
    %2266 = vmatpush1.msra.mxu0 %v2243
    %2267 = vmatprep.subr.mxu0 0.0
    %2268 = vmatpush1.msra.mxu0 %v2242
    %2269 = vmatprep.subr.mxu0 0.0
    %2270 = vmatpush1.msra.mxu0 %v2241
    %2271 = vmatprep.subr.mxu0 0.0
    %2272 = vmatpush1.msra.mxu0 %v2240
    %2273 = vmatprep.subr.mxu0 0.0
    %2274 = vmatpush1.msra.mxu0 %v2239
    %2275 = vmatprep.subr.mxu0 0.0
    %2276 = vmatpush1.msra.mxu0 %v2238
    %2277 = vmatprep.subr.mxu0 0.0
    %2278 = vmatpush1.msra.mxu0 %v2237
    %2279 = vmatprep.subr.mxu0 0.0
    %2280 = vmatpush1.msra.mxu0 %v2236
    %2281 = vmatprep.subr.mxu0 0.0
    %2282 = vmatpush1.msra.mxu0 %v2235
    %2283 = vmatprep.subr.mxu0 0.0
    %2284 = vmatpush2.msra.mxu0 0.0
    %2285 = vmatprep.subr.mxu0 0.0
    %2286 = vmatpush2.msra.mxu0 0.0
    %2287 = vmatprep.subr.mxu0 0.0
    %2288 = vmatpush2.msra.mxu0 0.0
    %2289 = vmatprep.subr.mxu0 0.0
    %2290 = vmatpush2.msra.mxu0 0.0
    %2291 = vmatprep.subr.mxu0 0.0
    %2292 = vmatpush2.msra.mxu0 0.0
    %2293 = vmatprep.subr.mxu0 0.0
    %2294 = vmatpush2.msra.mxu0 0.0
    %2295 = vmatprep.subr.mxu0 0.0
    %2296 = vmatpush2.msra.mxu0 0.0
    %2297 = vmatprep.subr.mxu0 0.0
    %2298 = vmatpush2.msra.mxu0 0.0
    %2299 = vmatprep.subr.mxu0 0.0
    %2300 = vmatpush2.msra.mxu0 0.0
    %2301 = vmatprep.subr.mxu0 0.0
    %2302 = vmatpush2.msra.mxu0 0.0
    %2303 = vmatprep.subr.mxu0 0.0
    %2304 = vmatpush2.msra.mxu0 0.0
    %2305 = vmatprep.subr.mxu0 0.0
    %2306 = vmatpush2.msra.mxu0 0.0
    %2307 = vmatprep.subr.mxu0 0.0
    %2308 = vmatpush2.msra.mxu0 0.0
    %2309 = vmatprep.subr.mxu0 0.0
    %2310 = vmatpush2.msra.mxu0 0.0
    %2311 = vmatprep.subr.mxu0 0.0
    %2312 = vmatpush2.msra.mxu0 0.0
    %2313 = vmatprep.subr.mxu0 0.0
    %2314 = vmatpush2.msra.mxu0 0.0
    %2315 = vmatprep.mubr.f32.mxu0 0.0
    %2316 = vmatmul.mubr.f32.gmra.mxu0 %v2231
    %v2317 = vpop.f32.mrf.mxu0
    %v2318 = vadd.f32 0.0, %v2317
    %v2319 = vpop.f32.mrf.mxu0
    %2320 = vdwg.mxu0
    %v2321 = vadd.f32 %v2160, %v2318
    %s2322 = scalar_lea.vmem %s0, 224
    %v2323 = vld [vmem:[%s2322] sm:$0xff]
    %v2324 = vld [vmem:[%s2322 + $0x8] sm:$0xff]
    %2325 = vmatprep.subr.mxu0 0.0
    %2326 = vmatpush1.msra.mxu0 %v50
    %2327 = vmatprep.subr.mxu0 0.0
    %2328 = vmatpush1.msra.mxu0 %v49
    %2329 = vmatprep.subr.mxu0 0.0
    %2330 = vmatpush1.msra.mxu0 %v48
    %2331 = vmatprep.subr.mxu0 0.0
    %2332 = vmatpush1.msra.mxu0 %v47
    %2333 = vmatprep.subr.mxu0 0.0
    %2334 = vmatpush1.msra.mxu0 %v46
    %2335 = vmatprep.subr.mxu0 0.0
    %2336 = vmatpush1.msra.mxu0 %v45
    %2337 = vmatprep.subr.mxu0 0.0
    %2338 = vmatpush1.msra.mxu0 %v44
    %2339 = vmatprep.subr.mxu0 0.0
    %2340 = vmatpush1.msra.mxu0 %v43
    %2341 = vmatprep.subr.mxu0 0.0
    %2342 = vmatpush1.msra.mxu0 %v42
    %2343 = vmatprep.subr.mxu0 0.0
    %2344 = vmatpush1.msra.mxu0 %v41
    %2345 = vmatprep.subr.mxu0 0.0
    %2346 = vmatpush1.msra.mxu0 %v40
    %2347 = vmatprep.subr.mxu0 0.0
    %2348 = vmatpush1.msra.mxu0 %v39
    %2349 = vmatprep.subr.mxu0 0.0
    %2350 = vmatpush1.msra.mxu0 %v38
    %2351 = vmatprep.subr.mxu0 0.0
    %2352 = vmatpush1.msra.mxu0 %v37
    %2353 = vmatprep.subr.mxu0 0.0
    %2354 = vmatpush1.msra.mxu0 %v36
    %2355 = vmatprep.subr.mxu0 0.0
    %2356 = vmatpush1.msra.mxu0 %v35
    %2357 = vmatprep.subr.mxu0 0.0
    %2358 = vmatpush2.msra.mxu0 %v66
    %2359 = vmatprep.subr.mxu0 0.0
    %2360 = vmatpush2.msra.mxu0 %v65
    %2361 = vmatprep.subr.mxu0 0.0
    %2362 = vmatpush2.msra.mxu0 %v64
    %2363 = vmatprep.subr.mxu0 0.0
    %2364 = vmatpush2.msra.mxu0 %v63
    %2365 = vmatprep.subr.mxu0 0.0
    %2366 = vmatpush2.msra.mxu0 %v62
    %2367 = vmatprep.subr.mxu0 0.0
    %2368 = vmatpush2.msra.mxu0 %v61
    %2369 = vmatprep.subr.mxu0 0.0
    %2370 = vmatpush2.msra.mxu0 %v60
    %2371 = vmatprep.subr.mxu0 0.0
    %2372 = vmatpush2.msra.mxu0 %v59
    %2373 = vmatprep.subr.mxu0 0.0
    %2374 = vmatpush2.msra.mxu0 %v58
    %2375 = vmatprep.subr.mxu0 0.0
    %2376 = vmatpush2.msra.mxu0 %v57
    %2377 = vmatprep.subr.mxu0 0.0
    %2378 = vmatpush2.msra.mxu0 %v56
    %2379 = vmatprep.subr.mxu0 0.0
    %2380 = vmatpush2.msra.mxu0 %v55
    %2381 = vmatprep.subr.mxu0 0.0
    %2382 = vmatpush2.msra.mxu0 %v54
    %2383 = vmatprep.subr.mxu0 0.0
    %2384 = vmatpush2.msra.mxu0 %v53
    %2385 = vmatprep.subr.mxu0 0.0
    %2386 = vmatpush2.msra.mxu0 %v52
    %2387 = vmatprep.subr.mxu0 0.0
    %2388 = vmatpush2.msra.mxu0 %v51
    %2389 = vmatprep.mubr.f32.mxu0 %v2324
    %2390 = vmatmul.mubr.f32.gmra.mxu0 %v2323
    %v2391 = vpop.f32.mrf.mxu0
    %v2392 = vadd.f32 %v72, %v2391
    %v2393 = vpop.f32.mrf.mxu0
    %2394 = vdwg.mxu0
    %s2395 = scalar_lea.vmem %s3, 1792
    %v2396 = vld [vmem:[%s2395] sm:$0xff]
    %v2397 = vld [vmem:[%s2395 + $0x8] sm:$0xff]
    %v2398 = vld [vmem:[%s2395 + $0x10] sm:$0xff]
    %v2399 = vld [vmem:[%s2395 + $0x18] sm:$0xff]
    %v2400 = vld [vmem:[%s2395 + $0x20] sm:$0xff]
    %v2401 = vld [vmem:[%s2395 + $0x28] sm:$0xff]
    %v2402 = vld [vmem:[%s2395 + $0x30] sm:$0xff]
    %v2403 = vld [vmem:[%s2395 + $0x38] sm:$0xff]
    %v2404 = vld [vmem:[%s2395 + $0x40] sm:$0xff]
    %v2405 = vld [vmem:[%s2395 + $0x48] sm:$0xff]
    %v2406 = vld [vmem:[%s2395 + $0x50] sm:$0xff]
    %v2407 = vld [vmem:[%s2395 + $0x58] sm:$0xff]
    %v2408 = vld [vmem:[%s2395 + $0x60] sm:$0xff]
    %v2409 = vld [vmem:[%s2395 + $0x68] sm:$0xff]
    %v2410 = vld [vmem:[%s2395 + $0x70] sm:$0xff]
    %v2411 = vld [vmem:[%s2395 + $0x78] sm:$0xff]
    %2412 = vmatprep.subr.mxu0 0.0
    %2413 = vmatpush1.msra.mxu0 %v2411
    %2414 = vmatprep.subr.mxu0 0.0
    %2415 = vmatpush1.msra.mxu0 %v2410
    %2416 = vmatprep.subr.mxu0 0.0
    %2417 = vmatpush1.msra.mxu0 %v2409
    %2418 = vmatprep.subr.mxu0 0.0
    %2419 = vmatpush1.msra.mxu0 %v2408
    %2420 = vmatprep.subr.mxu0 0.0
    %2421 = vmatpush1.msra.mxu0 %v2407
    %2422 = vmatprep.subr.mxu0 0.0
    %2423 = vmatpush1.msra.mxu0 %v2406
    %2424 = vmatprep.subr.mxu0 0.0
    %2425 = vmatpush1.msra.mxu0 %v2405
    %2426 = vmatprep.subr.mxu0 0.0
    %2427 = vmatpush1.msra.mxu0 %v2404
    %2428 = vmatprep.subr.mxu0 0.0
    %2429 = vmatpush1.msra.mxu0 %v2403
    %2430 = vmatprep.subr.mxu0 0.0
    %2431 = vmatpush1.msra.mxu0 %v2402
    %2432 = vmatprep.subr.mxu0 0.0
    %2433 = vmatpush1.msra.mxu0 %v2401
    %2434 = vmatprep.subr.mxu0 0.0
    %2435 = vmatpush1.msra.mxu0 %v2400
    %2436 = vmatprep.subr.mxu0 0.0
    %2437 = vmatpush1.msra.mxu0 %v2399
    %2438 = vmatprep.subr.mxu0 0.0
    %2439 = vmatpush1.msra.mxu0 %v2398
    %2440 = vmatprep.subr.mxu0 0.0
    %2441 = vmatpush1.msra.mxu0 %v2397
    %2442 = vmatprep.subr.mxu0 0.0
    %2443 = vmatpush1.msra.mxu0 %v2396
    %2444 = vmatprep.subr.mxu0 0.0
    %2445 = vmatpush2.msra.mxu0 0.0
    %2446 = vmatprep.subr.mxu0 0.0
    %2447 = vmatpush2.msra.mxu0 0.0
    %2448 = vmatprep.subr.mxu0 0.0
    %2449 = vmatpush2.msra.mxu0 0.0
    %2450 = vmatprep.subr.mxu0 0.0
    %2451 = vmatpush2.msra.mxu0 0.0
    %2452 = vmatprep.subr.mxu0 0.0
    %2453 = vmatpush2.msra.mxu0 0.0
    %2454 = vmatprep.subr.mxu0 0.0
    %2455 = vmatpush2.msra.mxu0 0.0
    %2456 = vmatprep.subr.mxu0 0.0
    %2457 = vmatpush2.msra.mxu0 0.0
    %2458 = vmatprep.subr.mxu0 0.0
    %2459 = vmatpush2.msra.mxu0 0.0
    %2460 = vmatprep.subr.mxu0 0.0
    %2461 = vmatpush2.msra.mxu0 0.0
    %2462 = vmatprep.subr.mxu0 0.0
    %2463 = vmatpush2.msra.mxu0 0.0
    %2464 = vmatprep.subr.mxu0 0.0
    %2465 = vmatpush2.msra.mxu0 0.0
    %2466 = vmatprep.subr.mxu0 0.0
    %2467 = vmatpush2.msra.mxu0 0.0
    %2468 = vmatprep.subr.mxu0 0.0
    %2469 = vmatpush2.msra.mxu0 0.0
    %2470 = vmatprep.subr.mxu0 0.0
    %2471 = vmatpush2.msra.mxu0 0.0
    %2472 = vmatprep.subr.mxu0 0.0
    %2473 = vmatpush2.msra.mxu0 0.0
    %2474 = vmatprep.subr.mxu0 0.0
    %2475 = vmatpush2.msra.mxu0 0.0
    %2476 = vmatprep.mubr.f32.mxu0 0.0
    %2477 = vmatmul.mubr.f32.gmra.mxu0 %v2392
    %v2478 = vpop.f32.mrf.mxu0
    %v2479 = vadd.f32 0.0, %v2478
    %v2480 = vpop.f32.mrf.mxu0
    %2481 = vdwg.mxu0
    %v2482 = vadd.f32 %v2321, %v2479
    %s2483 = scalar_lea.vmem %s0, 240
    %v2484 = vld [vmem:[%s2483] sm:$0xff]
    %v2485 = vld [vmem:[%s2483 + $0x8] sm:$0xff]
    %2486 = vmatprep.subr.mxu0 0.0
    %2487 = vmatpush1.msra.mxu0 %v50
    %2488 = vmatprep.subr.mxu0 0.0
    %2489 = vmatpush1.msra.mxu0 %v49
    %2490 = vmatprep.subr.mxu0 0.0
    %2491 = vmatpush1.msra.mxu0 %v48
    %2492 = vmatprep.subr.mxu0 0.0
    %2493 = vmatpush1.msra.mxu0 %v47
    %2494 = vmatprep.subr.mxu0 0.0
    %2495 = vmatpush1.msra.mxu0 %v46
    %2496 = vmatprep.subr.mxu0 0.0
    %2497 = vmatpush1.msra.mxu0 %v45
    %2498 = vmatprep.subr.mxu0 0.0
    %2499 = vmatpush1.msra.mxu0 %v44
    %2500 = vmatprep.subr.mxu0 0.0
    %2501 = vmatpush1.msra.mxu0 %v43
    %2502 = vmatprep.subr.mxu0 0.0
    %2503 = vmatpush1.msra.mxu0 %v42
    %2504 = vmatprep.subr.mxu0 0.0
    %2505 = vmatpush1.msra.mxu0 %v41
    %2506 = vmatprep.subr.mxu0 0.0
    %2507 = vmatpush1.msra.mxu0 %v40
    %2508 = vmatprep.subr.mxu0 0.0
    %2509 = vmatpush1.msra.mxu0 %v39
    %2510 = vmatprep.subr.mxu0 0.0
    %2511 = vmatpush1.msra.mxu0 %v38
    %2512 = vmatprep.subr.mxu0 0.0
    %2513 = vmatpush1.msra.mxu0 %v37
    %2514 = vmatprep.subr.mxu0 0.0
    %2515 = vmatpush1.msra.mxu0 %v36
    %2516 = vmatprep.subr.mxu0 0.0
    %2517 = vmatpush1.msra.mxu0 %v35
    %2518 = vmatprep.subr.mxu0 0.0
    %2519 = vmatpush2.msra.mxu0 %v66
    %2520 = vmatprep.subr.mxu0 0.0
    %2521 = vmatpush2.msra.mxu0 %v65
    %2522 = vmatprep.subr.mxu0 0.0
    %2523 = vmatpush2.msra.mxu0 %v64
    %2524 = vmatprep.subr.mxu0 0.0
    %2525 = vmatpush2.msra.mxu0 %v63
    %2526 = vmatprep.subr.mxu0 0.0
    %2527 = vmatpush2.msra.mxu0 %v62
    %2528 = vmatprep.subr.mxu0 0.0
    %2529 = vmatpush2.msra.mxu0 %v61
    %2530 = vmatprep.subr.mxu0 0.0
    %2531 = vmatpush2.msra.mxu0 %v60
    %2532 = vmatprep.subr.mxu0 0.0
    %2533 = vmatpush2.msra.mxu0 %v59
    %2534 = vmatprep.subr.mxu0 0.0
    %2535 = vmatpush2.msra.mxu0 %v58
    %2536 = vmatprep.subr.mxu0 0.0
    %2537 = vmatpush2.msra.mxu0 %v57
    %2538 = vmatprep.subr.mxu0 0.0
    %2539 = vmatpush2.msra.mxu0 %v56
    %2540 = vmatprep.subr.mxu0 0.0
    %2541 = vmatpush2.msra.mxu0 %v55
    %2542 = vmatprep.subr.mxu0 0.0
    %2543 = vmatpush2.msra.mxu0 %v54
    %2544 = vmatprep.subr.mxu0 0.0
    %2545 = vmatpush2.msra.mxu0 %v53
    %2546 = vmatprep.subr.mxu0 0.0
    %2547 = vmatpush2.msra.mxu0 %v52
    %2548 = vmatprep.subr.mxu0 0.0
    %2549 = vmatpush2.msra.mxu0 %v51
    %2550 = vmatprep.mubr.f32.mxu0 %v2485
    %2551 = vmatmul.mubr.f32.gmra.mxu0 %v2484
    %v2552 = vpop.f32.mrf.mxu0
    %v2553 = vadd.f32 %v72, %v2552
    %v2554 = vpop.f32.mrf.mxu0
    %2555 = vdwg.mxu0
    %s2556 = scalar_lea.vmem %s3, 1920
    %v2557 = vld [vmem:[%s2556] sm:$0xff]
    %v2558 = vld [vmem:[%s2556 + $0x8] sm:$0xff]
    %v2559 = vld [vmem:[%s2556 + $0x10] sm:$0xff]
    %v2560 = vld [vmem:[%s2556 + $0x18] sm:$0xff]
    %v2561 = vld [vmem:[%s2556 + $0x20] sm:$0xff]
    %v2562 = vld [vmem:[%s2556 + $0x28] sm:$0xff]
    %v2563 = vld [vmem:[%s2556 + $0x30] sm:$0xff]
    %v2564 = vld [vmem:[%s2556 + $0x38] sm:$0xff]
    %v2565 = vld [vmem:[%s2556 + $0x40] sm:$0xff]
    %v2566 = vld [vmem:[%s2556 + $0x48] sm:$0xff]
    %v2567 = vld [vmem:[%s2556 + $0x50] sm:$0xff]
    %v2568 = vld [vmem:[%s2556 + $0x58] sm:$0xff]
    %v2569 = vld [vmem:[%s2556 + $0x60] sm:$0xff]
    %v2570 = vld [vmem:[%s2556 + $0x68] sm:$0xff]
    %v2571 = vld [vmem:[%s2556 + $0x70] sm:$0xff]
    %v2572 = vld [vmem:[%s2556 + $0x78] sm:$0xff]
    %2573 = vmatprep.subr.mxu0 0.0
    %2574 = vmatpush1.msra.mxu0 %v2572
    %2575 = vmatprep.subr.mxu0 0.0
    %2576 = vmatpush1.msra.mxu0 %v2571
    %2577 = vmatprep.subr.mxu0 0.0
    %2578 = vmatpush1.msra.mxu0 %v2570
    %2579 = vmatprep.subr.mxu0 0.0
    %2580 = vmatpush1.msra.mxu0 %v2569
    %2581 = vmatprep.subr.mxu0 0.0
    %2582 = vmatpush1.msra.mxu0 %v2568
    %2583 = vmatprep.subr.mxu0 0.0
    %2584 = vmatpush1.msra.mxu0 %v2567
    %2585 = vmatprep.subr.mxu0 0.0
    %2586 = vmatpush1.msra.mxu0 %v2566
    %2587 = vmatprep.subr.mxu0 0.0
    %2588 = vmatpush1.msra.mxu0 %v2565
    %2589 = vmatprep.subr.mxu0 0.0
    %2590 = vmatpush1.msra.mxu0 %v2564
    %2591 = vmatprep.subr.mxu0 0.0
    %2592 = vmatpush1.msra.mxu0 %v2563
    %2593 = vmatprep.subr.mxu0 0.0
    %2594 = vmatpush1.msra.mxu0 %v2562
    %2595 = vmatprep.subr.mxu0 0.0
    %2596 = vmatpush1.msra.mxu0 %v2561
    %2597 = vmatprep.subr.mxu0 0.0
    %2598 = vmatpush1.msra.mxu0 %v2560
    %2599 = vmatprep.subr.mxu0 0.0
    %2600 = vmatpush1.msra.mxu0 %v2559
    %2601 = vmatprep.subr.mxu0 0.0
    %2602 = vmatpush1.msra.mxu0 %v2558
    %2603 = vmatprep.subr.mxu0 0.0
    %2604 = vmatpush1.msra.mxu0 %v2557
    %2605 = vmatprep.subr.mxu0 0.0
    %2606 = vmatpush2.msra.mxu0 0.0
    %2607 = vmatprep.subr.mxu0 0.0
    %2608 = vmatpush2.msra.mxu0 0.0
    %2609 = vmatprep.subr.mxu0 0.0
    %2610 = vmatpush2.msra.mxu0 0.0
    %2611 = vmatprep.subr.mxu0 0.0
    %2612 = vmatpush2.msra.mxu0 0.0
    %2613 = vmatprep.subr.mxu0 0.0
    %2614 = vmatpush2.msra.mxu0 0.0
    %2615 = vmatprep.subr.mxu0 0.0
    %2616 = vmatpush2.msra.mxu0 0.0
    %2617 = vmatprep.subr.mxu0 0.0
    %2618 = vmatpush2.msra.mxu0 0.0
    %2619 = vmatprep.subr.mxu0 0.0
    %2620 = vmatpush2.msra.mxu0 0.0
    %2621 = vmatprep.subr.mxu0 0.0
    %2622 = vmatpush2.msra.mxu0 0.0
    %2623 = vmatprep.subr.mxu0 0.0
    %2624 = vmatpush2.msra.mxu0 0.0
    %2625 = vmatprep.subr.mxu0 0.0
    %2626 = vmatpush2.msra.mxu0 0.0
    %2627 = vmatprep.subr.mxu0 0.0
    %2628 = vmatpush2.msra.mxu0 0.0
    %2629 = vmatprep.subr.mxu0 0.0
    %2630 = vmatpush2.msra.mxu0 0.0
    %2631 = vmatprep.subr.mxu0 0.0
    %2632 = vmatpush2.msra.mxu0 0.0
    %2633 = vmatprep.subr.mxu0 0.0
    %2634 = vmatpush2.msra.mxu0 0.0
    %2635 = vmatprep.subr.mxu0 0.0
    %2636 = vmatpush2.msra.mxu0 0.0
    %2637 = vmatprep.mubr.f32.mxu0 0.0
    %2638 = vmatmul.mubr.f32.gmra.mxu0 %v2553
    %v2639 = vpop.f32.mrf.mxu0
    %v2640 = vadd.f32 0.0, %v2639
    %v2641 = vpop.f32.mrf.mxu0
    %2642 = vdwg.mxu0
    %v2643 = vadd.f32 %v2482, %v2640
    %s2644 = scalar_lea.vmem %s0, 256
    %v2645 = vld [vmem:[%s2644] sm:$0xff]
    %v2646 = vld [vmem:[%s2644 + $0x8] sm:$0xff]
    %2647 = vmatprep.subr.mxu0 0.0
    %2648 = vmatpush1.msra.mxu0 %v50
    %2649 = vmatprep.subr.mxu0 0.0
    %2650 = vmatpush1.msra.mxu0 %v49
    %2651 = vmatprep.subr.mxu0 0.0
    %2652 = vmatpush1.msra.mxu0 %v48
    %2653 = vmatprep.subr.mxu0 0.0
    %2654 = vmatpush1.msra.mxu0 %v47
    %2655 = vmatprep.subr.mxu0 0.0
    %2656 = vmatpush1.msra.mxu0 %v46
    %2657 = vmatprep.subr.mxu0 0.0
    %2658 = vmatpush1.msra.mxu0 %v45
    %2659 = vmatprep.subr.mxu0 0.0
    %2660 = vmatpush1.msra.mxu0 %v44
    %2661 = vmatprep.subr.mxu0 0.0
    %2662 = vmatpush1.msra.mxu0 %v43
    %2663 = vmatprep.subr.mxu0 0.0
    %2664 = vmatpush1.msra.mxu0 %v42
    %2665 = vmatprep.subr.mxu0 0.0
    %2666 = vmatpush1.msra.mxu0 %v41
    %2667 = vmatprep.subr.mxu0 0.0
    %2668 = vmatpush1.msra.mxu0 %v40
    %2669 = vmatprep.subr.mxu0 0.0
    %2670 = vmatpush1.msra.mxu0 %v39
    %2671 = vmatprep.subr.mxu0 0.0
    %2672 = vmatpush1.msra.mxu0 %v38
    %2673 = vmatprep.subr.mxu0 0.0
    %2674 = vmatpush1.msra.mxu0 %v37
    %2675 = vmatprep.subr.mxu0 0.0
    %2676 = vmatpush1.msra.mxu0 %v36
    %2677 = vmatprep.subr.mxu0 0.0
    %2678 = vmatpush1.msra.mxu0 %v35
    %2679 = vmatprep.subr.mxu0 0.0
    %2680 = vmatpush2.msra.mxu0 %v66
    %2681 = vmatprep.subr.mxu0 0.0
    %2682 = vmatpush2.msra.mxu0 %v65
    %2683 = vmatprep.subr.mxu0 0.0
    %2684 = vmatpush2.msra.mxu0 %v64
    %2685 = vmatprep.subr.mxu0 0.0
    %2686 = vmatpush2.msra.mxu0 %v63
    %2687 = vmatprep.subr.mxu0 0.0
    %2688 = vmatpush2.msra.mxu0 %v62
    %2689 = vmatprep.subr.mxu0 0.0
    %2690 = vmatpush2.msra.mxu0 %v61
    %2691 = vmatprep.subr.mxu0 0.0
    %2692 = vmatpush2.msra.mxu0 %v60
    %2693 = vmatprep.subr.mxu0 0.0
    %2694 = vmatpush2.msra.mxu0 %v59
    %2695 = vmatprep.subr.mxu0 0.0
    %2696 = vmatpush2.msra.mxu0 %v58
    %2697 = vmatprep.subr.mxu0 0.0
    %2698 = vmatpush2.msra.mxu0 %v57
    %2699 = vmatprep.subr.mxu0 0.0
    %2700 = vmatpush2.msra.mxu0 %v56
    %2701 = vmatprep.subr.mxu0 0.0
    %2702 = vmatpush2.msra.mxu0 %v55
    %2703 = vmatprep.subr.mxu0 0.0
    %2704 = vmatpush2.msra.mxu0 %v54
    %2705 = vmatprep.subr.mxu0 0.0
    %2706 = vmatpush2.msra.mxu0 %v53
    %2707 = vmatprep.subr.mxu0 0.0
    %2708 = vmatpush2.msra.mxu0 %v52
    %2709 = vmatprep.subr.mxu0 0.0
    %2710 = vmatpush2.msra.mxu0 %v51
    %2711 = vmatprep.mubr.f32.mxu0 %v2646
    %2712 = vmatmul.mubr.f32.gmra.mxu0 %v2645
    %v2713 = vpop.f32.mrf.mxu0
    %v2714 = vadd.f32 %v72, %v2713
    %v2715 = vpop.f32.mrf.mxu0
    %2716 = vdwg.mxu0
    %s2717 = scalar_lea.vmem %s3, 2048
    %v2718 = vld [vmem:[%s2717] sm:$0xff]
    %v2719 = vld [vmem:[%s2717 + $0x8] sm:$0xff]
    %v2720 = vld [vmem:[%s2717 + $0x10] sm:$0xff]
    %v2721 = vld [vmem:[%s2717 + $0x18] sm:$0xff]
    %v2722 = vld [vmem:[%s2717 + $0x20] sm:$0xff]
    %v2723 = vld [vmem:[%s2717 + $0x28] sm:$0xff]
    %v2724 = vld [vmem:[%s2717 + $0x30] sm:$0xff]
    %v2725 = vld [vmem:[%s2717 + $0x38] sm:$0xff]
    %v2726 = vld [vmem:[%s2717 + $0x40] sm:$0xff]
    %v2727 = vld [vmem:[%s2717 + $0x48] sm:$0xff]
    %v2728 = vld [vmem:[%s2717 + $0x50] sm:$0xff]
    %v2729 = vld [vmem:[%s2717 + $0x58] sm:$0xff]
    %v2730 = vld [vmem:[%s2717 + $0x60] sm:$0xff]
    %v2731 = vld [vmem:[%s2717 + $0x68] sm:$0xff]
    %v2732 = vld [vmem:[%s2717 + $0x70] sm:$0xff]
    %v2733 = vld [vmem:[%s2717 + $0x78] sm:$0xff]
    %2734 = vmatprep.subr.mxu0 0.0
    %2735 = vmatpush1.msra.mxu0 %v2733
    %2736 = vmatprep.subr.mxu0 0.0
    %2737 = vmatpush1.msra.mxu0 %v2732
    %2738 = vmatprep.subr.mxu0 0.0
    %2739 = vmatpush1.msra.mxu0 %v2731
    %2740 = vmatprep.subr.mxu0 0.0
    %2741 = vmatpush1.msra.mxu0 %v2730
    %2742 = vmatprep.subr.mxu0 0.0
    %2743 = vmatpush1.msra.mxu0 %v2729
    %2744 = vmatprep.subr.mxu0 0.0
    %2745 = vmatpush1.msra.mxu0 %v2728
    %2746 = vmatprep.subr.mxu0 0.0
    %2747 = vmatpush1.msra.mxu0 %v2727
    %2748 = vmatprep.subr.mxu0 0.0
    %2749 = vmatpush1.msra.mxu0 %v2726
    %2750 = vmatprep.subr.mxu0 0.0
    %2751 = vmatpush1.msra.mxu0 %v2725
    %2752 = vmatprep.subr.mxu0 0.0
    %2753 = vmatpush1.msra.mxu0 %v2724
    %2754 = vmatprep.subr.mxu0 0.0
    %2755 = vmatpush1.msra.mxu0 %v2723
    %2756 = vmatprep.subr.mxu0 0.0
    %2757 = vmatpush1.msra.mxu0 %v2722
    %2758 = vmatprep.subr.mxu0 0.0
    %2759 = vmatpush1.msra.mxu0 %v2721
    %2760 = vmatprep.subr.mxu0 0.0
    %2761 = vmatpush1.msra.mxu0 %v2720
    %2762 = vmatprep.subr.mxu0 0.0
    %2763 = vmatpush1.msra.mxu0 %v2719
    %2764 = vmatprep.subr.mxu0 0.0
    %2765 = vmatpush1.msra.mxu0 %v2718
    %2766 = vmatprep.subr.mxu0 0.0
    %2767 = vmatpush2.msra.mxu0 0.0
    %2768 = vmatprep.subr.mxu0 0.0
    %2769 = vmatpush2.msra.mxu0 0.0
    %2770 = vmatprep.subr.mxu0 0.0
    %2771 = vmatpush2.msra.mxu0 0.0
    %2772 = vmatprep.subr.mxu0 0.0
    %2773 = vmatpush2.msra.mxu0 0.0
    %2774 = vmatprep.subr.mxu0 0.0
    %2775 = vmatpush2.msra.mxu0 0.0
    %2776 = vmatprep.subr.mxu0 0.0
    %2777 = vmatpush2.msra.mxu0 0.0
    %2778 = vmatprep.subr.mxu0 0.0
    %2779 = vmatpush2.msra.mxu0 0.0
    %2780 = vmatprep.subr.mxu0 0.0
    %2781 = vmatpush2.msra.mxu0 0.0
    %2782 = vmatprep.subr.mxu0 0.0
    %2783 = vmatpush2.msra.mxu0 0.0
    %2784 = vmatprep.subr.mxu0 0.0
    %2785 = vmatpush2.msra.mxu0 0.0
    %2786 = vmatprep.subr.mxu0 0.0
    %2787 = vmatpush2.msra.mxu0 0.0
    %2788 = vmatprep.subr.mxu0 0.0
    %2789 = vmatpush2.msra.mxu0 0.0
    %2790 = vmatprep.subr.mxu0 0.0
    %2791 = vmatpush2.msra.mxu0 0.0
    %2792 = vmatprep.subr.mxu0 0.0
    %2793 = vmatpush2.msra.mxu0 0.0
    %2794 = vmatprep.subr.mxu0 0.0
    %2795 = vmatpush2.msra.mxu0 0.0
    %2796 = vmatprep.subr.mxu0 0.0
    %2797 = vmatpush2.msra.mxu0 0.0
    %2798 = vmatprep.mubr.f32.mxu0 0.0
    %2799 = vmatmul.mubr.f32.gmra.mxu0 %v2714
    %v2800 = vpop.f32.mrf.mxu0
    %v2801 = vadd.f32 0.0, %v2800
    %v2802 = vpop.f32.mrf.mxu0
    %2803 = vdwg.mxu0
    %v2804 = vadd.f32 %v2643, %v2801
    %s2805 = scalar_lea.vmem %s0, 272
    %v2806 = vld [vmem:[%s2805] sm:$0xff]
    %v2807 = vld [vmem:[%s2805 + $0x8] sm:$0xff]
    %2808 = vmatprep.subr.mxu0 0.0
    %2809 = vmatpush1.msra.mxu0 %v50
    %2810 = vmatprep.subr.mxu0 0.0
    %2811 = vmatpush1.msra.mxu0 %v49
    %2812 = vmatprep.subr.mxu0 0.0
    %2813 = vmatpush1.msra.mxu0 %v48
    %2814 = vmatprep.subr.mxu0 0.0
    %2815 = vmatpush1.msra.mxu0 %v47
    %2816 = vmatprep.subr.mxu0 0.0
    %2817 = vmatpush1.msra.mxu0 %v46
    %2818 = vmatprep.subr.mxu0 0.0
    %2819 = vmatpush1.msra.mxu0 %v45
    %2820 = vmatprep.subr.mxu0 0.0
    %2821 = vmatpush1.msra.mxu0 %v44
    %2822 = vmatprep.subr.mxu0 0.0
    %2823 = vmatpush1.msra.mxu0 %v43
    %2824 = vmatprep.subr.mxu0 0.0
    %2825 = vmatpush1.msra.mxu0 %v42
    %2826 = vmatprep.subr.mxu0 0.0
    %2827 = vmatpush1.msra.mxu0 %v41
    %2828 = vmatprep.subr.mxu0 0.0
    %2829 = vmatpush1.msra.mxu0 %v40
    %2830 = vmatprep.subr.mxu0 0.0
    %2831 = vmatpush1.msra.mxu0 %v39
    %2832 = vmatprep.subr.mxu0 0.0
    %2833 = vmatpush1.msra.mxu0 %v38
    %2834 = vmatprep.subr.mxu0 0.0
    %2835 = vmatpush1.msra.mxu0 %v37
    %2836 = vmatprep.subr.mxu0 0.0
    %2837 = vmatpush1.msra.mxu0 %v36
    %2838 = vmatprep.subr.mxu0 0.0
    %2839 = vmatpush1.msra.mxu0 %v35
    %2840 = vmatprep.subr.mxu0 0.0
    %2841 = vmatpush2.msra.mxu0 %v66
    %2842 = vmatprep.subr.mxu0 0.0
    %2843 = vmatpush2.msra.mxu0 %v65
    %2844 = vmatprep.subr.mxu0 0.0
    %2845 = vmatpush2.msra.mxu0 %v64
    %2846 = vmatprep.subr.mxu0 0.0
    %2847 = vmatpush2.msra.mxu0 %v63
    %2848 = vmatprep.subr.mxu0 0.0
    %2849 = vmatpush2.msra.mxu0 %v62
    %2850 = vmatprep.subr.mxu0 0.0
    %2851 = vmatpush2.msra.mxu0 %v61
    %2852 = vmatprep.subr.mxu0 0.0
    %2853 = vmatpush2.msra.mxu0 %v60
    %2854 = vmatprep.subr.mxu0 0.0
    %2855 = vmatpush2.msra.mxu0 %v59
    %2856 = vmatprep.subr.mxu0 0.0
    %2857 = vmatpush2.msra.mxu0 %v58
    %2858 = vmatprep.subr.mxu0 0.0
    %2859 = vmatpush2.msra.mxu0 %v57
    %2860 = vmatprep.subr.mxu0 0.0
    %2861 = vmatpush2.msra.mxu0 %v56
    %2862 = vmatprep.subr.mxu0 0.0
    %2863 = vmatpush2.msra.mxu0 %v55
    %2864 = vmatprep.subr.mxu0 0.0
    %2865 = vmatpush2.msra.mxu0 %v54
    %2866 = vmatprep.subr.mxu0 0.0
    %2867 = vmatpush2.msra.mxu0 %v53
    %2868 = vmatprep.subr.mxu0 0.0
    %2869 = vmatpush2.msra.mxu0 %v52
    %2870 = vmatprep.subr.mxu0 0.0
    %2871 = vmatpush2.msra.mxu0 %v51
    %2872 = vmatprep.mubr.f32.mxu0 %v2807
    %2873 = vmatmul.mubr.f32.gmra.mxu0 %v2806
    %v2874 = vpop.f32.mrf.mxu0
    %v2875 = vadd.f32 %v72, %v2874
    %v2876 = vpop.f32.mrf.mxu0
    %2877 = vdwg.mxu0
    %s2878 = scalar_lea.vmem %s3, 2176
    %v2879 = vld [vmem:[%s2878] sm:$0xff]
    %v2880 = vld [vmem:[%s2878 + $0x8] sm:$0xff]
    %v2881 = vld [vmem:[%s2878 + $0x10] sm:$0xff]
    %v2882 = vld [vmem:[%s2878 + $0x18] sm:$0xff]
    %v2883 = vld [vmem:[%s2878 + $0x20] sm:$0xff]
    %v2884 = vld [vmem:[%s2878 + $0x28] sm:$0xff]
    %v2885 = vld [vmem:[%s2878 + $0x30] sm:$0xff]
    %v2886 = vld [vmem:[%s2878 + $0x38] sm:$0xff]
    %v2887 = vld [vmem:[%s2878 + $0x40] sm:$0xff]
    %v2888 = vld [vmem:[%s2878 + $0x48] sm:$0xff]
    %v2889 = vld [vmem:[%s2878 + $0x50] sm:$0xff]
    %v2890 = vld [vmem:[%s2878 + $0x58] sm:$0xff]
    %v2891 = vld [vmem:[%s2878 + $0x60] sm:$0xff]
    %v2892 = vld [vmem:[%s2878 + $0x68] sm:$0xff]
    %v2893 = vld [vmem:[%s2878 + $0x70] sm:$0xff]
    %v2894 = vld [vmem:[%s2878 + $0x78] sm:$0xff]
    %2895 = vmatprep.subr.mxu0 0.0
    %2896 = vmatpush1.msra.mxu0 %v2894
    %2897 = vmatprep.subr.mxu0 0.0
    %2898 = vmatpush1.msra.mxu0 %v2893
    %2899 = vmatprep.subr.mxu0 0.0
    %2900 = vmatpush1.msra.mxu0 %v2892
    %2901 = vmatprep.subr.mxu0 0.0
    %2902 = vmatpush1.msra.mxu0 %v2891
    %2903 = vmatprep.subr.mxu0 0.0
    %2904 = vmatpush1.msra.mxu0 %v2890
    %2905 = vmatprep.subr.mxu0 0.0
    %2906 = vmatpush1.msra.mxu0 %v2889
    %2907 = vmatprep.subr.mxu0 0.0
    %2908 = vmatpush1.msra.mxu0 %v2888
    %2909 = vmatprep.subr.mxu0 0.0
    %2910 = vmatpush1.msra.mxu0 %v2887
    %2911 = vmatprep.subr.mxu0 0.0
    %2912 = vmatpush1.msra.mxu0 %v2886
    %2913 = vmatprep.subr.mxu0 0.0
    %2914 = vmatpush1.msra.mxu0 %v2885
    %2915 = vmatprep.subr.mxu0 0.0
    %2916 = vmatpush1.msra.mxu0 %v2884
    %2917 = vmatprep.subr.mxu0 0.0
    %2918 = vmatpush1.msra.mxu0 %v2883
    %2919 = vmatprep.subr.mxu0 0.0
    %2920 = vmatpush1.msra.mxu0 %v2882
    %2921 = vmatprep.subr.mxu0 0.0
    %2922 = vmatpush1.msra.mxu0 %v2881
    %2923 = vmatprep.subr.mxu0 0.0
    %2924 = vmatpush1.msra.mxu0 %v2880
    %2925 = vmatprep.subr.mxu0 0.0
    %2926 = vmatpush1.msra.mxu0 %v2879
    %2927 = vmatprep.subr.mxu0 0.0
    %2928 = vmatpush2.msra.mxu0 0.0
    %2929 = vmatprep.subr.mxu0 0.0
    %2930 = vmatpush2.msra.mxu0 0.0
    %2931 = vmatprep.subr.mxu0 0.0
    %2932 = vmatpush2.msra.mxu0 0.0
    %2933 = vmatprep.subr.mxu0 0.0
    %2934 = vmatpush2.msra.mxu0 0.0
    %2935 = vmatprep.subr.mxu0 0.0
    %2936 = vmatpush2.msra.mxu0 0.0
    %2937 = vmatprep.subr.mxu0 0.0
    %2938 = vmatpush2.msra.mxu0 0.0
    %2939 = vmatprep.subr.mxu0 0.0
    %2940 = vmatpush2.msra.mxu0 0.0
    %2941 = vmatprep.subr.mxu0 0.0
    %2942 = vmatpush2.msra.mxu0 0.0
    %2943 = vmatprep.subr.mxu0 0.0
    %2944 = vmatpush2.msra.mxu0 0.0
    %2945 = vmatprep.subr.mxu0 0.0
    %2946 = vmatpush2.msra.mxu0 0.0
    %2947 = vmatprep.subr.mxu0 0.0
    %2948 = vmatpush2.msra.mxu0 0.0
    %2949 = vmatprep.subr.mxu0 0.0
    %2950 = vmatpush2.msra.mxu0 0.0
    %2951 = vmatprep.subr.mxu0 0.0
    %2952 = vmatpush2.msra.mxu0 0.0
    %2953 = vmatprep.subr.mxu0 0.0
    %2954 = vmatpush2.msra.mxu0 0.0
    %2955 = vmatprep.subr.mxu0 0.0
    %2956 = vmatpush2.msra.mxu0 0.0
    %2957 = vmatprep.subr.mxu0 0.0
    %2958 = vmatpush2.msra.mxu0 0.0
    %2959 = vmatprep.mubr.f32.mxu0 0.0
    %2960 = vmatmul.mubr.f32.gmra.mxu0 %v2875
    %v2961 = vpop.f32.mrf.mxu0
    %v2962 = vadd.f32 0.0, %v2961
    %v2963 = vpop.f32.mrf.mxu0
    %2964 = vdwg.mxu0
    %v2965 = vadd.f32 %v2804, %v2962
    %s2966 = scalar_lea.vmem %s0, 288
    %v2967 = vld [vmem:[%s2966] sm:$0xff]
    %v2968 = vld [vmem:[%s2966 + $0x8] sm:$0xff]
    %2969 = vmatprep.subr.mxu0 0.0
    %2970 = vmatpush1.msra.mxu0 %v50
    %2971 = vmatprep.subr.mxu0 0.0
    %2972 = vmatpush1.msra.mxu0 %v49
    %2973 = vmatprep.subr.mxu0 0.0
    %2974 = vmatpush1.msra.mxu0 %v48
    %2975 = vmatprep.subr.mxu0 0.0
    %2976 = vmatpush1.msra.mxu0 %v47
    %2977 = vmatprep.subr.mxu0 0.0
    %2978 = vmatpush1.msra.mxu0 %v46
    %2979 = vmatprep.subr.mxu0 0.0
    %2980 = vmatpush1.msra.mxu0 %v45
    %2981 = vmatprep.subr.mxu0 0.0
    %2982 = vmatpush1.msra.mxu0 %v44
    %2983 = vmatprep.subr.mxu0 0.0
    %2984 = vmatpush1.msra.mxu0 %v43
    %2985 = vmatprep.subr.mxu0 0.0
    %2986 = vmatpush1.msra.mxu0 %v42
    %2987 = vmatprep.subr.mxu0 0.0
    %2988 = vmatpush1.msra.mxu0 %v41
    %2989 = vmatprep.subr.mxu0 0.0
    %2990 = vmatpush1.msra.mxu0 %v40
    %2991 = vmatprep.subr.mxu0 0.0
    %2992 = vmatpush1.msra.mxu0 %v39
    %2993 = vmatprep.subr.mxu0 0.0
    %2994 = vmatpush1.msra.mxu0 %v38
    %2995 = vmatprep.subr.mxu0 0.0
    %2996 = vmatpush1.msra.mxu0 %v37
    %2997 = vmatprep.subr.mxu0 0.0
    %2998 = vmatpush1.msra.mxu0 %v36
    %2999 = vmatprep.subr.mxu0 0.0
    %3000 = vmatpush1.msra.mxu0 %v35
    %3001 = vmatprep.subr.mxu0 0.0
    %3002 = vmatpush2.msra.mxu0 %v66
    %3003 = vmatprep.subr.mxu0 0.0
    %3004 = vmatpush2.msra.mxu0 %v65
    %3005 = vmatprep.subr.mxu0 0.0
    %3006 = vmatpush2.msra.mxu0 %v64
    %3007 = vmatprep.subr.mxu0 0.0
    %3008 = vmatpush2.msra.mxu0 %v63
    %3009 = vmatprep.subr.mxu0 0.0
    %3010 = vmatpush2.msra.mxu0 %v62
    %3011 = vmatprep.subr.mxu0 0.0
    %3012 = vmatpush2.msra.mxu0 %v61
    %3013 = vmatprep.subr.mxu0 0.0
    %3014 = vmatpush2.msra.mxu0 %v60
    %3015 = vmatprep.subr.mxu0 0.0
    %3016 = vmatpush2.msra.mxu0 %v59
    %3017 = vmatprep.subr.mxu0 0.0
    %3018 = vmatpush2.msra.mxu0 %v58
    %3019 = vmatprep.subr.mxu0 0.0
    %3020 = vmatpush2.msra.mxu0 %v57
    %3021 = vmatprep.subr.mxu0 0.0
    %3022 = vmatpush2.msra.mxu0 %v56
    %3023 = vmatprep.subr.mxu0 0.0
    %3024 = vmatpush2.msra.mxu0 %v55
    %3025 = vmatprep.subr.mxu0 0.0
    %3026 = vmatpush2.msra.mxu0 %v54
    %3027 = vmatprep.subr.mxu0 0.0
    %3028 = vmatpush2.msra.mxu0 %v53
    %3029 = vmatprep.subr.mxu0 0.0
    %3030 = vmatpush2.msra.mxu0 %v52
    %3031 = vmatprep.subr.mxu0 0.0
    %3032 = vmatpush2.msra.mxu0 %v51
    %3033 = vmatprep.mubr.f32.mxu0 %v2968
    %3034 = vmatmul.mubr.f32.gmra.mxu0 %v2967
    %v3035 = vpop.f32.mrf.mxu0
    %v3036 = vadd.f32 %v72, %v3035
    %v3037 = vpop.f32.mrf.mxu0
    %3038 = vdwg.mxu0
    %s3039 = scalar_lea.vmem %s3, 2304
    %v3040 = vld [vmem:[%s3039] sm:$0xff]
    %v3041 = vld [vmem:[%s3039 + $0x8] sm:$0xff]
    %v3042 = vld [vmem:[%s3039 + $0x10] sm:$0xff]
    %v3043 = vld [vmem:[%s3039 + $0x18] sm:$0xff]
    %v3044 = vld [vmem:[%s3039 + $0x20] sm:$0xff]
    %v3045 = vld [vmem:[%s3039 + $0x28] sm:$0xff]
    %v3046 = vld [vmem:[%s3039 + $0x30] sm:$0xff]
    %v3047 = vld [vmem:[%s3039 + $0x38] sm:$0xff]
    %v3048 = vld [vmem:[%s3039 + $0x40] sm:$0xff]
    %v3049 = vld [vmem:[%s3039 + $0x48] sm:$0xff]
    %v3050 = vld [vmem:[%s3039 + $0x50] sm:$0xff]
    %v3051 = vld [vmem:[%s3039 + $0x58] sm:$0xff]
    %v3052 = vld [vmem:[%s3039 + $0x60] sm:$0xff]
    %v3053 = vld [vmem:[%s3039 + $0x68] sm:$0xff]
    %v3054 = vld [vmem:[%s3039 + $0x70] sm:$0xff]
    %v3055 = vld [vmem:[%s3039 + $0x78] sm:$0xff]
    %3056 = vmatprep.subr.mxu0 0.0
    %3057 = vmatpush1.msra.mxu0 %v3055
    %3058 = vmatprep.subr.mxu0 0.0
    %3059 = vmatpush1.msra.mxu0 %v3054
    %3060 = vmatprep.subr.mxu0 0.0
    %3061 = vmatpush1.msra.mxu0 %v3053
    %3062 = vmatprep.subr.mxu0 0.0
    %3063 = vmatpush1.msra.mxu0 %v3052
    %3064 = vmatprep.subr.mxu0 0.0
    %3065 = vmatpush1.msra.mxu0 %v3051
    %3066 = vmatprep.subr.mxu0 0.0
    %3067 = vmatpush1.msra.mxu0 %v3050
    %3068 = vmatprep.subr.mxu0 0.0
    %3069 = vmatpush1.msra.mxu0 %v3049
    %3070 = vmatprep.subr.mxu0 0.0
    %3071 = vmatpush1.msra.mxu0 %v3048
    %3072 = vmatprep.subr.mxu0 0.0
    %3073 = vmatpush1.msra.mxu0 %v3047
    %3074 = vmatprep.subr.mxu0 0.0
    %3075 = vmatpush1.msra.mxu0 %v3046
    %3076 = vmatprep.subr.mxu0 0.0
    %3077 = vmatpush1.msra.mxu0 %v3045
    %3078 = vmatprep.subr.mxu0 0.0
    %3079 = vmatpush1.msra.mxu0 %v3044
    %3080 = vmatprep.subr.mxu0 0.0
    %3081 = vmatpush1.msra.mxu0 %v3043
    %3082 = vmatprep.subr.mxu0 0.0
    %3083 = vmatpush1.msra.mxu0 %v3042
    %3084 = vmatprep.subr.mxu0 0.0
    %3085 = vmatpush1.msra.mxu0 %v3041
    %3086 = vmatprep.subr.mxu0 0.0
    %3087 = vmatpush1.msra.mxu0 %v3040
    %3088 = vmatprep.subr.mxu0 0.0
    %3089 = vmatpush2.msra.mxu0 0.0
    %3090 = vmatprep.subr.mxu0 0.0
    %3091 = vmatpush2.msra.mxu0 0.0
    %3092 = vmatprep.subr.mxu0 0.0
    %3093 = vmatpush2.msra.mxu0 0.0
    %3094 = vmatprep.subr.mxu0 0.0
    %3095 = vmatpush2.msra.mxu0 0.0
    %3096 = vmatprep.subr.mxu0 0.0
    %3097 = vmatpush2.msra.mxu0 0.0
    %3098 = vmatprep.subr.mxu0 0.0
    %3099 = vmatpush2.msra.mxu0 0.0
    %3100 = vmatprep.subr.mxu0 0.0
    %3101 = vmatpush2.msra.mxu0 0.0
    %3102 = vmatprep.subr.mxu0 0.0
    %3103 = vmatpush2.msra.mxu0 0.0
    %3104 = vmatprep.subr.mxu0 0.0
    %3105 = vmatpush2.msra.mxu0 0.0
    %3106 = vmatprep.subr.mxu0 0.0
    %3107 = vmatpush2.msra.mxu0 0.0
    %3108 = vmatprep.subr.mxu0 0.0
    %3109 = vmatpush2.msra.mxu0 0.0
    %3110 = vmatprep.subr.mxu0 0.0
    %3111 = vmatpush2.msra.mxu0 0.0
    %3112 = vmatprep.subr.mxu0 0.0
    %3113 = vmatpush2.msra.mxu0 0.0
    %3114 = vmatprep.subr.mxu0 0.0
    %3115 = vmatpush2.msra.mxu0 0.0
    %3116 = vmatprep.subr.mxu0 0.0
    %3117 = vmatpush2.msra.mxu0 0.0
    %3118 = vmatprep.subr.mxu0 0.0
    %3119 = vmatpush2.msra.mxu0 0.0
    %3120 = vmatprep.mubr.f32.mxu0 0.0
    %3121 = vmatmul.mubr.f32.gmra.mxu0 %v3036
    %v3122 = vpop.f32.mrf.mxu0
    %v3123 = vadd.f32 0.0, %v3122
    %v3124 = vpop.f32.mrf.mxu0
    %3125 = vdwg.mxu0
    %v3126 = vadd.f32 %v2965, %v3123
    %s3127 = scalar_lea.vmem %s0, 304
    %v3128 = vld [vmem:[%s3127] sm:$0xff]
    %v3129 = vld [vmem:[%s3127 + $0x8] sm:$0xff]
    %3130 = vmatprep.subr.mxu0 0.0
    %3131 = vmatpush1.msra.mxu0 %v50
    %3132 = vmatprep.subr.mxu0 0.0
    %3133 = vmatpush1.msra.mxu0 %v49
    %3134 = vmatprep.subr.mxu0 0.0
    %3135 = vmatpush1.msra.mxu0 %v48
    %3136 = vmatprep.subr.mxu0 0.0
    %3137 = vmatpush1.msra.mxu0 %v47
    %3138 = vmatprep.subr.mxu0 0.0
    %3139 = vmatpush1.msra.mxu0 %v46
    %3140 = vmatprep.subr.mxu0 0.0
    %3141 = vmatpush1.msra.mxu0 %v45
    %3142 = vmatprep.subr.mxu0 0.0
    %3143 = vmatpush1.msra.mxu0 %v44
    %3144 = vmatprep.subr.mxu0 0.0
    %3145 = vmatpush1.msra.mxu0 %v43
    %3146 = vmatprep.subr.mxu0 0.0
    %3147 = vmatpush1.msra.mxu0 %v42
    %3148 = vmatprep.subr.mxu0 0.0
    %3149 = vmatpush1.msra.mxu0 %v41
    %3150 = vmatprep.subr.mxu0 0.0
    %3151 = vmatpush1.msra.mxu0 %v40
    %3152 = vmatprep.subr.mxu0 0.0
    %3153 = vmatpush1.msra.mxu0 %v39
    %3154 = vmatprep.subr.mxu0 0.0
    %3155 = vmatpush1.msra.mxu0 %v38
    %3156 = vmatprep.subr.mxu0 0.0
    %3157 = vmatpush1.msra.mxu0 %v37
    %3158 = vmatprep.subr.mxu0 0.0
    %3159 = vmatpush1.msra.mxu0 %v36
    %3160 = vmatprep.subr.mxu0 0.0
    %3161 = vmatpush1.msra.mxu0 %v35
    %3162 = vmatprep.subr.mxu0 0.0
    %3163 = vmatpush2.msra.mxu0 %v66
    %3164 = vmatprep.subr.mxu0 0.0
    %3165 = vmatpush2.msra.mxu0 %v65
    %3166 = vmatprep.subr.mxu0 0.0
    %3167 = vmatpush2.msra.mxu0 %v64
    %3168 = vmatprep.subr.mxu0 0.0
    %3169 = vmatpush2.msra.mxu0 %v63
    %3170 = vmatprep.subr.mxu0 0.0
    %3171 = vmatpush2.msra.mxu0 %v62
    %3172 = vmatprep.subr.mxu0 0.0
    %3173 = vmatpush2.msra.mxu0 %v61
    %3174 = vmatprep.subr.mxu0 0.0
    %3175 = vmatpush2.msra.mxu0 %v60
    %3176 = vmatprep.subr.mxu0 0.0
    %3177 = vmatpush2.msra.mxu0 %v59
    %3178 = vmatprep.subr.mxu0 0.0
    %3179 = vmatpush2.msra.mxu0 %v58
    %3180 = vmatprep.subr.mxu0 0.0
    %3181 = vmatpush2.msra.mxu0 %v57
    %3182 = vmatprep.subr.mxu0 0.0
    %3183 = vmatpush2.msra.mxu0 %v56
    %3184 = vmatprep.subr.mxu0 0.0
    %3185 = vmatpush2.msra.mxu0 %v55
    %3186 = vmatprep.subr.mxu0 0.0
    %3187 = vmatpush2.msra.mxu0 %v54
    %3188 = vmatprep.subr.mxu0 0.0
    %3189 = vmatpush2.msra.mxu0 %v53
    %3190 = vmatprep.subr.mxu0 0.0
    %3191 = vmatpush2.msra.mxu0 %v52
    %3192 = vmatprep.subr.mxu0 0.0
    %3193 = vmatpush2.msra.mxu0 %v51
    %3194 = vmatprep.mubr.f32.mxu0 %v3129
    %3195 = vmatmul.mubr.f32.gmra.mxu0 %v3128
    %v3196 = vpop.f32.mrf.mxu0
    %v3197 = vadd.f32 %v72, %v3196
    %v3198 = vpop.f32.mrf.mxu0
    %3199 = vdwg.mxu0
    %s3200 = scalar_lea.vmem %s3, 2432
    %v3201 = vld [vmem:[%s3200] sm:$0xff]
    %v3202 = vld [vmem:[%s3200 + $0x8] sm:$0xff]
    %v3203 = vld [vmem:[%s3200 + $0x10] sm:$0xff]
    %v3204 = vld [vmem:[%s3200 + $0x18] sm:$0xff]
    %v3205 = vld [vmem:[%s3200 + $0x20] sm:$0xff]
    %v3206 = vld [vmem:[%s3200 + $0x28] sm:$0xff]
    %v3207 = vld [vmem:[%s3200 + $0x30] sm:$0xff]
    %v3208 = vld [vmem:[%s3200 + $0x38] sm:$0xff]
    %v3209 = vld [vmem:[%s3200 + $0x40] sm:$0xff]
    %v3210 = vld [vmem:[%s3200 + $0x48] sm:$0xff]
    %v3211 = vld [vmem:[%s3200 + $0x50] sm:$0xff]
    %v3212 = vld [vmem:[%s3200 + $0x58] sm:$0xff]
    %v3213 = vld [vmem:[%s3200 + $0x60] sm:$0xff]
    %v3214 = vld [vmem:[%s3200 + $0x68] sm:$0xff]
    %v3215 = vld [vmem:[%s3200 + $0x70] sm:$0xff]
    %v3216 = vld [vmem:[%s3200 + $0x78] sm:$0xff]
    %3217 = vmatprep.subr.mxu0 0.0
    %3218 = vmatpush1.msra.mxu0 %v3216
    %3219 = vmatprep.subr.mxu0 0.0
    %3220 = vmatpush1.msra.mxu0 %v3215
    %3221 = vmatprep.subr.mxu0 0.0
    %3222 = vmatpush1.msra.mxu0 %v3214
    %3223 = vmatprep.subr.mxu0 0.0
    %3224 = vmatpush1.msra.mxu0 %v3213
    %3225 = vmatprep.subr.mxu0 0.0
    %3226 = vmatpush1.msra.mxu0 %v3212
    %3227 = vmatprep.subr.mxu0 0.0
    %3228 = vmatpush1.msra.mxu0 %v3211
    %3229 = vmatprep.subr.mxu0 0.0
    %3230 = vmatpush1.msra.mxu0 %v3210
    %3231 = vmatprep.subr.mxu0 0.0
    %3232 = vmatpush1.msra.mxu0 %v3209
    %3233 = vmatprep.subr.mxu0 0.0
    %3234 = vmatpush1.msra.mxu0 %v3208
    %3235 = vmatprep.subr.mxu0 0.0
    %3236 = vmatpush1.msra.mxu0 %v3207
    %3237 = vmatprep.subr.mxu0 0.0
    %3238 = vmatpush1.msra.mxu0 %v3206
    %3239 = vmatprep.subr.mxu0 0.0
    %3240 = vmatpush1.msra.mxu0 %v3205
    %3241 = vmatprep.subr.mxu0 0.0
    %3242 = vmatpush1.msra.mxu0 %v3204
    %3243 = vmatprep.subr.mxu0 0.0
    %3244 = vmatpush1.msra.mxu0 %v3203
    %3245 = vmatprep.subr.mxu0 0.0
    %3246 = vmatpush1.msra.mxu0 %v3202
    %3247 = vmatprep.subr.mxu0 0.0
    %3248 = vmatpush1.msra.mxu0 %v3201
    %3249 = vmatprep.subr.mxu0 0.0
    %3250 = vmatpush2.msra.mxu0 0.0
    %3251 = vmatprep.subr.mxu0 0.0
    %3252 = vmatpush2.msra.mxu0 0.0
    %3253 = vmatprep.subr.mxu0 0.0
    %3254 = vmatpush2.msra.mxu0 0.0
    %3255 = vmatprep.subr.mxu0 0.0
    %3256 = vmatpush2.msra.mxu0 0.0
    %3257 = vmatprep.subr.mxu0 0.0
    %3258 = vmatpush2.msra.mxu0 0.0
    %3259 = vmatprep.subr.mxu0 0.0
    %3260 = vmatpush2.msra.mxu0 0.0
    %3261 = vmatprep.subr.mxu0 0.0
    %3262 = vmatpush2.msra.mxu0 0.0
    %3263 = vmatprep.subr.mxu0 0.0
    %3264 = vmatpush2.msra.mxu0 0.0
    %3265 = vmatprep.subr.mxu0 0.0
    %3266 = vmatpush2.msra.mxu0 0.0
    %3267 = vmatprep.subr.mxu0 0.0
    %3268 = vmatpush2.msra.mxu0 0.0
    %3269 = vmatprep.subr.mxu0 0.0
    %3270 = vmatpush2.msra.mxu0 0.0
    %3271 = vmatprep.subr.mxu0 0.0
    %3272 = vmatpush2.msra.mxu0 0.0
    %3273 = vmatprep.subr.mxu0 0.0
    %3274 = vmatpush2.msra.mxu0 0.0
    %3275 = vmatprep.subr.mxu0 0.0
    %3276 = vmatpush2.msra.mxu0 0.0
    %3277 = vmatprep.subr.mxu0 0.0
    %3278 = vmatpush2.msra.mxu0 0.0
    %3279 = vmatprep.subr.mxu0 0.0
    %3280 = vmatpush2.msra.mxu0 0.0
    %3281 = vmatprep.mubr.f32.mxu0 0.0
    %3282 = vmatmul.mubr.f32.gmra.mxu0 %v3197
    %v3283 = vpop.f32.mrf.mxu0
    %v3284 = vadd.f32 0.0, %v3283
    %v3285 = vpop.f32.mrf.mxu0
    %3286 = vdwg.mxu0
    %v3287 = vadd.f32 %v3126, %v3284
    %s3288 = scalar_lea.vmem %s0, 320
    %v3289 = vld [vmem:[%s3288] sm:$0xff]
    %v3290 = vld [vmem:[%s3288 + $0x8] sm:$0xff]
    %3291 = vmatprep.subr.mxu0 0.0
    %3292 = vmatpush1.msra.mxu0 %v50
    %3293 = vmatprep.subr.mxu0 0.0
    %3294 = vmatpush1.msra.mxu0 %v49
    %3295 = vmatprep.subr.mxu0 0.0
    %3296 = vmatpush1.msra.mxu0 %v48
    %3297 = vmatprep.subr.mxu0 0.0
    %3298 = vmatpush1.msra.mxu0 %v47
    %3299 = vmatprep.subr.mxu0 0.0
    %3300 = vmatpush1.msra.mxu0 %v46
    %3301 = vmatprep.subr.mxu0 0.0
    %3302 = vmatpush1.msra.mxu0 %v45
    %3303 = vmatprep.subr.mxu0 0.0
    %3304 = vmatpush1.msra.mxu0 %v44
    %3305 = vmatprep.subr.mxu0 0.0
    %3306 = vmatpush1.msra.mxu0 %v43
    %3307 = vmatprep.subr.mxu0 0.0
    %3308 = vmatpush1.msra.mxu0 %v42
    %3309 = vmatprep.subr.mxu0 0.0
    %3310 = vmatpush1.msra.mxu0 %v41
    %3311 = vmatprep.subr.mxu0 0.0
    %3312 = vmatpush1.msra.mxu0 %v40
    %3313 = vmatprep.subr.mxu0 0.0
    %3314 = vmatpush1.msra.mxu0 %v39
    %3315 = vmatprep.subr.mxu0 0.0
    %3316 = vmatpush1.msra.mxu0 %v38
    %3317 = vmatprep.subr.mxu0 0.0
    %3318 = vmatpush1.msra.mxu0 %v37
    %3319 = vmatprep.subr.mxu0 0.0
    %3320 = vmatpush1.msra.mxu0 %v36
    %3321 = vmatprep.subr.mxu0 0.0
    %3322 = vmatpush1.msra.mxu0 %v35
    %3323 = vmatprep.subr.mxu0 0.0
    %3324 = vmatpush2.msra.mxu0 %v66
    %3325 = vmatprep.subr.mxu0 0.0
    %3326 = vmatpush2.msra.mxu0 %v65
    %3327 = vmatprep.subr.mxu0 0.0
    %3328 = vmatpush2.msra.mxu0 %v64
    %3329 = vmatprep.subr.mxu0 0.0
    %3330 = vmatpush2.msra.mxu0 %v63
    %3331 = vmatprep.subr.mxu0 0.0
    %3332 = vmatpush2.msra.mxu0 %v62
    %3333 = vmatprep.subr.mxu0 0.0
    %3334 = vmatpush2.msra.mxu0 %v61
    %3335 = vmatprep.subr.mxu0 0.0
    %3336 = vmatpush2.msra.mxu0 %v60
    %3337 = vmatprep.subr.mxu0 0.0
    %3338 = vmatpush2.msra.mxu0 %v59
    %3339 = vmatprep.subr.mxu0 0.0
    %3340 = vmatpush2.msra.mxu0 %v58
    %3341 = vmatprep.subr.mxu0 0.0
    %3342 = vmatpush2.msra.mxu0 %v57
    %3343 = vmatprep.subr.mxu0 0.0
    %3344 = vmatpush2.msra.mxu0 %v56
    %3345 = vmatprep.subr.mxu0 0.0
    %3346 = vmatpush2.msra.mxu0 %v55
    %3347 = vmatprep.subr.mxu0 0.0
    %3348 = vmatpush2.msra.mxu0 %v54
    %3349 = vmatprep.subr.mxu0 0.0
    %3350 = vmatpush2.msra.mxu0 %v53
    %3351 = vmatprep.subr.mxu0 0.0
    %3352 = vmatpush2.msra.mxu0 %v52
    %3353 = vmatprep.subr.mxu0 0.0
    %3354 = vmatpush2.msra.mxu0 %v51
    %3355 = vmatprep.mubr.f32.mxu0 %v3290
    %3356 = vmatmul.mubr.f32.gmra.mxu0 %v3289
    %v3357 = vpop.f32.mrf.mxu0
    %v3358 = vadd.f32 %v72, %v3357
    %v3359 = vpop.f32.mrf.mxu0
    %3360 = vdwg.mxu0
    %s3361 = scalar_lea.vmem %s3, 2560
    %v3362 = vld [vmem:[%s3361] sm:$0xff]
    %v3363 = vld [vmem:[%s3361 + $0x8] sm:$0xff]
    %v3364 = vld [vmem:[%s3361 + $0x10] sm:$0xff]
    %v3365 = vld [vmem:[%s3361 + $0x18] sm:$0xff]
    %v3366 = vld [vmem:[%s3361 + $0x20] sm:$0xff]
    %v3367 = vld [vmem:[%s3361 + $0x28] sm:$0xff]
    %v3368 = vld [vmem:[%s3361 + $0x30] sm:$0xff]
    %v3369 = vld [vmem:[%s3361 + $0x38] sm:$0xff]
    %v3370 = vld [vmem:[%s3361 + $0x40] sm:$0xff]
    %v3371 = vld [vmem:[%s3361 + $0x48] sm:$0xff]
    %v3372 = vld [vmem:[%s3361 + $0x50] sm:$0xff]
    %v3373 = vld [vmem:[%s3361 + $0x58] sm:$0xff]
    %v3374 = vld [vmem:[%s3361 + $0x60] sm:$0xff]
    %v3375 = vld [vmem:[%s3361 + $0x68] sm:$0xff]
    %v3376 = vld [vmem:[%s3361 + $0x70] sm:$0xff]
    %v3377 = vld [vmem:[%s3361 + $0x78] sm:$0xff]
    %3378 = vmatprep.subr.mxu0 0.0
    %3379 = vmatpush1.msra.mxu0 %v3377
    %3380 = vmatprep.subr.mxu0 0.0
    %3381 = vmatpush1.msra.mxu0 %v3376
    %3382 = vmatprep.subr.mxu0 0.0
    %3383 = vmatpush1.msra.mxu0 %v3375
    %3384 = vmatprep.subr.mxu0 0.0
    %3385 = vmatpush1.msra.mxu0 %v3374
    %3386 = vmatprep.subr.mxu0 0.0
    %3387 = vmatpush1.msra.mxu0 %v3373
    %3388 = vmatprep.subr.mxu0 0.0
    %3389 = vmatpush1.msra.mxu0 %v3372
    %3390 = vmatprep.subr.mxu0 0.0
    %3391 = vmatpush1.msra.mxu0 %v3371
    %3392 = vmatprep.subr.mxu0 0.0
    %3393 = vmatpush1.msra.mxu0 %v3370
    %3394 = vmatprep.subr.mxu0 0.0
    %3395 = vmatpush1.msra.mxu0 %v3369
    %3396 = vmatprep.subr.mxu0 0.0
    %3397 = vmatpush1.msra.mxu0 %v3368
    %3398 = vmatprep.subr.mxu0 0.0
    %3399 = vmatpush1.msra.mxu0 %v3367
    %3400 = vmatprep.subr.mxu0 0.0
    %3401 = vmatpush1.msra.mxu0 %v3366
    %3402 = vmatprep.subr.mxu0 0.0
    %3403 = vmatpush1.msra.mxu0 %v3365
    %3404 = vmatprep.subr.mxu0 0.0
    %3405 = vmatpush1.msra.mxu0 %v3364
    %3406 = vmatprep.subr.mxu0 0.0
    %3407 = vmatpush1.msra.mxu0 %v3363
    %3408 = vmatprep.subr.mxu0 0.0
    %3409 = vmatpush1.msra.mxu0 %v3362
    %3410 = vmatprep.subr.mxu0 0.0
    %3411 = vmatpush2.msra.mxu0 0.0
    %3412 = vmatprep.subr.mxu0 0.0
    %3413 = vmatpush2.msra.mxu0 0.0
    %3414 = vmatprep.subr.mxu0 0.0
    %3415 = vmatpush2.msra.mxu0 0.0
    %3416 = vmatprep.subr.mxu0 0.0
    %3417 = vmatpush2.msra.mxu0 0.0
    %3418 = vmatprep.subr.mxu0 0.0
    %3419 = vmatpush2.msra.mxu0 0.0
    %3420 = vmatprep.subr.mxu0 0.0
    %3421 = vmatpush2.msra.mxu0 0.0
    %3422 = vmatprep.subr.mxu0 0.0
    %3423 = vmatpush2.msra.mxu0 0.0
    %3424 = vmatprep.subr.mxu0 0.0
    %3425 = vmatpush2.msra.mxu0 0.0
    %3426 = vmatprep.subr.mxu0 0.0
    %3427 = vmatpush2.msra.mxu0 0.0
    %3428 = vmatprep.subr.mxu0 0.0
    %3429 = vmatpush2.msra.mxu0 0.0
    %3430 = vmatprep.subr.mxu0 0.0
    %3431 = vmatpush2.msra.mxu0 0.0
    %3432 = vmatprep.subr.mxu0 0.0
    %3433 = vmatpush2.msra.mxu0 0.0
    %3434 = vmatprep.subr.mxu0 0.0
    %3435 = vmatpush2.msra.mxu0 0.0
    %3436 = vmatprep.subr.mxu0 0.0
    %3437 = vmatpush2.msra.mxu0 0.0
    %3438 = vmatprep.subr.mxu0 0.0
    %3439 = vmatpush2.msra.mxu0 0.0
    %3440 = vmatprep.subr.mxu0 0.0
    %3441 = vmatpush2.msra.mxu0 0.0
    %3442 = vmatprep.mubr.f32.mxu0 0.0
    %3443 = vmatmul.mubr.f32.gmra.mxu0 %v3358
    %v3444 = vpop.f32.mrf.mxu0
    %v3445 = vadd.f32 0.0, %v3444
    %v3446 = vpop.f32.mrf.mxu0
    %3447 = vdwg.mxu0
    %v3448 = vadd.f32 %v3287, %v3445
    %s3449 = scalar_lea.vmem %s0, 336
    %v3450 = vld [vmem:[%s3449] sm:$0xff]
    %v3451 = vld [vmem:[%s3449 + $0x8] sm:$0xff]
    %3452 = vmatprep.subr.mxu0 0.0
    %3453 = vmatpush1.msra.mxu0 %v50
    %3454 = vmatprep.subr.mxu0 0.0
    %3455 = vmatpush1.msra.mxu0 %v49
    %3456 = vmatprep.subr.mxu0 0.0
    %3457 = vmatpush1.msra.mxu0 %v48
    %3458 = vmatprep.subr.mxu0 0.0
    %3459 = vmatpush1.msra.mxu0 %v47
    %3460 = vmatprep.subr.mxu0 0.0
    %3461 = vmatpush1.msra.mxu0 %v46
    %3462 = vmatprep.subr.mxu0 0.0
    %3463 = vmatpush1.msra.mxu0 %v45
    %3464 = vmatprep.subr.mxu0 0.0
    %3465 = vmatpush1.msra.mxu0 %v44
    %3466 = vmatprep.subr.mxu0 0.0
    %3467 = vmatpush1.msra.mxu0 %v43
    %3468 = vmatprep.subr.mxu0 0.0
    %3469 = vmatpush1.msra.mxu0 %v42
    %3470 = vmatprep.subr.mxu0 0.0
    %3471 = vmatpush1.msra.mxu0 %v41
    %3472 = vmatprep.subr.mxu0 0.0
    %3473 = vmatpush1.msra.mxu0 %v40
    %3474 = vmatprep.subr.mxu0 0.0
    %3475 = vmatpush1.msra.mxu0 %v39
    %3476 = vmatprep.subr.mxu0 0.0
    %3477 = vmatpush1.msra.mxu0 %v38
    %3478 = vmatprep.subr.mxu0 0.0
    %3479 = vmatpush1.msra.mxu0 %v37
    %3480 = vmatprep.subr.mxu0 0.0
    %3481 = vmatpush1.msra.mxu0 %v36
    %3482 = vmatprep.subr.mxu0 0.0
    %3483 = vmatpush1.msra.mxu0 %v35
    %3484 = vmatprep.subr.mxu0 0.0
    %3485 = vmatpush2.msra.mxu0 %v66
    %3486 = vmatprep.subr.mxu0 0.0
    %3487 = vmatpush2.msra.mxu0 %v65
    %3488 = vmatprep.subr.mxu0 0.0
    %3489 = vmatpush2.msra.mxu0 %v64
    %3490 = vmatprep.subr.mxu0 0.0
    %3491 = vmatpush2.msra.mxu0 %v63
    %3492 = vmatprep.subr.mxu0 0.0
    %3493 = vmatpush2.msra.mxu0 %v62
    %3494 = vmatprep.subr.mxu0 0.0
    %3495 = vmatpush2.msra.mxu0 %v61
    %3496 = vmatprep.subr.mxu0 0.0
    %3497 = vmatpush2.msra.mxu0 %v60
    %3498 = vmatprep.subr.mxu0 0.0
    %3499 = vmatpush2.msra.mxu0 %v59
    %3500 = vmatprep.subr.mxu0 0.0
    %3501 = vmatpush2.msra.mxu0 %v58
    %3502 = vmatprep.subr.mxu0 0.0
    %3503 = vmatpush2.msra.mxu0 %v57
    %3504 = vmatprep.subr.mxu0 0.0
    %3505 = vmatpush2.msra.mxu0 %v56
    %3506 = vmatprep.subr.mxu0 0.0
    %3507 = vmatpush2.msra.mxu0 %v55
    %3508 = vmatprep.subr.mxu0 0.0
    %3509 = vmatpush2.msra.mxu0 %v54
    %3510 = vmatprep.subr.mxu0 0.0
    %3511 = vmatpush2.msra.mxu0 %v53
    %3512 = vmatprep.subr.mxu0 0.0
    %3513 = vmatpush2.msra.mxu0 %v52
    %3514 = vmatprep.subr.mxu0 0.0
    %3515 = vmatpush2.msra.mxu0 %v51
    %3516 = vmatprep.mubr.f32.mxu0 %v3451
    %3517 = vmatmul.mubr.f32.gmra.mxu0 %v3450
    %v3518 = vpop.f32.mrf.mxu0
    %v3519 = vadd.f32 %v72, %v3518
    %v3520 = vpop.f32.mrf.mxu0
    %3521 = vdwg.mxu0
    %s3522 = scalar_lea.vmem %s3, 2688
    %v3523 = vld [vmem:[%s3522] sm:$0xff]
    %v3524 = vld [vmem:[%s3522 + $0x8] sm:$0xff]
    %v3525 = vld [vmem:[%s3522 + $0x10] sm:$0xff]
    %v3526 = vld [vmem:[%s3522 + $0x18] sm:$0xff]
    %v3527 = vld [vmem:[%s3522 + $0x20] sm:$0xff]
    %v3528 = vld [vmem:[%s3522 + $0x28] sm:$0xff]
    %v3529 = vld [vmem:[%s3522 + $0x30] sm:$0xff]
    %v3530 = vld [vmem:[%s3522 + $0x38] sm:$0xff]
    %v3531 = vld [vmem:[%s3522 + $0x40] sm:$0xff]
    %v3532 = vld [vmem:[%s3522 + $0x48] sm:$0xff]
    %v3533 = vld [vmem:[%s3522 + $0x50] sm:$0xff]
    %v3534 = vld [vmem:[%s3522 + $0x58] sm:$0xff]
    %v3535 = vld [vmem:[%s3522 + $0x60] sm:$0xff]
    %v3536 = vld [vmem:[%s3522 + $0x68] sm:$0xff]
    %v3537 = vld [vmem:[%s3522 + $0x70] sm:$0xff]
    %v3538 = vld [vmem:[%s3522 + $0x78] sm:$0xff]
    %3539 = vmatprep.subr.mxu0 0.0
    %3540 = vmatpush1.msra.mxu0 %v3538
    %3541 = vmatprep.subr.mxu0 0.0
    %3542 = vmatpush1.msra.mxu0 %v3537
    %3543 = vmatprep.subr.mxu0 0.0
    %3544 = vmatpush1.msra.mxu0 %v3536
    %3545 = vmatprep.subr.mxu0 0.0
    %3546 = vmatpush1.msra.mxu0 %v3535
    %3547 = vmatprep.subr.mxu0 0.0
    %3548 = vmatpush1.msra.mxu0 %v3534
    %3549 = vmatprep.subr.mxu0 0.0
    %3550 = vmatpush1.msra.mxu0 %v3533
    %3551 = vmatprep.subr.mxu0 0.0
    %3552 = vmatpush1.msra.mxu0 %v3532
    %3553 = vmatprep.subr.mxu0 0.0
    %3554 = vmatpush1.msra.mxu0 %v3531
    %3555 = vmatprep.subr.mxu0 0.0
    %3556 = vmatpush1.msra.mxu0 %v3530
    %3557 = vmatprep.subr.mxu0 0.0
    %3558 = vmatpush1.msra.mxu0 %v3529
    %3559 = vmatprep.subr.mxu0 0.0
    %3560 = vmatpush1.msra.mxu0 %v3528
    %3561 = vmatprep.subr.mxu0 0.0
    %3562 = vmatpush1.msra.mxu0 %v3527
    %3563 = vmatprep.subr.mxu0 0.0
    %3564 = vmatpush1.msra.mxu0 %v3526
    %3565 = vmatprep.subr.mxu0 0.0
    %3566 = vmatpush1.msra.mxu0 %v3525
    %3567 = vmatprep.subr.mxu0 0.0
    %3568 = vmatpush1.msra.mxu0 %v3524
    %3569 = vmatprep.subr.mxu0 0.0
    %3570 = vmatpush1.msra.mxu0 %v3523
    %3571 = vmatprep.subr.mxu0 0.0
    %3572 = vmatpush2.msra.mxu0 0.0
    %3573 = vmatprep.subr.mxu0 0.0
    %3574 = vmatpush2.msra.mxu0 0.0
    %3575 = vmatprep.subr.mxu0 0.0
    %3576 = vmatpush2.msra.mxu0 0.0
    %3577 = vmatprep.subr.mxu0 0.0
    %3578 = vmatpush2.msra.mxu0 0.0
    %3579 = vmatprep.subr.mxu0 0.0
    %3580 = vmatpush2.msra.mxu0 0.0
    %3581 = vmatprep.subr.mxu0 0.0
    %3582 = vmatpush2.msra.mxu0 0.0
    %3583 = vmatprep.subr.mxu0 0.0
    %3584 = vmatpush2.msra.mxu0 0.0
    %3585 = vmatprep.subr.mxu0 0.0
    %3586 = vmatpush2.msra.mxu0 0.0
    %3587 = vmatprep.subr.mxu0 0.0
    %3588 = vmatpush2.msra.mxu0 0.0
    %3589 = vmatprep.subr.mxu0 0.0
    %3590 = vmatpush2.msra.mxu0 0.0
    %3591 = vmatprep.subr.mxu0 0.0
    %3592 = vmatpush2.msra.mxu0 0.0
    %3593 = vmatprep.subr.mxu0 0.0
    %3594 = vmatpush2.msra.mxu0 0.0
    %3595 = vmatprep.subr.mxu0 0.0
    %3596 = vmatpush2.msra.mxu0 0.0
    %3597 = vmatprep.subr.mxu0 0.0
    %3598 = vmatpush2.msra.mxu0 0.0
    %3599 = vmatprep.subr.mxu0 0.0
    %3600 = vmatpush2.msra.mxu0 0.0
    %3601 = vmatprep.subr.mxu0 0.0
    %3602 = vmatpush2.msra.mxu0 0.0
    %3603 = vmatprep.mubr.f32.mxu0 0.0
    %3604 = vmatmul.mubr.f32.gmra.mxu0 %v3519
    %v3605 = vpop.f32.mrf.mxu0
    %v3606 = vadd.f32 0.0, %v3605
    %v3607 = vpop.f32.mrf.mxu0
    %3608 = vdwg.mxu0
    %v3609 = vadd.f32 %v3448, %v3606
    %s3610 = scalar_lea.vmem %s0, 352
    %v3611 = vld [vmem:[%s3610] sm:$0xff]
    %v3612 = vld [vmem:[%s3610 + $0x8] sm:$0xff]
    %3613 = vmatprep.subr.mxu0 0.0
    %3614 = vmatpush1.msra.mxu0 %v50
    %3615 = vmatprep.subr.mxu0 0.0
    %3616 = vmatpush1.msra.mxu0 %v49
    %3617 = vmatprep.subr.mxu0 0.0
    %3618 = vmatpush1.msra.mxu0 %v48
    %3619 = vmatprep.subr.mxu0 0.0
    %3620 = vmatpush1.msra.mxu0 %v47
    %3621 = vmatprep.subr.mxu0 0.0
    %3622 = vmatpush1.msra.mxu0 %v46
    %3623 = vmatprep.subr.mxu0 0.0
    %3624 = vmatpush1.msra.mxu0 %v45
    %3625 = vmatprep.subr.mxu0 0.0
    %3626 = vmatpush1.msra.mxu0 %v44
    %3627 = vmatprep.subr.mxu0 0.0
    %3628 = vmatpush1.msra.mxu0 %v43
    %3629 = vmatprep.subr.mxu0 0.0
    %3630 = vmatpush1.msra.mxu0 %v42
    %3631 = vmatprep.subr.mxu0 0.0
    %3632 = vmatpush1.msra.mxu0 %v41
    %3633 = vmatprep.subr.mxu0 0.0
    %3634 = vmatpush1.msra.mxu0 %v40
    %3635 = vmatprep.subr.mxu0 0.0
    %3636 = vmatpush1.msra.mxu0 %v39
    %3637 = vmatprep.subr.mxu0 0.0
    %3638 = vmatpush1.msra.mxu0 %v38
    %3639 = vmatprep.subr.mxu0 0.0
    %3640 = vmatpush1.msra.mxu0 %v37
    %3641 = vmatprep.subr.mxu0 0.0
    %3642 = vmatpush1.msra.mxu0 %v36
    %3643 = vmatprep.subr.mxu0 0.0
    %3644 = vmatpush1.msra.mxu0 %v35
    %3645 = vmatprep.subr.mxu0 0.0
    %3646 = vmatpush2.msra.mxu0 %v66
    %3647 = vmatprep.subr.mxu0 0.0
    %3648 = vmatpush2.msra.mxu0 %v65
    %3649 = vmatprep.subr.mxu0 0.0
    %3650 = vmatpush2.msra.mxu0 %v64
    %3651 = vmatprep.subr.mxu0 0.0
    %3652 = vmatpush2.msra.mxu0 %v63
    %3653 = vmatprep.subr.mxu0 0.0
    %3654 = vmatpush2.msra.mxu0 %v62
    %3655 = vmatprep.subr.mxu0 0.0
    %3656 = vmatpush2.msra.mxu0 %v61
    %3657 = vmatprep.subr.mxu0 0.0
    %3658 = vmatpush2.msra.mxu0 %v60
    %3659 = vmatprep.subr.mxu0 0.0
    %3660 = vmatpush2.msra.mxu0 %v59
    %3661 = vmatprep.subr.mxu0 0.0
    %3662 = vmatpush2.msra.mxu0 %v58
    %3663 = vmatprep.subr.mxu0 0.0
    %3664 = vmatpush2.msra.mxu0 %v57
    %3665 = vmatprep.subr.mxu0 0.0
    %3666 = vmatpush2.msra.mxu0 %v56
    %3667 = vmatprep.subr.mxu0 0.0
    %3668 = vmatpush2.msra.mxu0 %v55
    %3669 = vmatprep.subr.mxu0 0.0
    %3670 = vmatpush2.msra.mxu0 %v54
    %3671 = vmatprep.subr.mxu0 0.0
    %3672 = vmatpush2.msra.mxu0 %v53
    %3673 = vmatprep.subr.mxu0 0.0
    %3674 = vmatpush2.msra.mxu0 %v52
    %3675 = vmatprep.subr.mxu0 0.0
    %3676 = vmatpush2.msra.mxu0 %v51
    %3677 = vmatprep.mubr.f32.mxu0 %v3612
    %3678 = vmatmul.mubr.f32.gmra.mxu0 %v3611
    %v3679 = vpop.f32.mrf.mxu0
    %v3680 = vadd.f32 %v72, %v3679
    %v3681 = vpop.f32.mrf.mxu0
    %3682 = vdwg.mxu0
    %s3683 = scalar_lea.vmem %s3, 2816
    %v3684 = vld [vmem:[%s3683] sm:$0xff]
    %v3685 = vld [vmem:[%s3683 + $0x8] sm:$0xff]
    %v3686 = vld [vmem:[%s3683 + $0x10] sm:$0xff]
    %v3687 = vld [vmem:[%s3683 + $0x18] sm:$0xff]
    %v3688 = vld [vmem:[%s3683 + $0x20] sm:$0xff]
    %v3689 = vld [vmem:[%s3683 + $0x28] sm:$0xff]
    %v3690 = vld [vmem:[%s3683 + $0x30] sm:$0xff]
    %v3691 = vld [vmem:[%s3683 + $0x38] sm:$0xff]
    %v3692 = vld [vmem:[%s3683 + $0x40] sm:$0xff]
    %v3693 = vld [vmem:[%s3683 + $0x48] sm:$0xff]
    %v3694 = vld [vmem:[%s3683 + $0x50] sm:$0xff]
    %v3695 = vld [vmem:[%s3683 + $0x58] sm:$0xff]
    %v3696 = vld [vmem:[%s3683 + $0x60] sm:$0xff]
    %v3697 = vld [vmem:[%s3683 + $0x68] sm:$0xff]
    %v3698 = vld [vmem:[%s3683 + $0x70] sm:$0xff]
    %v3699 = vld [vmem:[%s3683 + $0x78] sm:$0xff]
    %3700 = vmatprep.subr.mxu0 0.0
    %3701 = vmatpush1.msra.mxu0 %v3699
    %3702 = vmatprep.subr.mxu0 0.0
    %3703 = vmatpush1.msra.mxu0 %v3698
    %3704 = vmatprep.subr.mxu0 0.0
    %3705 = vmatpush1.msra.mxu0 %v3697
    %3706 = vmatprep.subr.mxu0 0.0
    %3707 = vmatpush1.msra.mxu0 %v3696
    %3708 = vmatprep.subr.mxu0 0.0
    %3709 = vmatpush1.msra.mxu0 %v3695
    %3710 = vmatprep.subr.mxu0 0.0
    %3711 = vmatpush1.msra.mxu0 %v3694
    %3712 = vmatprep.subr.mxu0 0.0
    %3713 = vmatpush1.msra.mxu0 %v3693
    %3714 = vmatprep.subr.mxu0 0.0
    %3715 = vmatpush1.msra.mxu0 %v3692
    %3716 = vmatprep.subr.mxu0 0.0
    %3717 = vmatpush1.msra.mxu0 %v3691
    %3718 = vmatprep.subr.mxu0 0.0
    %3719 = vmatpush1.msra.mxu0 %v3690
    %3720 = vmatprep.subr.mxu0 0.0
    %3721 = vmatpush1.msra.mxu0 %v3689
    %3722 = vmatprep.subr.mxu0 0.0
    %3723 = vmatpush1.msra.mxu0 %v3688
    %3724 = vmatprep.subr.mxu0 0.0
    %3725 = vmatpush1.msra.mxu0 %v3687
    %3726 = vmatprep.subr.mxu0 0.0
    %3727 = vmatpush1.msra.mxu0 %v3686
    %3728 = vmatprep.subr.mxu0 0.0
    %3729 = vmatpush1.msra.mxu0 %v3685
    %3730 = vmatprep.subr.mxu0 0.0
    %3731 = vmatpush1.msra.mxu0 %v3684
    %3732 = vmatprep.subr.mxu0 0.0
    %3733 = vmatpush2.msra.mxu0 0.0
    %3734 = vmatprep.subr.mxu0 0.0
    %3735 = vmatpush2.msra.mxu0 0.0
    %3736 = vmatprep.subr.mxu0 0.0
    %3737 = vmatpush2.msra.mxu0 0.0
    %3738 = vmatprep.subr.mxu0 0.0
    %3739 = vmatpush2.msra.mxu0 0.0
    %3740 = vmatprep.subr.mxu0 0.0
    %3741 = vmatpush2.msra.mxu0 0.0
    %3742 = vmatprep.subr.mxu0 0.0
    %3743 = vmatpush2.msra.mxu0 0.0
    %3744 = vmatprep.subr.mxu0 0.0
    %3745 = vmatpush2.msra.mxu0 0.0
    %3746 = vmatprep.subr.mxu0 0.0
    %3747 = vmatpush2.msra.mxu0 0.0
    %3748 = vmatprep.subr.mxu0 0.0
    %3749 = vmatpush2.msra.mxu0 0.0
    %3750 = vmatprep.subr.mxu0 0.0
    %3751 = vmatpush2.msra.mxu0 0.0
    %3752 = vmatprep.subr.mxu0 0.0
    %3753 = vmatpush2.msra.mxu0 0.0
    %3754 = vmatprep.subr.mxu0 0.0
    %3755 = vmatpush2.msra.mxu0 0.0
    %3756 = vmatprep.subr.mxu0 0.0
    %3757 = vmatpush2.msra.mxu0 0.0
    %3758 = vmatprep.subr.mxu0 0.0
    %3759 = vmatpush2.msra.mxu0 0.0
    %3760 = vmatprep.subr.mxu0 0.0
    %3761 = vmatpush2.msra.mxu0 0.0
    %3762 = vmatprep.subr.mxu0 0.0
    %3763 = vmatpush2.msra.mxu0 0.0
    %3764 = vmatprep.mubr.f32.mxu0 0.0
    %3765 = vmatmul.mubr.f32.gmra.mxu0 %v3680
    %v3766 = vpop.f32.mrf.mxu0
    %v3767 = vadd.f32 0.0, %v3766
    %v3768 = vpop.f32.mrf.mxu0
    %3769 = vdwg.mxu0
    %v3770 = vadd.f32 %v3609, %v3767
    %s3771 = scalar_lea.vmem %s0, 368
    %v3772 = vld [vmem:[%s3771] sm:$0xff]
    %v3773 = vld [vmem:[%s3771 + $0x8] sm:$0xff]
    %3774 = vmatprep.subr.mxu0 0.0
    %3775 = vmatpush1.msra.mxu0 %v50
    %3776 = vmatprep.subr.mxu0 0.0
    %3777 = vmatpush1.msra.mxu0 %v49
    %3778 = vmatprep.subr.mxu0 0.0
    %3779 = vmatpush1.msra.mxu0 %v48
    %3780 = vmatprep.subr.mxu0 0.0
    %3781 = vmatpush1.msra.mxu0 %v47
    %3782 = vmatprep.subr.mxu0 0.0
    %3783 = vmatpush1.msra.mxu0 %v46
    %3784 = vmatprep.subr.mxu0 0.0
    %3785 = vmatpush1.msra.mxu0 %v45
    %3786 = vmatprep.subr.mxu0 0.0
    %3787 = vmatpush1.msra.mxu0 %v44
    %3788 = vmatprep.subr.mxu0 0.0
    %3789 = vmatpush1.msra.mxu0 %v43
    %3790 = vmatprep.subr.mxu0 0.0
    %3791 = vmatpush1.msra.mxu0 %v42
    %3792 = vmatprep.subr.mxu0 0.0
    %3793 = vmatpush1.msra.mxu0 %v41
    %3794 = vmatprep.subr.mxu0 0.0
    %3795 = vmatpush1.msra.mxu0 %v40
    %3796 = vmatprep.subr.mxu0 0.0
    %3797 = vmatpush1.msra.mxu0 %v39
    %3798 = vmatprep.subr.mxu0 0.0
    %3799 = vmatpush1.msra.mxu0 %v38
    %3800 = vmatprep.subr.mxu0 0.0
    %3801 = vmatpush1.msra.mxu0 %v37
    %3802 = vmatprep.subr.mxu0 0.0
    %3803 = vmatpush1.msra.mxu0 %v36
    %3804 = vmatprep.subr.mxu0 0.0
    %3805 = vmatpush1.msra.mxu0 %v35
    %3806 = vmatprep.subr.mxu0 0.0
    %3807 = vmatpush2.msra.mxu0 %v66
    %3808 = vmatprep.subr.mxu0 0.0
    %3809 = vmatpush2.msra.mxu0 %v65
    %3810 = vmatprep.subr.mxu0 0.0
    %3811 = vmatpush2.msra.mxu0 %v64
    %3812 = vmatprep.subr.mxu0 0.0
    %3813 = vmatpush2.msra.mxu0 %v63
    %3814 = vmatprep.subr.mxu0 0.0
    %3815 = vmatpush2.msra.mxu0 %v62
    %3816 = vmatprep.subr.mxu0 0.0
    %3817 = vmatpush2.msra.mxu0 %v61
    %3818 = vmatprep.subr.mxu0 0.0
    %3819 = vmatpush2.msra.mxu0 %v60
    %3820 = vmatprep.subr.mxu0 0.0
    %3821 = vmatpush2.msra.mxu0 %v59
    %3822 = vmatprep.subr.mxu0 0.0
    %3823 = vmatpush2.msra.mxu0 %v58
    %3824 = vmatprep.subr.mxu0 0.0
    %3825 = vmatpush2.msra.mxu0 %v57
    %3826 = vmatprep.subr.mxu0 0.0
    %3827 = vmatpush2.msra.mxu0 %v56
    %3828 = vmatprep.subr.mxu0 0.0
    %3829 = vmatpush2.msra.mxu0 %v55
    %3830 = vmatprep.subr.mxu0 0.0
    %3831 = vmatpush2.msra.mxu0 %v54
    %3832 = vmatprep.subr.mxu0 0.0
    %3833 = vmatpush2.msra.mxu0 %v53
    %3834 = vmatprep.subr.mxu0 0.0
    %3835 = vmatpush2.msra.mxu0 %v52
    %3836 = vmatprep.subr.mxu0 0.0
    %3837 = vmatpush2.msra.mxu0 %v51
    %3838 = vmatprep.mubr.f32.mxu0 %v3773
    %3839 = vmatmul.mubr.f32.gmra.mxu0 %v3772
    %v3840 = vpop.f32.mrf.mxu0
    %v3841 = vadd.f32 %v72, %v3840
    %v3842 = vpop.f32.mrf.mxu0
    %3843 = vdwg.mxu0
    %s3844 = scalar_lea.vmem %s3, 2944
    %v3845 = vld [vmem:[%s3844] sm:$0xff]
    %v3846 = vld [vmem:[%s3844 + $0x8] sm:$0xff]
    %v3847 = vld [vmem:[%s3844 + $0x10] sm:$0xff]
    %v3848 = vld [vmem:[%s3844 + $0x18] sm:$0xff]
    %v3849 = vld [vmem:[%s3844 + $0x20] sm:$0xff]
    %v3850 = vld [vmem:[%s3844 + $0x28] sm:$0xff]
    %v3851 = vld [vmem:[%s3844 + $0x30] sm:$0xff]
    %v3852 = vld [vmem:[%s3844 + $0x38] sm:$0xff]
    %v3853 = vld [vmem:[%s3844 + $0x40] sm:$0xff]
    %v3854 = vld [vmem:[%s3844 + $0x48] sm:$0xff]
    %v3855 = vld [vmem:[%s3844 + $0x50] sm:$0xff]
    %v3856 = vld [vmem:[%s3844 + $0x58] sm:$0xff]
    %v3857 = vld [vmem:[%s3844 + $0x60] sm:$0xff]
    %v3858 = vld [vmem:[%s3844 + $0x68] sm:$0xff]
    %v3859 = vld [vmem:[%s3844 + $0x70] sm:$0xff]
    %v3860 = vld [vmem:[%s3844 + $0x78] sm:$0xff]
    %3861 = vmatprep.subr.mxu0 0.0
    %3862 = vmatpush1.msra.mxu0 %v3860
    %3863 = vmatprep.subr.mxu0 0.0
    %3864 = vmatpush1.msra.mxu0 %v3859
    %3865 = vmatprep.subr.mxu0 0.0
    %3866 = vmatpush1.msra.mxu0 %v3858
    %3867 = vmatprep.subr.mxu0 0.0
    %3868 = vmatpush1.msra.mxu0 %v3857
    %3869 = vmatprep.subr.mxu0 0.0
    %3870 = vmatpush1.msra.mxu0 %v3856
    %3871 = vmatprep.subr.mxu0 0.0
    %3872 = vmatpush1.msra.mxu0 %v3855
    %3873 = vmatprep.subr.mxu0 0.0
    %3874 = vmatpush1.msra.mxu0 %v3854
    %3875 = vmatprep.subr.mxu0 0.0
    %3876 = vmatpush1.msra.mxu0 %v3853
    %3877 = vmatprep.subr.mxu0 0.0
    %3878 = vmatpush1.msra.mxu0 %v3852
    %3879 = vmatprep.subr.mxu0 0.0
    %3880 = vmatpush1.msra.mxu0 %v3851
    %3881 = vmatprep.subr.mxu0 0.0
    %3882 = vmatpush1.msra.mxu0 %v3850
    %3883 = vmatprep.subr.mxu0 0.0
    %3884 = vmatpush1.msra.mxu0 %v3849
    %3885 = vmatprep.subr.mxu0 0.0
    %3886 = vmatpush1.msra.mxu0 %v3848
    %3887 = vmatprep.subr.mxu0 0.0
    %3888 = vmatpush1.msra.mxu0 %v3847
    %3889 = vmatprep.subr.mxu0 0.0
    %3890 = vmatpush1.msra.mxu0 %v3846
    %3891 = vmatprep.subr.mxu0 0.0
    %3892 = vmatpush1.msra.mxu0 %v3845
    %3893 = vmatprep.subr.mxu0 0.0
    %3894 = vmatpush2.msra.mxu0 0.0
    %3895 = vmatprep.subr.mxu0 0.0
    %3896 = vmatpush2.msra.mxu0 0.0
    %3897 = vmatprep.subr.mxu0 0.0
    %3898 = vmatpush2.msra.mxu0 0.0
    %3899 = vmatprep.subr.mxu0 0.0
    %3900 = vmatpush2.msra.mxu0 0.0
    %3901 = vmatprep.subr.mxu0 0.0
    %3902 = vmatpush2.msra.mxu0 0.0
    %3903 = vmatprep.subr.mxu0 0.0
    %3904 = vmatpush2.msra.mxu0 0.0
    %3905 = vmatprep.subr.mxu0 0.0
    %3906 = vmatpush2.msra.mxu0 0.0
    %3907 = vmatprep.subr.mxu0 0.0
    %3908 = vmatpush2.msra.mxu0 0.0
    %3909 = vmatprep.subr.mxu0 0.0
    %3910 = vmatpush2.msra.mxu0 0.0
    %3911 = vmatprep.subr.mxu0 0.0
    %3912 = vmatpush2.msra.mxu0 0.0
    %3913 = vmatprep.subr.mxu0 0.0
    %3914 = vmatpush2.msra.mxu0 0.0
    %3915 = vmatprep.subr.mxu0 0.0
    %3916 = vmatpush2.msra.mxu0 0.0
    %3917 = vmatprep.subr.mxu0 0.0
    %3918 = vmatpush2.msra.mxu0 0.0
    %3919 = vmatprep.subr.mxu0 0.0
    %3920 = vmatpush2.msra.mxu0 0.0
    %3921 = vmatprep.subr.mxu0 0.0
    %3922 = vmatpush2.msra.mxu0 0.0
    %3923 = vmatprep.subr.mxu0 0.0
    %3924 = vmatpush2.msra.mxu0 0.0
    %3925 = vmatprep.mubr.f32.mxu0 0.0
    %3926 = vmatmul.mubr.f32.gmra.mxu0 %v3841
    %v3927 = vpop.f32.mrf.mxu0
    %v3928 = vadd.f32 0.0, %v3927
    %v3929 = vpop.f32.mrf.mxu0
    %3930 = vdwg.mxu0
    %v3931 = vadd.f32 %v3770, %v3928
    %s3932 = scalar_lea.vmem %s0, 384
    %v3933 = vld [vmem:[%s3932] sm:$0xff]
    %v3934 = vld [vmem:[%s3932 + $0x8] sm:$0xff]
    %3935 = vmatprep.subr.mxu0 0.0
    %3936 = vmatpush1.msra.mxu0 %v50
    %3937 = vmatprep.subr.mxu0 0.0
    %3938 = vmatpush1.msra.mxu0 %v49
    %3939 = vmatprep.subr.mxu0 0.0
    %3940 = vmatpush1.msra.mxu0 %v48
    %3941 = vmatprep.subr.mxu0 0.0
    %3942 = vmatpush1.msra.mxu0 %v47
    %3943 = vmatprep.subr.mxu0 0.0
    %3944 = vmatpush1.msra.mxu0 %v46
    %3945 = vmatprep.subr.mxu0 0.0
    %3946 = vmatpush1.msra.mxu0 %v45
    %3947 = vmatprep.subr.mxu0 0.0
    %3948 = vmatpush1.msra.mxu0 %v44
    %3949 = vmatprep.subr.mxu0 0.0
    %3950 = vmatpush1.msra.mxu0 %v43
    %3951 = vmatprep.subr.mxu0 0.0
    %3952 = vmatpush1.msra.mxu0 %v42
    %3953 = vmatprep.subr.mxu0 0.0
    %3954 = vmatpush1.msra.mxu0 %v41
    %3955 = vmatprep.subr.mxu0 0.0
    %3956 = vmatpush1.msra.mxu0 %v40
    %3957 = vmatprep.subr.mxu0 0.0
    %3958 = vmatpush1.msra.mxu0 %v39
    %3959 = vmatprep.subr.mxu0 0.0
    %3960 = vmatpush1.msra.mxu0 %v38
    %3961 = vmatprep.subr.mxu0 0.0
    %3962 = vmatpush1.msra.mxu0 %v37
    %3963 = vmatprep.subr.mxu0 0.0
    %3964 = vmatpush1.msra.mxu0 %v36
    %3965 = vmatprep.subr.mxu0 0.0
    %3966 = vmatpush1.msra.mxu0 %v35
    %3967 = vmatprep.subr.mxu0 0.0
    %3968 = vmatpush2.msra.mxu0 %v66
    %3969 = vmatprep.subr.mxu0 0.0
    %3970 = vmatpush2.msra.mxu0 %v65
    %3971 = vmatprep.subr.mxu0 0.0
    %3972 = vmatpush2.msra.mxu0 %v64
    %3973 = vmatprep.subr.mxu0 0.0
    %3974 = vmatpush2.msra.mxu0 %v63
    %3975 = vmatprep.subr.mxu0 0.0
    %3976 = vmatpush2.msra.mxu0 %v62
    %3977 = vmatprep.subr.mxu0 0.0
    %3978 = vmatpush2.msra.mxu0 %v61
    %3979 = vmatprep.subr.mxu0 0.0
    %3980 = vmatpush2.msra.mxu0 %v60
    %3981 = vmatprep.subr.mxu0 0.0
    %3982 = vmatpush2.msra.mxu0 %v59
    %3983 = vmatprep.subr.mxu0 0.0
    %3984 = vmatpush2.msra.mxu0 %v58
    %3985 = vmatprep.subr.mxu0 0.0
    %3986 = vmatpush2.msra.mxu0 %v57
    %3987 = vmatprep.subr.mxu0 0.0
    %3988 = vmatpush2.msra.mxu0 %v56
    %3989 = vmatprep.subr.mxu0 0.0
    %3990 = vmatpush2.msra.mxu0 %v55
    %3991 = vmatprep.subr.mxu0 0.0
    %3992 = vmatpush2.msra.mxu0 %v54
    %3993 = vmatprep.subr.mxu0 0.0
    %3994 = vmatpush2.msra.mxu0 %v53
    %3995 = vmatprep.subr.mxu0 0.0
    %3996 = vmatpush2.msra.mxu0 %v52
    %3997 = vmatprep.subr.mxu0 0.0
    %3998 = vmatpush2.msra.mxu0 %v51
    %3999 = vmatprep.mubr.f32.mxu0 %v3934
    %4000 = vmatmul.mubr.f32.gmra.mxu0 %v3933
    %v4001 = vpop.f32.mrf.mxu0
    %v4002 = vadd.f32 %v72, %v4001
    %v4003 = vpop.f32.mrf.mxu0
    %4004 = vdwg.mxu0
    %s4005 = scalar_lea.vmem %s3, 3072
    %v4006 = vld [vmem:[%s4005] sm:$0xff]
    %v4007 = vld [vmem:[%s4005 + $0x8] sm:$0xff]
    %v4008 = vld [vmem:[%s4005 + $0x10] sm:$0xff]
    %v4009 = vld [vmem:[%s4005 + $0x18] sm:$0xff]
    %v4010 = vld [vmem:[%s4005 + $0x20] sm:$0xff]
    %v4011 = vld [vmem:[%s4005 + $0x28] sm:$0xff]
    %v4012 = vld [vmem:[%s4005 + $0x30] sm:$0xff]
    %v4013 = vld [vmem:[%s4005 + $0x38] sm:$0xff]
    %v4014 = vld [vmem:[%s4005 + $0x40] sm:$0xff]
    %v4015 = vld [vmem:[%s4005 + $0x48] sm:$0xff]
    %v4016 = vld [vmem:[%s4005 + $0x50] sm:$0xff]
    %v4017 = vld [vmem:[%s4005 + $0x58] sm:$0xff]
    %v4018 = vld [vmem:[%s4005 + $0x60] sm:$0xff]
    %v4019 = vld [vmem:[%s4005 + $0x68] sm:$0xff]
    %v4020 = vld [vmem:[%s4005 + $0x70] sm:$0xff]
    %v4021 = vld [vmem:[%s4005 + $0x78] sm:$0xff]
    %4022 = vmatprep.subr.mxu0 0.0
    %4023 = vmatpush1.msra.mxu0 %v4021
    %4024 = vmatprep.subr.mxu0 0.0
    %4025 = vmatpush1.msra.mxu0 %v4020
    %4026 = vmatprep.subr.mxu0 0.0
    %4027 = vmatpush1.msra.mxu0 %v4019
    %4028 = vmatprep.subr.mxu0 0.0
    %4029 = vmatpush1.msra.mxu0 %v4018
    %4030 = vmatprep.subr.mxu0 0.0
    %4031 = vmatpush1.msra.mxu0 %v4017
    %4032 = vmatprep.subr.mxu0 0.0
    %4033 = vmatpush1.msra.mxu0 %v4016
    %4034 = vmatprep.subr.mxu0 0.0
    %4035 = vmatpush1.msra.mxu0 %v4015
    %4036 = vmatprep.subr.mxu0 0.0
    %4037 = vmatpush1.msra.mxu0 %v4014
    %4038 = vmatprep.subr.mxu0 0.0
    %4039 = vmatpush1.msra.mxu0 %v4013
    %4040 = vmatprep.subr.mxu0 0.0
    %4041 = vmatpush1.msra.mxu0 %v4012
    %4042 = vmatprep.subr.mxu0 0.0
    %4043 = vmatpush1.msra.mxu0 %v4011
    %4044 = vmatprep.subr.mxu0 0.0
    %4045 = vmatpush1.msra.mxu0 %v4010
    %4046 = vmatprep.subr.mxu0 0.0
    %4047 = vmatpush1.msra.mxu0 %v4009
    %4048 = vmatprep.subr.mxu0 0.0
    %4049 = vmatpush1.msra.mxu0 %v4008
    %4050 = vmatprep.subr.mxu0 0.0
    %4051 = vmatpush1.msra.mxu0 %v4007
    %4052 = vmatprep.subr.mxu0 0.0
    %4053 = vmatpush1.msra.mxu0 %v4006
    %4054 = vmatprep.subr.mxu0 0.0
    %4055 = vmatpush2.msra.mxu0 0.0
    %4056 = vmatprep.subr.mxu0 0.0
    %4057 = vmatpush2.msra.mxu0 0.0
    %4058 = vmatprep.subr.mxu0 0.0
    %4059 = vmatpush2.msra.mxu0 0.0
    %4060 = vmatprep.subr.mxu0 0.0
    %4061 = vmatpush2.msra.mxu0 0.0
    %4062 = vmatprep.subr.mxu0 0.0
    %4063 = vmatpush2.msra.mxu0 0.0
    %4064 = vmatprep.subr.mxu0 0.0
    %4065 = vmatpush2.msra.mxu0 0.0
    %4066 = vmatprep.subr.mxu0 0.0
    %4067 = vmatpush2.msra.mxu0 0.0
    %4068 = vmatprep.subr.mxu0 0.0
    %4069 = vmatpush2.msra.mxu0 0.0
    %4070 = vmatprep.subr.mxu0 0.0
    %4071 = vmatpush2.msra.mxu0 0.0
    %4072 = vmatprep.subr.mxu0 0.0
    %4073 = vmatpush2.msra.mxu0 0.0
    %4074 = vmatprep.subr.mxu0 0.0
    %4075 = vmatpush2.msra.mxu0 0.0
    %4076 = vmatprep.subr.mxu0 0.0
    %4077 = vmatpush2.msra.mxu0 0.0
    %4078 = vmatprep.subr.mxu0 0.0
    %4079 = vmatpush2.msra.mxu0 0.0
    %4080 = vmatprep.subr.mxu0 0.0
    %4081 = vmatpush2.msra.mxu0 0.0
    %4082 = vmatprep.subr.mxu0 0.0
    %4083 = vmatpush2.msra.mxu0 0.0
    %4084 = vmatprep.subr.mxu0 0.0
    %4085 = vmatpush2.msra.mxu0 0.0
    %4086 = vmatprep.mubr.f32.mxu0 0.0
    %4087 = vmatmul.mubr.f32.gmra.mxu0 %v4002
    %v4088 = vpop.f32.mrf.mxu0
    %v4089 = vadd.f32 0.0, %v4088
    %v4090 = vpop.f32.mrf.mxu0
    %4091 = vdwg.mxu0
    %v4092 = vadd.f32 %v3931, %v4089
    %v4093 = vld [vmem:[%s4] sm:$0x1]
    %v4095 = vlaneseq
    %v4096 = vshrl.u32 %v4095, 7
    %v4097 = vsub.s32 0, %v4096
    %v4098 = vrot.slane %v4093, %v4097
    %v4100 = vadd.f32 %v4092, %v4098
    %v4101 = vmax.f32 %v4100, 0.0
    %v4102 = vld [vmem:[%s5] sm:$0xff]
    %v4103 = vld [vmem:[%s5 + $0x8] sm:$0xff]
    %v4104 = vld [vmem:[%s5 + $0x10] sm:$0xff]
    %v4105 = vld [vmem:[%s5 + $0x18] sm:$0xff]
    %v4106 = vld [vmem:[%s5 + $0x20] sm:$0xff]
    %v4107 = vld [vmem:[%s5 + $0x28] sm:$0xff]
    %v4108 = vld [vmem:[%s5 + $0x30] sm:$0xff]
    %v4109 = vld [vmem:[%s5 + $0x38] sm:$0xff]
    %v4110 = vld [vmem:[%s5 + $0x40] sm:$0xff]
    %v4111 = vld [vmem:[%s5 + $0x48] sm:$0xff]
    %v4112 = vld [vmem:[%s5 + $0x50] sm:$0xff]
    %v4113 = vld [vmem:[%s5 + $0x58] sm:$0xff]
    %v4114 = vld [vmem:[%s5 + $0x60] sm:$0xff]
    %v4115 = vld [vmem:[%s5 + $0x68] sm:$0xff]
    %v4116 = vld [vmem:[%s5 + $0x70] sm:$0xff]
    %v4117 = vld [vmem:[%s5 + $0x78] sm:$0xff]
    %v4118 = vld [vmem:[%s6] sm:$0x1]
    %v4120 = vlaneseq
    %v4121 = vshrl.u32 %v4120, 7
    %v4122 = vsub.s32 0, %v4121
    %v4123 = vrot.slane %v4118, %v4122
    %4125 = vmatprep.subr.mxu0 0.0
    %4126 = vmatpush1.msra.mxu0 %v4117
    %4127 = vmatprep.subr.mxu0 0.0
    %4128 = vmatpush1.msra.mxu0 %v4116
    %4129 = vmatprep.subr.mxu0 0.0
    %4130 = vmatpush1.msra.mxu0 %v4115
    %4131 = vmatprep.subr.mxu0 0.0
    %4132 = vmatpush1.msra.mxu0 %v4114
    %4133 = vmatprep.subr.mxu0 0.0
    %4134 = vmatpush1.msra.mxu0 %v4113
    %4135 = vmatprep.subr.mxu0 0.0
    %4136 = vmatpush1.msra.mxu0 %v4112
    %4137 = vmatprep.subr.mxu0 0.0
    %4138 = vmatpush1.msra.mxu0 %v4111
    %4139 = vmatprep.subr.mxu0 0.0
    %4140 = vmatpush1.msra.mxu0 %v4110
    %4141 = vmatprep.subr.mxu0 0.0
    %4142 = vmatpush1.msra.mxu0 %v4109
    %4143 = vmatprep.subr.mxu0 0.0
    %4144 = vmatpush1.msra.mxu0 %v4108
    %4145 = vmatprep.subr.mxu0 0.0
    %4146 = vmatpush1.msra.mxu0 %v4107
    %4147 = vmatprep.subr.mxu0 0.0
    %4148 = vmatpush1.msra.mxu0 %v4106
    %4149 = vmatprep.subr.mxu0 0.0
    %4150 = vmatpush1.msra.mxu0 %v4105
    %4151 = vmatprep.subr.mxu0 0.0
    %4152 = vmatpush1.msra.mxu0 %v4104
    %4153 = vmatprep.subr.mxu0 0.0
    %4154 = vmatpush1.msra.mxu0 %v4103
    %4155 = vmatprep.subr.mxu0 0.0
    %4156 = vmatpush1.msra.mxu0 %v4102
    %4157 = vmatprep.subr.mxu0 0.0
    %4158 = vmatpush2.msra.mxu0 0.0
    %4159 = vmatprep.subr.mxu0 0.0
    %4160 = vmatpush2.msra.mxu0 0.0
    %4161 = vmatprep.subr.mxu0 0.0
    %4162 = vmatpush2.msra.mxu0 0.0
    %4163 = vmatprep.subr.mxu0 0.0
    %4164 = vmatpush2.msra.mxu0 0.0
    %4165 = vmatprep.subr.mxu0 0.0
    %4166 = vmatpush2.msra.mxu0 0.0
    %4167 = vmatprep.subr.mxu0 0.0
    %4168 = vmatpush2.msra.mxu0 0.0
    %4169 = vmatprep.subr.mxu0 0.0
    %4170 = vmatpush2.msra.mxu0 0.0
    %4171 = vmatprep.subr.mxu0 0.0
    %4172 = vmatpush2.msra.mxu0 0.0
    %4173 = vmatprep.subr.mxu0 0.0
    %4174 = vmatpush2.msra.mxu0 0.0
    %4175 = vmatprep.subr.mxu0 0.0
    %4176 = vmatpush2.msra.mxu0 0.0
    %4177 = vmatprep.subr.mxu0 0.0
    %4178 = vmatpush2.msra.mxu0 0.0
    %4179 = vmatprep.subr.mxu0 0.0
    %4180 = vmatpush2.msra.mxu0 0.0
    %4181 = vmatprep.subr.mxu0 0.0
    %4182 = vmatpush2.msra.mxu0 0.0
    %4183 = vmatprep.subr.mxu0 0.0
    %4184 = vmatpush2.msra.mxu0 0.0
    %4185 = vmatprep.subr.mxu0 0.0
    %4186 = vmatpush2.msra.mxu0 0.0
    %4187 = vmatprep.subr.mxu0 0.0
    %4188 = vmatpush2.msra.mxu0 0.0
    %4189 = vmatprep.mubr.f32.mxu0 0.0
    %4190 = vmatmul.mubr.f32.gmra.mxu0 %v4101
    %v4191 = vpop.f32.mrf.mxu0
    %v4192 = vadd.f32 %v4123, %v4191
    %v4193 = vpop.f32.mrf.mxu0
    %4194 = vdwg.mxu0
    %v4195 = vmax.f32 %v4192, 0.0
    %v4196 = vld [vmem:[%s7] sm:$0xff]
    %v4197 = vld [vmem:[%s7 + $0x8] sm:$0xff]
    %v4198 = vld [vmem:[%s7 + $0x10] sm:$0xff]
    %v4199 = vld [vmem:[%s7 + $0x18] sm:$0xff]
    %v4200 = vld [vmem:[%s7 + $0x20] sm:$0xff]
    %v4201 = vld [vmem:[%s7 + $0x28] sm:$0xff]
    %v4202 = vld [vmem:[%s7 + $0x30] sm:$0xff]
    %v4203 = vld [vmem:[%s7 + $0x38] sm:$0xff]
    %v4204 = vld [vmem:[%s7 + $0x40] sm:$0xff]
    %v4205 = vld [vmem:[%s7 + $0x48] sm:$0xff]
    %v4206 = vld [vmem:[%s7 + $0x50] sm:$0xff]
    %v4207 = vld [vmem:[%s7 + $0x58] sm:$0xff]
    %v4208 = vld [vmem:[%s7 + $0x60] sm:$0xff]
    %v4209 = vld [vmem:[%s7 + $0x68] sm:$0xff]
    %v4210 = vld [vmem:[%s7 + $0x70] sm:$0xff]
    %v4211 = vld [vmem:[%s7 + $0x78] sm:$0xff]
    %v4212 = vld [vmem:[%s8] sm:$0x1]
    %v4214 = vlaneseq
    %v4215 = vshrl.u32 %v4214, 7
    %v4216 = vsub.s32 0, %v4215
    %v4217 = vrot.slane %v4212, %v4216
    %4219 = vmatprep.subr.mxu0 0.0
    %4220 = vmatpush1.msra.mxu0 %v4211
    %4221 = vmatprep.subr.mxu0 0.0
    %4222 = vmatpush1.msra.mxu0 %v4210
    %4223 = vmatprep.subr.mxu0 0.0
    %4224 = vmatpush1.msra.mxu0 %v4209
    %4225 = vmatprep.subr.mxu0 0.0
    %4226 = vmatpush1.msra.mxu0 %v4208
    %4227 = vmatprep.subr.mxu0 0.0
    %4228 = vmatpush1.msra.mxu0 %v4207
    %4229 = vmatprep.subr.mxu0 0.0
    %4230 = vmatpush1.msra.mxu0 %v4206
    %4231 = vmatprep.subr.mxu0 0.0
    %4232 = vmatpush1.msra.mxu0 %v4205
    %4233 = vmatprep.subr.mxu0 0.0
    %4234 = vmatpush1.msra.mxu0 %v4204
    %4235 = vmatprep.subr.mxu0 0.0
    %4236 = vmatpush1.msra.mxu0 %v4203
    %4237 = vmatprep.subr.mxu0 0.0
    %4238 = vmatpush1.msra.mxu0 %v4202
    %4239 = vmatprep.subr.mxu0 0.0
    %4240 = vmatpush1.msra.mxu0 %v4201
    %4241 = vmatprep.subr.mxu0 0.0
    %4242 = vmatpush1.msra.mxu0 %v4200
    %4243 = vmatprep.subr.mxu0 0.0
    %4244 = vmatpush1.msra.mxu0 %v4199
    %4245 = vmatprep.subr.mxu0 0.0
    %4246 = vmatpush1.msra.mxu0 %v4198
    %4247 = vmatprep.subr.mxu0 0.0
    %4248 = vmatpush1.msra.mxu0 %v4197
    %4249 = vmatprep.subr.mxu0 0.0
    %4250 = vmatpush1.msra.mxu0 %v4196
    %4251 = vmatprep.subr.mxu0 0.0
    %4252 = vmatpush2.msra.mxu0 0.0
    %4253 = vmatprep.subr.mxu0 0.0
    %4254 = vmatpush2.msra.mxu0 0.0
    %4255 = vmatprep.subr.mxu0 0.0
    %4256 = vmatpush2.msra.mxu0 0.0
    %4257 = vmatprep.subr.mxu0 0.0
    %4258 = vmatpush2.msra.mxu0 0.0
    %4259 = vmatprep.subr.mxu0 0.0
    %4260 = vmatpush2.msra.mxu0 0.0
    %4261 = vmatprep.subr.mxu0 0.0
    %4262 = vmatpush2.msra.mxu0 0.0
    %4263 = vmatprep.subr.mxu0 0.0
    %4264 = vmatpush2.msra.mxu0 0.0
    %4265 = vmatprep.subr.mxu0 0.0
    %4266 = vmatpush2.msra.mxu0 0.0
    %4267 = vmatprep.subr.mxu0 0.0
    %4268 = vmatpush2.msra.mxu0 0.0
    %4269 = vmatprep.subr.mxu0 0.0
    %4270 = vmatpush2.msra.mxu0 0.0
    %4271 = vmatprep.subr.mxu0 0.0
    %4272 = vmatpush2.msra.mxu0 0.0
    %4273 = vmatprep.subr.mxu0 0.0
    %4274 = vmatpush2.msra.mxu0 0.0
    %4275 = vmatprep.subr.mxu0 0.0
    %4276 = vmatpush2.msra.mxu0 0.0
    %4277 = vmatprep.subr.mxu0 0.0
    %4278 = vmatpush2.msra.mxu0 0.0
    %4279 = vmatprep.subr.mxu0 0.0
    %4280 = vmatpush2.msra.mxu0 0.0
    %4281 = vmatprep.subr.mxu0 0.0
    %4282 = vmatpush2.msra.mxu0 0.0
    %4283 = vmatprep.mubr.f32.mxu0 0.0
    %4284 = vmatmul.mubr.f32.gmra.mxu0 %v4195
    %v4285 = vpop.f32.mrf.mxu0
    %v4286 = vadd.f32 %v4217, %v4285
    %v4287 = vpop.f32.mrf.mxu0
    %4288 = vdwg.mxu0
    %vm4289 = vcmask 74752
    %4290 = vst.msk [vmem:[#allocation2] sm:$0x3] %vm4289, %v4286
    // Predicated region
    $region38: #{lenet5_forward.3} parent=1 // pred_check
      _
    $region39: #{lenet5_forward.3} parent=1 // pred_check_branch
      %4292 = sbr.rel (0) target = $region41
    $region40: #{lenet5_forward.3} parent=1 // pred_region
      %s4294 = ssub.s32 32, 32
      %4295 = vsyncadd [#allocation3], %s4294
      %s4297 = sshll.u32 [#allocation2], 4
      %s4298 = int_to_ptr.vmem [resolvable:$true] %s4297
      %4300 = dma.vmem_to_hbm [thread:$0]  %s4298, 32, %s9, [#allocation3]
    $region41: #{lenet5_forward.3} parent=1 // pred_fallthru
      _
    // Predicated region
    $region42: #{lenet5_forward.3} parent=1 // pred_check
      _
    $region43: #{lenet5_forward.3} parent=1 // pred_check_branch
      %4302 = sbr.rel (0) target = $region45
    $region44: #{lenet5_forward.3} parent=1 // pred_region
      %4303 = dma.done [#allocation3], 32
    $region45: #{lenet5_forward.3} parent=1 // pred_fallthru
      _
    %4304 = vsyncpa [#allocation3], 1

</llo_original>
